<compile_context>
chip_gen: v6e
topology: v6e:2x2x1
jax: 0.10.0
libtpu: 0.0.40
codegen_flags: <defaults>
</compile_context>

<pallas_src>
import functools
import math

import jax
import jax.numpy as jnp
from jax.experimental import pallas as pl
from jax.experimental.pallas import tpu as pltpu

# ----------------------------- model config ---------------------------------
BATCH = 2
SEQ = 8
HIDDEN = 128          # lane-friendly small hidden size
NUM_HEADS = 4
HEAD_DIM = HIDDEN // NUM_HEADS
INTER = 256           # FFN intermediate size
NUM_LAYERS = 2
VOCAB = 96
TYPE_VOCAB = 2
MAX_POS = 16
LN_EPS = 1e-12        # BERT default
MASK_LANES = 128      # lane-dense mask width


# ------------------------------ helpers --------------------------------------
def _layernorm(x, gamma, beta, eps=LN_EPS):
    mu = jnp.mean(x, axis=-1, keepdims=True)
    var = jnp.mean((x - mu) ** 2, axis=-1, keepdims=True)
    return (x - mu) * jax.lax.rsqrt(var + eps) * gamma + beta


# ------------------------------ fused kernel ---------------------------------
def fused_forward_kernel(emb_ref, mb_ref, eg_ref, eb_ref,
                         wqkv_ref, bqkv_ref, wo_ref, bo_ref,
                         g1_ref, be1_ref, w1_ref, b1_ref,
                         w2_ref, b2_ref, g2_ref, be2_ref,
                         o_ref,
                         h_ref, ctx_ref,
                         *, num_heads, head_dim, batch, seq):
    layer = pl.program_id(0)
    hidden = h_ref.shape[1]

    # Embedding LayerNorm only on the first grid step; hidden state then lives
    # in the VMEM scratch h_ref across all layers.
    @pl.when(layer == 0)
    def _():
        h_ref[...] = _layernorm(emb_ref[...], eg_ref[...], eb_ref[...])

    x = h_ref[...]                                      # (B*S, H) f32

    # ---- fused QKV projection (bf16 MXU operands, f32 accumulate) ----
    qkv = (jnp.dot(x.astype(jnp.bfloat16), wqkv_ref[...],
                   preferred_element_type=jnp.float32)
           + bqkv_ref[...])                             # (B*S, 3H) f32

    scale = 1.0 / math.sqrt(head_dim)
    q = qkv[:, :hidden] * scale                         # fold scale into q once
    k = qkv[:, hidden:2 * hidden]
    v = qkv[:, 2 * hidden:3 * hidden]

    mb = mb_ref[...]                                    # (B, 1, 128) f32

    # ---- per (batch, head) attention; context written into lane sub-slices
    #      of the VMEM scratch (no lane-axis concatenate) ----
    for b in range(batch):
        rows = slice(b * seq, (b + 1) * seq)
        bias = mb[b, :, :seq]                           # (1, S) additive bias
        for hh in range(num_heads):
            cols = slice(hh * head_dim, (hh + 1) * head_dim)
            qh = q[rows, cols]
            kh = k[rows, cols]
            vh = v[rows, cols]
            s = jnp.dot(qh.astype(jnp.bfloat16),
                        kh.T.astype(jnp.bfloat16),
                        preferred_element_type=jnp.float32)      # (S, S) f32
            s = s + bias
            s = s - jnp.max(s, axis=-1, keepdims=True)
            p = jnp.exp(s)
            p = p * pl.reciprocal(jnp.sum(p, axis=-1, keepdims=True),
                                  approx=True)
            ctx_ref[rows, cols] = jnp.dot(p.astype(jnp.bfloat16),
                                          vh.astype(jnp.bfloat16),
                                          preferred_element_type=jnp.float32)

    # ---- attention output projection + residual + LN ----
    attn = (jnp.dot(ctx_ref[...].astype(jnp.bfloat16), wo_ref[...],
                    preferred_element_type=jnp.float32)
            + bo_ref[...])
    h1 = _layernorm(x + attn, g1_ref[...], be1_ref[...])

    # ---- feed forward (GELU) + residual + LN ----
    ff = (jnp.dot(h1.astype(jnp.bfloat16), w1_ref[...],
                  preferred_element_type=jnp.float32)
          + b1_ref[...])
    ff = jax.nn.gelu(ff, approximate=True)
    ff = (jnp.dot(ff.astype(jnp.bfloat16), w2_ref[...],
                  preferred_element_type=jnp.float32)
          + b2_ref[...])
    out = _layernorm(h1 + ff, g2_ref[...], be2_ref[...])

    h_ref[...] = out
    # CLS token = batch 0, position 0 == row 0 of the (B*S, H) flattening.
    o_ref[...] = out[0:1, :]


# ------------------------------ wrapper ---------------------------------------
def fused_forward(emb_flat, mask_bias, p):
    BS, H = emb_flat.shape
    I = p["w1"].shape[2]
    L = p["wqkv"].shape[0]

    kern = functools.partial(fused_forward_kernel,
                             num_heads=NUM_HEADS, head_dim=HEAD_DIM,
                             batch=BATCH, seq=SEQ)

    per_layer = lambda last2: pl.BlockSpec((None,) + last2,
                                           lambda l: (l, 0, 0))
    in_specs = [
        pl.BlockSpec((BS, H), lambda l: (0, 0)),                 # emb
        pl.BlockSpec((BATCH, 1, MASK_LANES), lambda l: (0, 0, 0)),  # mask bias
        pl.BlockSpec((1, H), lambda l: (0, 0)),                  # emb LN gamma
        pl.BlockSpec((1, H), lambda l: (0, 0)),                  # emb LN beta
        per_layer((H, 3 * H)),                                   # wqkv
        per_layer((1, 3 * H)),                                   # bqkv
        per_layer((H, H)),                                       # wo
        per_layer((1, H)),                                       # bo
        per_layer((1, H)),                                       # ln1 gamma
        per_layer((1, H)),                                       # ln1 beta
        per_layer((H, I)),                                       # w1
        per_layer((1, I)),                                       # b1
        per_layer((I, H)),                                       # w2
        per_layer((1, H)),                                       # b2
        per_layer((1, H)),                                       # ln2 gamma
        per_layer((1, H)),                                       # ln2 beta
    ]

    grid_spec = pltpu.PrefetchScalarGridSpec(
        num_scalar_prefetch=0,
        grid=(L,),
        in_specs=in_specs,
        out_specs=pl.BlockSpec((1, H), lambda l: (0, 0)),
        scratch_shapes=[pltpu.VMEM((BS, H), jnp.float32),   # hidden state carry
                        pltpu.VMEM((BS, H), jnp.float32)],  # attention context
    )

    return pl.pallas_call(
        kern,
        out_shape=jax.ShapeDtypeStruct((1, H), jnp.float32),
        grid_spec=grid_spec,
        compiler_params=pltpu.CompilerParams(
            dimension_semantics=("arbitrary",),
            vmem_limit_bytes=16 * 1024 * 1024),
    )(emb_flat, mask_bias,
      p["emb_ln_g"], p["emb_ln_b"],
      p["wqkv"], p["bqkv"], p["wo"], p["bo"],
      p["ln1_g"], p["ln1_b"],
      p["w1"], p["b1"], p["w2"], p["b2"],
      p["ln2_g"], p["ln2_b"])


# ------------------------------ parameters ------------------------------------
def init_params(key):
    # TODO(synk): real module loads HuggingFace pretrained BERT weights; here we
    # use a small synthetic random-initialized encoder with identical math.
    def nrm(k, shape):
        return (0.02 * jax.random.normal(k, shape)).astype(jnp.float32)

    keys = jax.random.split(key, 3 + NUM_LAYERS)
    wqkv, wo, w1, w2 = [], [], [], []
    for li in range(NUM_LAYERS):
        lk = jax.random.split(keys[3 + li], 6)
        wq = nrm(lk[0], (HIDDEN, HIDDEN))
        wk = nrm(lk[1], (HIDDEN, HIDDEN))
        wv = nrm(lk[2], (HIDDEN, HIDDEN))
        wqkv.append(jnp.concatenate([wq, wk, wv], axis=1))
        wo.append(nrm(lk[3], (HIDDEN, HIDDEN)))
        w1.append(nrm(lk[4], (HIDDEN, INTER)))
        w2.append(nrm(lk[5], (INTER, HIDDEN)))

    return {
        "word_emb": nrm(keys[0], (VOCAB, HIDDEN)),
        "pos_emb": nrm(keys[1], (MAX_POS, HIDDEN)),
        "type_emb": nrm(keys[2], (TYPE_VOCAB, HIDDEN)),
        "emb_ln_g": jnp.ones((1, HIDDEN), jnp.float32),
        "emb_ln_b": jnp.zeros((1, HIDDEN), jnp.float32),
        # stacked per-layer weights; MXU operands stored as bf16
        "wqkv": jnp.stack(wqkv).astype(jnp.bfloat16),                 # (L,H,3H)
        "bqkv": jnp.zeros((NUM_LAYERS, 1, 3 * HIDDEN), jnp.float32),
        "wo": jnp.stack(wo).astype(jnp.bfloat16),                     # (L,H,H)
        "bo": jnp.zeros((NUM_LAYERS, 1, HIDDEN), jnp.float32),
        "ln1_g": jnp.ones((NUM_LAYERS, 1, HIDDEN), jnp.float32),
        "ln1_b": jnp.zeros((NUM_LAYERS, 1, HIDDEN), jnp.float32),
        "w1": jnp.stack(w1).astype(jnp.bfloat16),                     # (L,H,I)
        "b1": jnp.zeros((NUM_LAYERS, 1, INTER), jnp.float32),
        "w2": jnp.stack(w2).astype(jnp.bfloat16),                     # (L,I,H)
        "b2": jnp.zeros((NUM_LAYERS, 1, HIDDEN), jnp.float32),
        "ln2_g": jnp.ones((NUM_LAYERS, 1, HIDDEN), jnp.float32),
        "ln2_b": jnp.zeros((NUM_LAYERS, 1, HIDDEN), jnp.float32),
    }


# ------------------------------ forward ---------------------------------------
def pretrained_model_forward(params, input_ids, attention_mask, token_type_ids):
    B, S = input_ids.shape
    # Embedding gathers are data-dependent lookups -> plain JAX glue.
    pos_ids = jnp.arange(S, dtype=jnp.int32)
    emb = (jnp.take(params["word_emb"], input_ids, axis=0)
           + jnp.take(params["pos_emb"], pos_ids, axis=0)[None, :, :]
           + jnp.take(params["type_emb"], token_type_ids, axis=0))
    emb_flat = emb.reshape(B * S, HIDDEN).astype(jnp.float32)

    # Lane-dense (B, 1, 128) additive attention-mask bias (valid in lanes [:S]).
    mb = (1.0 - attention_mask.astype(jnp.float32)) * -10000.0        # (B, S)
    mask_bias = jnp.zeros((B, 1, MASK_LANES), jnp.float32).at[:, 0, :S].set(mb)

    # cls_token = last_hidden_state[0][0].unsqueeze(0)  -> shape (1, H)
    return fused_forward(emb_flat, mask_bias, params)


# ------------------------------ pure-JAX reference ----------------------------
def forward_reference(params, input_ids, attention_mask, token_type_ids):
    B, S = input_ids.shape
    pos_ids = jnp.arange(S, dtype=jnp.int32)
    emb = (jnp.take(params["word_emb"], input_ids, axis=0)
           + jnp.take(params["pos_emb"], pos_ids, axis=0)[None, :, :]
           + jnp.take(params["type_emb"], token_type_ids, axis=0))
    h = _layernorm(emb, params["emb_ln_g"], params["emb_ln_b"])
    bias = ((1.0 - attention_mask.astype(jnp.float32)) * -10000.0)[:, None, None, :]
    for li in range(NUM_LAYERS):
        qkv = h @ params["wqkv"][li].astype(jnp.float32) + params["bqkv"][li][0]
        q, k, v = jnp.split(qkv, 3, axis=-1)
        split = lambda t: t.reshape(B, S, NUM_HEADS, HEAD_DIM).transpose(0, 2, 1, 3)
        q, k, v = split(q), split(k), split(v)
        s = jnp.einsum("bhqd,bhkd->bhqk", q, k) / math.sqrt(HEAD_DIM) + bias
        p = jax.nn.softmax(s, axis=-1)
        ctx = jnp.einsum("bhqk,bhkd->bhqd", p, v)
        ctx = ctx.transpose(0, 2, 1, 3).reshape(B, S, HIDDEN)
        attn = ctx @ params["wo"][li].astype(jnp.float32) + params["bo"][li][0]
        h1 = _layernorm(h + attn, params["ln1_g"][li], params["ln1_b"][li])
        ff = h1 @ params["w1"][li].astype(jnp.float32) + params["b1"][li][0]
        ff = jax.nn.gelu(ff, approximate=True)
        ff = ff @ params["w2"][li].astype(jnp.float32) + params["b2"][li][0]
        h = _layernorm(h1 + ff, params["ln2_g"][li], params["ln2_b"][li])
    return h[0, 0][None, :]


# ------------------------------ main -------------------------------------------
if __name__ == "__main__":
    key = jax.random.PRNGKey(0)
    pkey, dkey, tkey = jax.random.split(key, 3)

    params = init_params(pkey)

    input_ids = jax.random.randint(dkey, (BATCH, SEQ), 0, VOCAB, dtype=jnp.int32)
    token_type_ids = jax.random.randint(tkey, (BATCH, SEQ), 0, TYPE_VOCAB,
                                        dtype=jnp.int32)
    attention_mask = jnp.ones((BATCH, SEQ), jnp.int32)
    attention_mask = attention_mask.at[1, -2:].set(0)   # some padded positions

    cls = pretrained_model_forward(params, input_ids, attention_mask,
                                   token_type_ids)
    cls = jax.block_until_ready(cls)

    assert cls.shape == (1, HIDDEN), cls.shape
    assert bool(jnp.all(jnp.isfinite(cls)))

    ref = forward_reference(params, input_ids, attention_mask, token_type_ids)
    max_err = float(jnp.max(jnp.abs(cls - ref)))
    assert max_err < 1e-1, f"mismatch vs reference: {max_err}"

    print("KERNEL_OK")
</pallas_src>

<mosaic_0001>
module attributes {stable_mosaic.version = 11 : i64} {
  func.func @fused_forward_kernel(%arg0: i32, %arg1: memref<16x128xf32, #tpu.memory_space<vmem>>, %arg2: memref<2x1x128xf32, #tpu.memory_space<vmem>>, %arg3: memref<1x128xf32, #tpu.memory_space<vmem>>, %arg4: memref<1x128xf32, #tpu.memory_space<vmem>>, %arg5: memref<1x128x384xbf16, #tpu.memory_space<vmem>>, %arg6: memref<1x1x384xf32, #tpu.memory_space<vmem>>, %arg7: memref<1x128x128xbf16, #tpu.memory_space<vmem>>, %arg8: memref<1x1x128xf32, #tpu.memory_space<vmem>>, %arg9: memref<1x1x128xf32, #tpu.memory_space<vmem>>, %arg10: memref<1x1x128xf32, #tpu.memory_space<vmem>>, %arg11: memref<1x128x256xbf16, #tpu.memory_space<vmem>>, %arg12: memref<1x1x256xf32, #tpu.memory_space<vmem>>, %arg13: memref<1x256x128xbf16, #tpu.memory_space<vmem>>, %arg14: memref<1x1x128xf32, #tpu.memory_space<vmem>>, %arg15: memref<1x1x128xf32, #tpu.memory_space<vmem>>, %arg16: memref<1x1x128xf32, #tpu.memory_space<vmem>>, %arg17: memref<1x128xf32, #tpu.memory_space<vmem>>, %arg18: memref<16x128xf32, #tpu.memory_space<vmem>>, %arg19: memref<16x128xf32, #tpu.memory_space<vmem>>) attributes {dimension_semantics = [#tpu.dimension_semantics<arbitrary>], iteration_bounds = array<i64: 2>, scalar_prefetch = 0 : i64, scratch_operands = 2 : i64, tpu.core_type = #tpu.core_type<tc>, window_params = [{pipeline_mode = #tpu.pipeline_mode<synchronous>, transform_indices = @transform_0, window_bounds = array<i64: 16, 128>}, {pipeline_mode = #tpu.pipeline_mode<synchronous>, transform_indices = @transform_1, window_bounds = array<i64: 2, 1, 128>}, {pipeline_mode = #tpu.pipeline_mode<synchronous>, transform_indices = @transform_2, window_bounds = array<i64: 1, 128>}, {pipeline_mode = #tpu.pipeline_mode<synchronous>, transform_indices = @transform_3, window_bounds = array<i64: 1, 128>}, {transform_indices = @transform_4, window_bounds = array<i64: 1, 128, 384>}, {transform_indices = @transform_5, window_bounds = array<i64: 1, 1, 384>}, {transform_indices = @transform_6, window_bounds = array<i64: 1, 128, 128>}, {transform_indices = @transform_7, window_bounds = array<i64: 1, 1, 128>}, {transform_indices = @transform_8, window_bounds = array<i64: 1, 1, 128>}, {transform_indices = @transform_9, window_bounds = array<i64: 1, 1, 128>}, {transform_indices = @transform_10, window_bounds = array<i64: 1, 128, 256>}, {transform_indices = @transform_11, window_bounds = array<i64: 1, 1, 256>}, {transform_indices = @transform_12, window_bounds = array<i64: 1, 256, 128>}, {transform_indices = @transform_13, window_bounds = array<i64: 1, 1, 128>}, {transform_indices = @transform_14, window_bounds = array<i64: 1, 1, 128>}, {transform_indices = @transform_15, window_bounds = array<i64: 1, 1, 128>}, {pipeline_mode = #tpu.pipeline_mode<synchronous>, transform_indices = @transform_16, window_bounds = array<i64: 1, 128>}]} {
    %c0_i32 = arith.constant 0 : i32
    %0 = arith.cmpi eq, %arg0, %c0_i32 : i32
    %1 = arith.extui %0 : i1 to i32
    %c0_i32_0 = arith.constant 0 : i32
    %2 = arith.cmpi ne, %1, %c0_i32_0 : i32
    scf.if %2 {
      %c0_109 = arith.constant 0 : index
      %c0_110 = arith.constant 0 : index
      %301 = vector.load %arg1[%c0_109, %c0_110] : memref<16x128xf32, #tpu.memory_space<vmem>>, vector<16x128xf32>
      %c0_111 = arith.constant 0 : index
      %c0_112 = arith.constant 0 : index
      %302 = vector.load %arg3[%c0_111, %c0_112] : memref<1x128xf32, #tpu.memory_space<vmem>>, vector<1x128xf32>
      %c0_113 = arith.constant 0 : index
      %c0_114 = arith.constant 0 : index
      %303 = vector.load %arg4[%c0_113, %c0_114] : memref<1x128xf32, #tpu.memory_space<vmem>>, vector<1x128xf32>
      %cst_115 = arith.constant dense<0.000000e+00> : vector<16xf32>
      %304 = vector.multi_reduction <add>, %301, %cst_115 [1] : vector<16x128xf32> to vector<16xf32>
      %305 = vector.shape_cast %304 : vector<16xf32> to vector<16x1xf32>
      %cst_116 = arith.constant 1.280000e+02 : f32
      %306 = vector.broadcast %cst_116 : f32 to vector<16x1xf32>
      %307 = arith.divf %305, %306 : vector<16x1xf32>
      %308 = vector.broadcast %307 : vector<16x1xf32> to vector<16x128xf32>
      %309 = arith.subf %301, %308 : vector<16x128xf32>
      %310 = arith.mulf %309, %309 : vector<16x128xf32>
      %cst_117 = arith.constant dense<0.000000e+00> : vector<16xf32>
      %311 = vector.multi_reduction <add>, %310, %cst_117 [1] : vector<16x128xf32> to vector<16xf32>
      %312 = vector.shape_cast %311 : vector<16xf32> to vector<16x1xf32>
      %cst_118 = arith.constant 1.280000e+02 : f32
      %313 = vector.broadcast %cst_118 : f32 to vector<16x1xf32>
      %314 = arith.divf %312, %313 : vector<16x1xf32>
      %315 = vector.broadcast %307 : vector<16x1xf32> to vector<16x128xf32>
      %316 = arith.subf %301, %315 : vector<16x128xf32>
      %cst_119 = arith.constant 9.99999996E-13 : f32
      %317 = vector.broadcast %cst_119 : f32 to vector<16x1xf32>
      %318 = arith.addf %314, %317 : vector<16x1xf32>
      %319 = math.rsqrt %318 : vector<16x1xf32>
      %320 = vector.broadcast %319 : vector<16x1xf32> to vector<16x128xf32>
      %321 = arith.mulf %316, %320 : vector<16x128xf32>
      %322 = vector.broadcast %302 : vector<1x128xf32> to vector<16x128xf32>
      %323 = arith.mulf %321, %322 : vector<16x128xf32>
      %324 = vector.broadcast %303 : vector<1x128xf32> to vector<16x128xf32>
      %325 = arith.addf %323, %324 : vector<16x128xf32>
      %c0_120 = arith.constant 0 : index
      %c0_121 = arith.constant 0 : index
      %326 = vector.load %arg18[%c0_120, %c0_121] : memref<16x128xf32, #tpu.memory_space<vmem>>, vector<16x128xf32>
      tpu.vector_store %arg18[%c0_120, %c0_121], %325 {strides = array<i32>} : memref<16x128xf32, #tpu.memory_space<vmem>>, vector<16x128xf32>,
    } else {
    }
    %c0 = arith.constant 0 : index
    %c0_1 = arith.constant 0 : index
    %3 = vector.load %arg18[%c0, %c0_1] : memref<16x128xf32, #tpu.memory_space<vmem>>, vector<16x128xf32>
    %4 = arith.truncf %3 : vector<16x128xf32> to vector<16x128xbf16>
    %c0_2 = arith.constant 0 : index
    %c0_3 = arith.constant 0 : index
    %c0_4 = arith.constant 0 : index
    %5 = vector.load %arg5[%c0_2, %c0_3, %c0_4] : memref<1x128x384xbf16, #tpu.memory_space<vmem>>, vector<1x128x384xbf16>
    %6 = vector.shape_cast %5 : vector<1x128x384xbf16> to vector<128x384xbf16>
    %cst = arith.constant dense<0.000000e+00> : vector<16x384xf32>
    %7 = tpu.matmul %4, %6, %cst {dimension_numbers = #tpu.dot_dimension_numbers<[1], [0], [0], [1], [0, 0, 1, 1], [], []>} : vector<16x128xbf16>, vector<128x384xbf16>, vector<16x384xf32> -> vector<16x384xf32>
    %c0_5 = arith.constant 0 : index
    %c0_6 = arith.constant 0 : index
    %c0_7 = arith.constant 0 : index
    %8 = vector.load %arg6[%c0_5, %c0_6, %c0_7] : memref<1x1x384xf32, #tpu.memory_space<vmem>>, vector<1x1x384xf32>
    %9 = vector.shape_cast %8 : vector<1x1x384xf32> to vector<1x384xf32>
    %10 = vector.broadcast %9 : vector<1x384xf32> to vector<16x384xf32>
    %11 = arith.addf %7, %10 : vector<16x384xf32>
    %12 = vector.extract_strided_slice %11 {offsets = [0, 0], sizes = [16, 128], strides = [1, 1]} : vector<16x384xf32> to vector<16x128xf32>
    %cst_8 = arith.constant 0.176776692 : f32
    %13 = vector.broadcast %cst_8 : f32 to vector<16x128xf32>
    %14 = arith.mulf %12, %13 : vector<16x128xf32>
    %15 = vector.extract_strided_slice %11 {offsets = [0, 128], sizes = [16, 128], strides = [1, 1]} : vector<16x384xf32> to vector<16x128xf32>
    %16 = vector.extract_strided_slice %11 {offsets = [0, 256], sizes = [16, 128], strides = [1, 1]} : vector<16x384xf32> to vector<16x128xf32>
    %c0_9 = arith.constant 0 : index
    %c0_10 = arith.constant 0 : index
    %c0_11 = arith.constant 0 : index
    %17 = vector.load %arg2[%c0_9, %c0_10, %c0_11] : memref<2x1x128xf32, #tpu.memory_space<vmem>>, vector<2x1x128xf32>
    %18 = vector.extract_strided_slice %17 {offsets = [0, 0, 0], sizes = [1, 1, 8], strides = [1, 1, 1]} : vector<2x1x128xf32> to vector<1x1x8xf32>
    %19 = vector.shape_cast %18 : vector<1x1x8xf32> to vector<1x8xf32>
    %20 = vector.extract_strided_slice %14 {offsets = [0, 0], sizes = [8, 32], strides = [1, 1]} : vector<16x128xf32> to vector<8x32xf32>
    %21 = vector.extract_strided_slice %15 {offsets = [0, 0], sizes = [8, 32], strides = [1, 1]} : vector<16x128xf32> to vector<8x32xf32>
    %22 = vector.extract_strided_slice %16 {offsets = [0, 0], sizes = [8, 32], strides = [1, 1]} : vector<16x128xf32> to vector<8x32xf32>
    %23 = arith.truncf %20 : vector<8x32xf32> to vector<8x32xbf16>
    %24 = tpu.transpose %21, [1, 0] : vector<8x32xf32> -> vector<32x8xf32>
    %25 = arith.truncf %24 : vector<32x8xf32> to vector<32x8xbf16>
    %cst_12 = arith.constant dense<0.000000e+00> : vector<8x8xf32>
    %26 = tpu.matmul %23, %25, %cst_12 {dimension_numbers = #tpu.dot_dimension_numbers<[1], [0], [0], [1], [0, 0, 1, 1], [], []>} : vector<8x32xbf16>, vector<32x8xbf16>, vector<8x8xf32> -> vector<8x8xf32>
    %27 = vector.broadcast %19 : vector<1x8xf32> to vector<8x8xf32>
    %28 = arith.addf %26, %27 : vector<8x8xf32>
    %cst_13 = arith.constant dense<0xFF800000> : vector<8xf32>
    %29 = vector.multi_reduction <maximumf>, %28, %cst_13 [1] : vector<8x8xf32> to vector<8xf32>
    %30 = vector.shape_cast %29 : vector<8xf32> to vector<8x1xf32>
    %31 = vector.broadcast %30 : vector<8x1xf32> to vector<8x8xf32>
    %32 = arith.subf %28, %31 : vector<8x8xf32>
    %33 = math.exp %32 : vector<8x8xf32>
    %cst_14 = arith.constant dense<0.000000e+00> : vector<8xf32>
    %34 = vector.multi_reduction <add>, %33, %cst_14 [1] : vector<8x8xf32> to vector<8xf32>
    %35 = vector.shape_cast %34 : vector<8xf32> to vector<8x1xf32>
    %36 = tpu.reciprocal %35 {approx = true} : vector<8x1xf32> -> vector<8x1xf32>
    %37 = vector.broadcast %36 : vector<8x1xf32> to vector<8x8xf32>
    %38 = arith.mulf %33, %37 : vector<8x8xf32>
    %39 = arith.truncf %38 : vector<8x8xf32> to vector<8x8xbf16>
    %40 = arith.truncf %22 : vector<8x32xf32> to vector<8x32xbf16>
    %cst_15 = arith.constant dense<0.000000e+00> : vector<8x32xf32>
    %41 = tpu.matmul %39, %40, %cst_15 {dimension_numbers = #tpu.dot_dimension_numbers<[1], [0], [0], [1], [0, 0, 1, 1], [], []>} : vector<8x8xbf16>, vector<8x32xbf16>, vector<8x32xf32> -> vector<8x32xf32>
    %c0_16 = arith.constant 0 : index
    %c0_17 = arith.constant 0 : index
    %42 = vector.load %arg19[%c0_16, %c0_17] : memref<16x128xf32, #tpu.memory_space<vmem>>, vector<8x32xf32>
    tpu.vector_store %arg19[%c0_16, %c0_17], %41 {strides = array<i32>} : memref<16x128xf32, #tpu.memory_space<vmem>>, vector<8x32xf32>,
    %43 = vector.extract_strided_slice %14 {offsets = [0, 32], sizes = [8, 32], strides = [1, 1]} : vector<16x128xf32> to vector<8x32xf32>
    %44 = vector.extract_strided_slice %15 {offsets = [0, 32], sizes = [8, 32], strides = [1, 1]} : vector<16x128xf32> to vector<8x32xf32>
    %45 = vector.extract_strided_slice %16 {offsets = [0, 32], sizes = [8, 32], strides = [1, 1]} : vector<16x128xf32> to vector<8x32xf32>
    %46 = arith.truncf %43 : vector<8x32xf32> to vector<8x32xbf16>
    %47 = tpu.transpose %44, [1, 0] : vector<8x32xf32> -> vector<32x8xf32>
    %48 = arith.truncf %47 : vector<32x8xf32> to vector<32x8xbf16>
    %cst_18 = arith.constant dense<0.000000e+00> : vector<8x8xf32>
    %49 = tpu.matmul %46, %48, %cst_18 {dimension_numbers = #tpu.dot_dimension_numbers<[1], [0], [0], [1], [0, 0, 1, 1], [], []>} : vector<8x32xbf16>, vector<32x8xbf16>, vector<8x8xf32> -> vector<8x8xf32>
    %50 = vector.broadcast %19 : vector<1x8xf32> to vector<8x8xf32>
    %51 = arith.addf %49, %50 : vector<8x8xf32>
    %cst_19 = arith.constant dense<0xFF800000> : vector<8xf32>
    %52 = vector.multi_reduction <maximumf>, %51, %cst_19 [1] : vector<8x8xf32> to vector<8xf32>
    %53 = vector.shape_cast %52 : vector<8xf32> to vector<8x1xf32>
    %54 = vector.broadcast %53 : vector<8x1xf32> to vector<8x8xf32>
    %55 = arith.subf %51, %54 : vector<8x8xf32>
    %56 = math.exp %55 : vector<8x8xf32>
    %cst_20 = arith.constant dense<0.000000e+00> : vector<8xf32>
    %57 = vector.multi_reduction <add>, %56, %cst_20 [1] : vector<8x8xf32> to vector<8xf32>
    %58 = vector.shape_cast %57 : vector<8xf32> to vector<8x1xf32>
    %59 = tpu.reciprocal %58 {approx = true} : vector<8x1xf32> -> vector<8x1xf32>
    %60 = vector.broadcast %59 : vector<8x1xf32> to vector<8x8xf32>
    %61 = arith.mulf %56, %60 : vector<8x8xf32>
    %62 = arith.truncf %61 : vector<8x8xf32> to vector<8x8xbf16>
    %63 = arith.truncf %45 : vector<8x32xf32> to vector<8x32xbf16>
    %cst_21 = arith.constant dense<0.000000e+00> : vector<8x32xf32>
    %64 = tpu.matmul %62, %63, %cst_21 {dimension_numbers = #tpu.dot_dimension_numbers<[1], [0], [0], [1], [0, 0, 1, 1], [], []>} : vector<8x8xbf16>, vector<8x32xbf16>, vector<8x32xf32> -> vector<8x32xf32>
    %c0_22 = arith.constant 0 : index
    %c32 = arith.constant 32 : index
    %65 = vector.load %arg19[%c0_22, %c32] : memref<16x128xf32, #tpu.memory_space<vmem>>, vector<8x32xf32>
    tpu.vector_store %arg19[%c0_22, %c32], %64 {strides = array<i32>} : memref<16x128xf32, #tpu.memory_space<vmem>>, vector<8x32xf32>,
    %66 = vector.extract_strided_slice %14 {offsets = [0, 64], sizes = [8, 32], strides = [1, 1]} : vector<16x128xf32> to vector<8x32xf32>
    %67 = vector.extract_strided_slice %15 {offsets = [0, 64], sizes = [8, 32], strides = [1, 1]} : vector<16x128xf32> to vector<8x32xf32>
    %68 = vector.extract_strided_slice %16 {offsets = [0, 64], sizes = [8, 32], strides = [1, 1]} : vector<16x128xf32> to vector<8x32xf32>
    %69 = arith.truncf %66 : vector<8x32xf32> to vector<8x32xbf16>
    %70 = tpu.transpose %67, [1, 0] : vector<8x32xf32> -> vector<32x8xf32>
    %71 = arith.truncf %70 : vector<32x8xf32> to vector<32x8xbf16>
    %cst_23 = arith.constant dense<0.000000e+00> : vector<8x8xf32>
    %72 = tpu.matmul %69, %71, %cst_23 {dimension_numbers = #tpu.dot_dimension_numbers<[1], [0], [0], [1], [0, 0, 1, 1], [], []>} : vector<8x32xbf16>, vector<32x8xbf16>, vector<8x8xf32> -> vector<8x8xf32>
    %73 = vector.broadcast %19 : vector<1x8xf32> to vector<8x8xf32>
    %74 = arith.addf %72, %73 : vector<8x8xf32>
    %cst_24 = arith.constant dense<0xFF800000> : vector<8xf32>
    %75 = vector.multi_reduction <maximumf>, %74, %cst_24 [1] : vector<8x8xf32> to vector<8xf32>
    %76 = vector.shape_cast %75 : vector<8xf32> to vector<8x1xf32>
    %77 = vector.broadcast %76 : vector<8x1xf32> to vector<8x8xf32>
    %78 = arith.subf %74, %77 : vector<8x8xf32>
    %79 = math.exp %78 : vector<8x8xf32>
    %cst_25 = arith.constant dense<0.000000e+00> : vector<8xf32>
    %80 = vector.multi_reduction <add>, %79, %cst_25 [1] : vector<8x8xf32> to vector<8xf32>
    %81 = vector.shape_cast %80 : vector<8xf32> to vector<8x1xf32>
    %82 = tpu.reciprocal %81 {approx = true} : vector<8x1xf32> -> vector<8x1xf32>
    %83 = vector.broadcast %82 : vector<8x1xf32> to vector<8x8xf32>
    %84 = arith.mulf %79, %83 : vector<8x8xf32>
    %85 = arith.truncf %84 : vector<8x8xf32> to vector<8x8xbf16>
    %86 = arith.truncf %68 : vector<8x32xf32> to vector<8x32xbf16>
    %cst_26 = arith.constant dense<0.000000e+00> : vector<8x32xf32>
    %87 = tpu.matmul %85, %86, %cst_26 {dimension_numbers = #tpu.dot_dimension_numbers<[1], [0], [0], [1], [0, 0, 1, 1], [], []>} : vector<8x8xbf16>, vector<8x32xbf16>, vector<8x32xf32> -> vector<8x32xf32>
    %c0_27 = arith.constant 0 : index
    %c64 = arith.constant 64 : index
    %88 = vector.load %arg19[%c0_27, %c64] : memref<16x128xf32, #tpu.memory_space<vmem>>, vector<8x32xf32>
    tpu.vector_store %arg19[%c0_27, %c64], %87 {strides = array<i32>} : memref<16x128xf32, #tpu.memory_space<vmem>>, vector<8x32xf32>,
    %89 = vector.extract_strided_slice %14 {offsets = [0, 96], sizes = [8, 32], strides = [1, 1]} : vector<16x128xf32> to vector<8x32xf32>
    %90 = vector.extract_strided_slice %15 {offsets = [0, 96], sizes = [8, 32], strides = [1, 1]} : vector<16x128xf32> to vector<8x32xf32>
    %91 = vector.extract_strided_slice %16 {offsets = [0, 96], sizes = [8, 32], strides = [1, 1]} : vector<16x128xf32> to vector<8x32xf32>
    %92 = arith.truncf %89 : vector<8x32xf32> to vector<8x32xbf16>
    %93 = tpu.transpose %90, [1, 0] : vector<8x32xf32> -> vector<32x8xf32>
    %94 = arith.truncf %93 : vector<32x8xf32> to vector<32x8xbf16>
    %cst_28 = arith.constant dense<0.000000e+00> : vector<8x8xf32>
    %95 = tpu.matmul %92, %94, %cst_28 {dimension_numbers = #tpu.dot_dimension_numbers<[1], [0], [0], [1], [0, 0, 1, 1], [], []>} : vector<8x32xbf16>, vector<32x8xbf16>, vector<8x8xf32> -> vector<8x8xf32>
    %96 = vector.broadcast %19 : vector<1x8xf32> to vector<8x8xf32>
    %97 = arith.addf %95, %96 : vector<8x8xf32>
    %cst_29 = arith.constant dense<0xFF800000> : vector<8xf32>
    %98 = vector.multi_reduction <maximumf>, %97, %cst_29 [1] : vector<8x8xf32> to vector<8xf32>
    %99 = vector.shape_cast %98 : vector<8xf32> to vector<8x1xf32>
    %100 = vector.broadcast %99 : vector<8x1xf32> to vector<8x8xf32>
    %101 = arith.subf %97, %100 : vector<8x8xf32>
    %102 = math.exp %101 : vector<8x8xf32>
    %cst_30 = arith.constant dense<0.000000e+00> : vector<8xf32>
    %103 = vector.multi_reduction <add>, %102, %cst_30 [1] : vector<8x8xf32> to vector<8xf32>
    %104 = vector.shape_cast %103 : vector<8xf32> to vector<8x1xf32>
    %105 = tpu.reciprocal %104 {approx = true} : vector<8x1xf32> -> vector<8x1xf32>
    %106 = vector.broadcast %105 : vector<8x1xf32> to vector<8x8xf32>
    %107 = arith.mulf %102, %106 : vector<8x8xf32>
    %108 = arith.truncf %107 : vector<8x8xf32> to vector<8x8xbf16>
    %109 = arith.truncf %91 : vector<8x32xf32> to vector<8x32xbf16>
    %cst_31 = arith.constant dense<0.000000e+00> : vector<8x32xf32>
    %110 = tpu.matmul %108, %109, %cst_31 {dimension_numbers = #tpu.dot_dimension_numbers<[1], [0], [0], [1], [0, 0, 1, 1], [], []>} : vector<8x8xbf16>, vector<8x32xbf16>, vector<8x32xf32> -> vector<8x32xf32>
    %c0_32 = arith.constant 0 : index
    %c96 = arith.constant 96 : index
    %111 = vector.load %arg19[%c0_32, %c96] : memref<16x128xf32, #tpu.memory_space<vmem>>, vector<8x32xf32>
    tpu.vector_store %arg19[%c0_32, %c96], %110 {strides = array<i32>} : memref<16x128xf32, #tpu.memory_space<vmem>>, vector<8x32xf32>,
    %112 = vector.extract_strided_slice %17 {offsets = [1, 0, 0], sizes = [1, 1, 8], strides = [1, 1, 1]} : vector<2x1x128xf32> to vector<1x1x8xf32>
    %113 = vector.shape_cast %112 : vector<1x1x8xf32> to vector<1x8xf32>
    %114 = vector.extract_strided_slice %14 {offsets = [8, 0], sizes = [8, 32], strides = [1, 1]} : vector<16x128xf32> to vector<8x32xf32>
    %115 = vector.extract_strided_slice %15 {offsets = [8, 0], sizes = [8, 32], strides = [1, 1]} : vector<16x128xf32> to vector<8x32xf32>
    %116 = vector.extract_strided_slice %16 {offsets = [8, 0], sizes = [8, 32], strides = [1, 1]} : vector<16x128xf32> to vector<8x32xf32>
    %117 = arith.truncf %114 : vector<8x32xf32> to vector<8x32xbf16>
    %118 = tpu.transpose %115, [1, 0] : vector<8x32xf32> -> vector<32x8xf32>
    %119 = arith.truncf %118 : vector<32x8xf32> to vector<32x8xbf16>
    %cst_33 = arith.constant dense<0.000000e+00> : vector<8x8xf32>
    %120 = tpu.matmul %117, %119, %cst_33 {dimension_numbers = #tpu.dot_dimension_numbers<[1], [0], [0], [1], [0, 0, 1, 1], [], []>} : vector<8x32xbf16>, vector<32x8xbf16>, vector<8x8xf32> -> vector<8x8xf32>
    %121 = vector.broadcast %113 : vector<1x8xf32> to vector<8x8xf32>
    %122 = arith.addf %120, %121 : vector<8x8xf32>
    %cst_34 = arith.constant dense<0xFF800000> : vector<8xf32>
    %123 = vector.multi_reduction <maximumf>, %122, %cst_34 [1] : vector<8x8xf32> to vector<8xf32>
    %124 = vector.shape_cast %123 : vector<8xf32> to vector<8x1xf32>
    %125 = vector.broadcast %124 : vector<8x1xf32> to vector<8x8xf32>
    %126 = arith.subf %122, %125 : vector<8x8xf32>
    %127 = math.exp %126 : vector<8x8xf32>
    %cst_35 = arith.constant dense<0.000000e+00> : vector<8xf32>
    %128 = vector.multi_reduction <add>, %127, %cst_35 [1] : vector<8x8xf32> to vector<8xf32>
    %129 = vector.shape_cast %128 : vector<8xf32> to vector<8x1xf32>
    %130 = tpu.reciprocal %129 {approx = true} : vector<8x1xf32> -> vector<8x1xf32>
    %131 = vector.broadcast %130 : vector<8x1xf32> to vector<8x8xf32>
    %132 = arith.mulf %127, %131 : vector<8x8xf32>
    %133 = arith.truncf %132 : vector<8x8xf32> to vector<8x8xbf16>
    %134 = arith.truncf %116 : vector<8x32xf32> to vector<8x32xbf16>
    %cst_36 = arith.constant dense<0.000000e+00> : vector<8x32xf32>
    %135 = tpu.matmul %133, %134, %cst_36 {dimension_numbers = #tpu.dot_dimension_numbers<[1], [0], [0], [1], [0, 0, 1, 1], [], []>} : vector<8x8xbf16>, vector<8x32xbf16>, vector<8x32xf32> -> vector<8x32xf32>
    %c8 = arith.constant 8 : index
    %c0_37 = arith.constant 0 : index
    %136 = vector.load %arg19[%c8, %c0_37] : memref<16x128xf32, #tpu.memory_space<vmem>>, vector<8x32xf32>
    tpu.vector_store %arg19[%c8, %c0_37], %135 {strides = array<i32>} : memref<16x128xf32, #tpu.memory_space<vmem>>, vector<8x32xf32>,
    %137 = vector.extract_strided_slice %14 {offsets = [8, 32], sizes = [8, 32], strides = [1, 1]} : vector<16x128xf32> to vector<8x32xf32>
    %138 = vector.extract_strided_slice %15 {offsets = [8, 32], sizes = [8, 32], strides = [1, 1]} : vector<16x128xf32> to vector<8x32xf32>
    %139 = vector.extract_strided_slice %16 {offsets = [8, 32], sizes = [8, 32], strides = [1, 1]} : vector<16x128xf32> to vector<8x32xf32>
    %140 = arith.truncf %137 : vector<8x32xf32> to vector<8x32xbf16>
    %141 = tpu.transpose %138, [1, 0] : vector<8x32xf32> -> vector<32x8xf32>
    %142 = arith.truncf %141 : vector<32x8xf32> to vector<32x8xbf16>
    %cst_38 = arith.constant dense<0.000000e+00> : vector<8x8xf32>
    %143 = tpu.matmul %140, %142, %cst_38 {dimension_numbers = #tpu.dot_dimension_numbers<[1], [0], [0], [1], [0, 0, 1, 1], [], []>} : vector<8x32xbf16>, vector<32x8xbf16>, vector<8x8xf32> -> vector<8x8xf32>
    %144 = vector.broadcast %113 : vector<1x8xf32> to vector<8x8xf32>
    %145 = arith.addf %143, %144 : vector<8x8xf32>
    %cst_39 = arith.constant dense<0xFF800000> : vector<8xf32>
    %146 = vector.multi_reduction <maximumf>, %145, %cst_39 [1] : vector<8x8xf32> to vector<8xf32>
    %147 = vector.shape_cast %146 : vector<8xf32> to vector<8x1xf32>
    %148 = vector.broadcast %147 : vector<8x1xf32> to vector<8x8xf32>
    %149 = arith.subf %145, %148 : vector<8x8xf32>
    %150 = math.exp %149 : vector<8x8xf32>
    %cst_40 = arith.constant dense<0.000000e+00> : vector<8xf32>
    %151 = vector.multi_reduction <add>, %150, %cst_40 [1] : vector<8x8xf32> to vector<8xf32>
    %152 = vector.shape_cast %151 : vector<8xf32> to vector<8x1xf32>
    %153 = tpu.reciprocal %152 {approx = true} : vector<8x1xf32> -> vector<8x1xf32>
    %154 = vector.broadcast %153 : vector<8x1xf32> to vector<8x8xf32>
    %155 = arith.mulf %150, %154 : vector<8x8xf32>
    %156 = arith.truncf %155 : vector<8x8xf32> to vector<8x8xbf16>
    %157 = arith.truncf %139 : vector<8x32xf32> to vector<8x32xbf16>
    %cst_41 = arith.constant dense<0.000000e+00> : vector<8x32xf32>
    %158 = tpu.matmul %156, %157, %cst_41 {dimension_numbers = #tpu.dot_dimension_numbers<[1], [0], [0], [1], [0, 0, 1, 1], [], []>} : vector<8x8xbf16>, vector<8x32xbf16>, vector<8x32xf32> -> vector<8x32xf32>
    %c8_42 = arith.constant 8 : index
    %c32_43 = arith.constant 32 : index
    %159 = vector.load %arg19[%c8_42, %c32_43] : memref<16x128xf32, #tpu.memory_space<vmem>>, vector<8x32xf32>
    tpu.vector_store %arg19[%c8_42, %c32_43], %158 {strides = array<i32>} : memref<16x128xf32, #tpu.memory_space<vmem>>, vector<8x32xf32>,
    %160 = vector.extract_strided_slice %14 {offsets = [8, 64], sizes = [8, 32], strides = [1, 1]} : vector<16x128xf32> to vector<8x32xf32>
    %161 = vector.extract_strided_slice %15 {offsets = [8, 64], sizes = [8, 32], strides = [1, 1]} : vector<16x128xf32> to vector<8x32xf32>
    %162 = vector.extract_strided_slice %16 {offsets = [8, 64], sizes = [8, 32], strides = [1, 1]} : vector<16x128xf32> to vector<8x32xf32>
    %163 = arith.truncf %160 : vector<8x32xf32> to vector<8x32xbf16>
    %164 = tpu.transpose %161, [1, 0] : vector<8x32xf32> -> vector<32x8xf32>
    %165 = arith.truncf %164 : vector<32x8xf32> to vector<32x8xbf16>
    %cst_44 = arith.constant dense<0.000000e+00> : vector<8x8xf32>
    %166 = tpu.matmul %163, %165, %cst_44 {dimension_numbers = #tpu.dot_dimension_numbers<[1], [0], [0], [1], [0, 0, 1, 1], [], []>} : vector<8x32xbf16>, vector<32x8xbf16>, vector<8x8xf32> -> vector<8x8xf32>
    %167 = vector.broadcast %113 : vector<1x8xf32> to vector<8x8xf32>
    %168 = arith.addf %166, %167 : vector<8x8xf32>
    %cst_45 = arith.constant dense<0xFF800000> : vector<8xf32>
    %169 = vector.multi_reduction <maximumf>, %168, %cst_45 [1] : vector<8x8xf32> to vector<8xf32>
    %170 = vector.shape_cast %169 : vector<8xf32> to vector<8x1xf32>
    %171 = vector.broadcast %170 : vector<8x1xf32> to vector<8x8xf32>
    %172 = arith.subf %168, %171 : vector<8x8xf32>
    %173 = math.exp %172 : vector<8x8xf32>
    %cst_46 = arith.constant dense<0.000000e+00> : vector<8xf32>
    %174 = vector.multi_reduction <add>, %173, %cst_46 [1] : vector<8x8xf32> to vector<8xf32>
    %175 = vector.shape_cast %174 : vector<8xf32> to vector<8x1xf32>
    %176 = tpu.reciprocal %175 {approx = true} : vector<8x1xf32> -> vector<8x1xf32>
    %177 = vector.broadcast %176 : vector<8x1xf32> to vector<8x8xf32>
    %178 = arith.mulf %173, %177 : vector<8x8xf32>
    %179 = arith.truncf %178 : vector<8x8xf32> to vector<8x8xbf16>
    %180 = arith.truncf %162 : vector<8x32xf32> to vector<8x32xbf16>
    %cst_47 = arith.constant dense<0.000000e+00> : vector<8x32xf32>
    %181 = tpu.matmul %179, %180, %cst_47 {dimension_numbers = #tpu.dot_dimension_numbers<[1], [0], [0], [1], [0, 0, 1, 1], [], []>} : vector<8x8xbf16>, vector<8x32xbf16>, vector<8x32xf32> -> vector<8x32xf32>
    %c8_48 = arith.constant 8 : index
    %c64_49 = arith.constant 64 : index
    %182 = vector.load %arg19[%c8_48, %c64_49] : memref<16x128xf32, #tpu.memory_space<vmem>>, vector<8x32xf32>
    tpu.vector_store %arg19[%c8_48, %c64_49], %181 {strides = array<i32>} : memref<16x128xf32, #tpu.memory_space<vmem>>, vector<8x32xf32>,
    %183 = vector.extract_strided_slice %14 {offsets = [8, 96], sizes = [8, 32], strides = [1, 1]} : vector<16x128xf32> to vector<8x32xf32>
    %184 = vector.extract_strided_slice %15 {offsets = [8, 96], sizes = [8, 32], strides = [1, 1]} : vector<16x128xf32> to vector<8x32xf32>
    %185 = vector.extract_strided_slice %16 {offsets = [8, 96], sizes = [8, 32], strides = [1, 1]} : vector<16x128xf32> to vector<8x32xf32>
    %186 = arith.truncf %183 : vector<8x32xf32> to vector<8x32xbf16>
    %187 = tpu.transpose %184, [1, 0] : vector<8x32xf32> -> vector<32x8xf32>
    %188 = arith.truncf %187 : vector<32x8xf32> to vector<32x8xbf16>
    %cst_50 = arith.constant dense<0.000000e+00> : vector<8x8xf32>
    %189 = tpu.matmul %186, %188, %cst_50 {dimension_numbers = #tpu.dot_dimension_numbers<[1], [0], [0], [1], [0, 0, 1, 1], [], []>} : vector<8x32xbf16>, vector<32x8xbf16>, vector<8x8xf32> -> vector<8x8xf32>
    %190 = vector.broadcast %113 : vector<1x8xf32> to vector<8x8xf32>
    %191 = arith.addf %189, %190 : vector<8x8xf32>
    %cst_51 = arith.constant dense<0xFF800000> : vector<8xf32>
    %192 = vector.multi_reduction <maximumf>, %191, %cst_51 [1] : vector<8x8xf32> to vector<8xf32>
    %193 = vector.shape_cast %192 : vector<8xf32> to vector<8x1xf32>
    %194 = vector.broadcast %193 : vector<8x1xf32> to vector<8x8xf32>
    %195 = arith.subf %191, %194 : vector<8x8xf32>
    %196 = math.exp %195 : vector<8x8xf32>
    %cst_52 = arith.constant dense<0.000000e+00> : vector<8xf32>
    %197 = vector.multi_reduction <add>, %196, %cst_52 [1] : vector<8x8xf32> to vector<8xf32>
    %198 = vector.shape_cast %197 : vector<8xf32> to vector<8x1xf32>
    %199 = tpu.reciprocal %198 {approx = true} : vector<8x1xf32> -> vector<8x1xf32>
    %200 = vector.broadcast %199 : vector<8x1xf32> to vector<8x8xf32>
    %201 = arith.mulf %196, %200 : vector<8x8xf32>
    %202 = arith.truncf %201 : vector<8x8xf32> to vector<8x8xbf16>
    %203 = arith.truncf %185 : vector<8x32xf32> to vector<8x32xbf16>
    %cst_53 = arith.constant dense<0.000000e+00> : vector<8x32xf32>
    %204 = tpu.matmul %202, %203, %cst_53 {dimension_numbers = #tpu.dot_dimension_numbers<[1], [0], [0], [1], [0, 0, 1, 1], [], []>} : vector<8x8xbf16>, vector<8x32xbf16>, vector<8x32xf32> -> vector<8x32xf32>
    %c8_54 = arith.constant 8 : index
    %c96_55 = arith.constant 96 : index
    %205 = vector.load %arg19[%c8_54, %c96_55] : memref<16x128xf32, #tpu.memory_space<vmem>>, vector<8x32xf32>
    tpu.vector_store %arg19[%c8_54, %c96_55], %204 {strides = array<i32>} : memref<16x128xf32, #tpu.memory_space<vmem>>, vector<8x32xf32>,
    %c0_56 = arith.constant 0 : index
    %c0_57 = arith.constant 0 : index
    %206 = vector.load %arg19[%c0_56, %c0_57] : memref<16x128xf32, #tpu.memory_space<vmem>>, vector<16x128xf32>
    %207 = arith.truncf %206 : vector<16x128xf32> to vector<16x128xbf16>
    %c0_58 = arith.constant 0 : index
    %c0_59 = arith.constant 0 : index
    %c0_60 = arith.constant 0 : index
    %208 = vector.load %arg7[%c0_58, %c0_59, %c0_60] : memref<1x128x128xbf16, #tpu.memory_space<vmem>>, vector<1x128x128xbf16>
    %209 = vector.shape_cast %208 : vector<1x128x128xbf16> to vector<128x128xbf16>
    %cst_61 = arith.constant dense<0.000000e+00> : vector<16x128xf32>
    %210 = tpu.matmul %207, %209, %cst_61 {dimension_numbers = #tpu.dot_dimension_numbers<[1], [0], [0], [1], [0, 0, 1, 1], [], []>} : vector<16x128xbf16>, vector<128x128xbf16>, vector<16x128xf32> -> vector<16x128xf32>
    %c0_62 = arith.constant 0 : index
    %c0_63 = arith.constant 0 : index
    %c0_64 = arith.constant 0 : index
    %211 = vector.load %arg8[%c0_62, %c0_63, %c0_64] : memref<1x1x128xf32, #tpu.memory_space<vmem>>, vector<1x1x128xf32>
    %212 = vector.shape_cast %211 : vector<1x1x128xf32> to vector<1x128xf32>
    %213 = vector.broadcast %212 : vector<1x128xf32> to vector<16x128xf32>
    %214 = arith.addf %210, %213 : vector<16x128xf32>
    %215 = arith.addf %3, %214 : vector<16x128xf32>
    %c0_65 = arith.constant 0 : index
    %c0_66 = arith.constant 0 : index
    %c0_67 = arith.constant 0 : index
    %216 = vector.load %arg9[%c0_65, %c0_66, %c0_67] : memref<1x1x128xf32, #tpu.memory_space<vmem>>, vector<1x1x128xf32>
    %217 = vector.shape_cast %216 : vector<1x1x128xf32> to vector<1x128xf32>
    %c0_68 = arith.constant 0 : index
    %c0_69 = arith.constant 0 : index
    %c0_70 = arith.constant 0 : index
    %218 = vector.load %arg10[%c0_68, %c0_69, %c0_70] : memref<1x1x128xf32, #tpu.memory_space<vmem>>, vector<1x1x128xf32>
    %219 = vector.shape_cast %218 : vector<1x1x128xf32> to vector<1x128xf32>
    %cst_71 = arith.constant dense<0.000000e+00> : vector<16xf32>
    %220 = vector.multi_reduction <add>, %215, %cst_71 [1] : vector<16x128xf32> to vector<16xf32>
    %221 = vector.shape_cast %220 : vector<16xf32> to vector<16x1xf32>
    %cst_72 = arith.constant 1.280000e+02 : f32
    %222 = vector.broadcast %cst_72 : f32 to vector<16x1xf32>
    %223 = arith.divf %221, %222 : vector<16x1xf32>
    %224 = vector.broadcast %223 : vector<16x1xf32> to vector<16x128xf32>
    %225 = arith.subf %215, %224 : vector<16x128xf32>
    %226 = arith.mulf %225, %225 : vector<16x128xf32>
    %cst_73 = arith.constant dense<0.000000e+00> : vector<16xf32>
    %227 = vector.multi_reduction <add>, %226, %cst_73 [1] : vector<16x128xf32> to vector<16xf32>
    %228 = vector.shape_cast %227 : vector<16xf32> to vector<16x1xf32>
    %cst_74 = arith.constant 1.280000e+02 : f32
    %229 = vector.broadcast %cst_74 : f32 to vector<16x1xf32>
    %230 = arith.divf %228, %229 : vector<16x1xf32>
    %231 = vector.broadcast %223 : vector<16x1xf32> to vector<16x128xf32>
    %232 = arith.subf %215, %231 : vector<16x128xf32>
    %cst_75 = arith.constant 9.99999996E-13 : f32
    %233 = vector.broadcast %cst_75 : f32 to vector<16x1xf32>
    %234 = arith.addf %230, %233 : vector<16x1xf32>
    %235 = math.rsqrt %234 : vector<16x1xf32>
    %236 = vector.broadcast %235 : vector<16x1xf32> to vector<16x128xf32>
    %237 = arith.mulf %232, %236 : vector<16x128xf32>
    %238 = vector.broadcast %217 : vector<1x128xf32> to vector<16x128xf32>
    %239 = arith.mulf %237, %238 : vector<16x128xf32>
    %240 = vector.broadcast %219 : vector<1x128xf32> to vector<16x128xf32>
    %241 = arith.addf %239, %240 : vector<16x128xf32>
    %242 = arith.truncf %241 : vector<16x128xf32> to vector<16x128xbf16>
    %c0_76 = arith.constant 0 : index
    %c0_77 = arith.constant 0 : index
    %c0_78 = arith.constant 0 : index
    %243 = vector.load %arg11[%c0_76, %c0_77, %c0_78] : memref<1x128x256xbf16, #tpu.memory_space<vmem>>, vector<1x128x256xbf16>
    %244 = vector.shape_cast %243 : vector<1x128x256xbf16> to vector<128x256xbf16>
    %cst_79 = arith.constant dense<0.000000e+00> : vector<16x256xf32>
    %245 = tpu.matmul %242, %244, %cst_79 {dimension_numbers = #tpu.dot_dimension_numbers<[1], [0], [0], [1], [0, 0, 1, 1], [], []>} : vector<16x128xbf16>, vector<128x256xbf16>, vector<16x256xf32> -> vector<16x256xf32>
    %c0_80 = arith.constant 0 : index
    %c0_81 = arith.constant 0 : index
    %c0_82 = arith.constant 0 : index
    %246 = vector.load %arg12[%c0_80, %c0_81, %c0_82] : memref<1x1x256xf32, #tpu.memory_space<vmem>>, vector<1x1x256xf32>
    %247 = vector.shape_cast %246 : vector<1x1x256xf32> to vector<1x256xf32>
    %248 = vector.broadcast %247 : vector<1x256xf32> to vector<16x256xf32>
    %249 = arith.addf %245, %248 : vector<16x256xf32>
    %250 = arith.mulf %249, %249 : vector<16x256xf32>
    %251 = arith.mulf %249, %250 : vector<16x256xf32>
    %cst_83 = arith.constant 4.471500e-02 : f32
    %252 = vector.broadcast %cst_83 : f32 to vector<16x256xf32>
    %253 = arith.mulf %252, %251 : vector<16x256xf32>
    %254 = arith.addf %249, %253 : vector<16x256xf32>
    %cst_84 = arith.constant 0.797884583 : f32
    %255 = vector.broadcast %cst_84 : f32 to vector<16x256xf32>
    %256 = arith.mulf %255, %254 : vector<16x256xf32>
    %257 = math.tanh %256 : vector<16x256xf32>
    %cst_85 = arith.constant 1.000000e+00 : f32
    %258 = vector.broadcast %cst_85 : f32 to vector<16x256xf32>
    %259 = arith.addf %258, %257 : vector<16x256xf32>
    %cst_86 = arith.constant 5.000000e-01 : f32
    %260 = vector.broadcast %cst_86 : f32 to vector<16x256xf32>
    %261 = arith.mulf %260, %259 : vector<16x256xf32>
    %262 = arith.mulf %249, %261 : vector<16x256xf32>
    %263 = arith.truncf %262 : vector<16x256xf32> to vector<16x256xbf16>
    %c0_87 = arith.constant 0 : index
    %c0_88 = arith.constant 0 : index
    %c0_89 = arith.constant 0 : index
    %264 = vector.load %arg13[%c0_87, %c0_88, %c0_89] : memref<1x256x128xbf16, #tpu.memory_space<vmem>>, vector<1x256x128xbf16>
    %265 = vector.shape_cast %264 : vector<1x256x128xbf16> to vector<256x128xbf16>
    %cst_90 = arith.constant dense<0.000000e+00> : vector<16x128xf32>
    %266 = tpu.matmul %263, %265, %cst_90 {dimension_numbers = #tpu.dot_dimension_numbers<[1], [0], [0], [1], [0, 0, 1, 1], [], []>} : vector<16x256xbf16>, vector<256x128xbf16>, vector<16x128xf32> -> vector<16x128xf32>
    %c0_91 = arith.constant 0 : index
    %c0_92 = arith.constant 0 : index
    %c0_93 = arith.constant 0 : index
    %267 = vector.load %arg14[%c0_91, %c0_92, %c0_93] : memref<1x1x128xf32, #tpu.memory_space<vmem>>, vector<1x1x128xf32>
    %268 = vector.shape_cast %267 : vector<1x1x128xf32> to vector<1x128xf32>
    %269 = vector.broadcast %268 : vector<1x128xf32> to vector<16x128xf32>
    %270 = arith.addf %266, %269 : vector<16x128xf32>
    %271 = arith.addf %241, %270 : vector<16x128xf32>
    %c0_94 = arith.constant 0 : index
    %c0_95 = arith.constant 0 : index
    %c0_96 = arith.constant 0 : index
    %272 = vector.load %arg15[%c0_94, %c0_95, %c0_96] : memref<1x1x128xf32, #tpu.memory_space<vmem>>, vector<1x1x128xf32>
    %273 = vector.shape_cast %272 : vector<1x1x128xf32> to vector<1x128xf32>
    %c0_97 = arith.constant 0 : index
    %c0_98 = arith.constant 0 : index
    %c0_99 = arith.constant 0 : index
    %274 = vector.load %arg16[%c0_97, %c0_98, %c0_99] : memref<1x1x128xf32, #tpu.memory_space<vmem>>, vector<1x1x128xf32>
    %275 = vector.shape_cast %274 : vector<1x1x128xf32> to vector<1x128xf32>
    %cst_100 = arith.constant dense<0.000000e+00> : vector<16xf32>
    %276 = vector.multi_reduction <add>, %271, %cst_100 [1] : vector<16x128xf32> to vector<16xf32>
    %277 = vector.shape_cast %276 : vector<16xf32> to vector<16x1xf32>
    %cst_101 = arith.constant 1.280000e+02 : f32
    %278 = vector.broadcast %cst_101 : f32 to vector<16x1xf32>
    %279 = arith.divf %277, %278 : vector<16x1xf32>
    %280 = vector.broadcast %279 : vector<16x1xf32> to vector<16x128xf32>
    %281 = arith.subf %271, %280 : vector<16x128xf32>
    %282 = arith.mulf %281, %281 : vector<16x128xf32>
    %cst_102 = arith.constant dense<0.000000e+00> : vector<16xf32>
    %283 = vector.multi_reduction <add>, %282, %cst_102 [1] : vector<16x128xf32> to vector<16xf32>
    %284 = vector.shape_cast %283 : vector<16xf32> to vector<16x1xf32>
    %cst_103 = arith.constant 1.280000e+02 : f32
    %285 = vector.broadcast %cst_103 : f32 to vector<16x1xf32>
    %286 = arith.divf %284, %285 : vector<16x1xf32>
    %287 = vector.broadcast %279 : vector<16x1xf32> to vector<16x128xf32>
    %288 = arith.subf %271, %287 : vector<16x128xf32>
    %cst_104 = arith.constant 9.99999996E-13 : f32
    %289 = vector.broadcast %cst_104 : f32 to vector<16x1xf32>
    %290 = arith.addf %286, %289 : vector<16x1xf32>
    %291 = math.rsqrt %290 : vector<16x1xf32>
    %292 = vector.broadcast %291 : vector<16x1xf32> to vector<16x128xf32>
    %293 = arith.mulf %288, %292 : vector<16x128xf32>
    %294 = vector.broadcast %273 : vector<1x128xf32> to vector<16x128xf32>
    %295 = arith.mulf %293, %294 : vector<16x128xf32>
    %296 = vector.broadcast %275 : vector<1x128xf32> to vector<16x128xf32>
    %297 = arith.addf %295, %296 : vector<16x128xf32>
    %c0_105 = arith.constant 0 : index
    %c0_106 = arith.constant 0 : index
    %298 = vector.load %arg18[%c0_105, %c0_106] : memref<16x128xf32, #tpu.memory_space<vmem>>, vector<16x128xf32>
    tpu.vector_store %arg18[%c0_105, %c0_106], %297 {strides = array<i32>} : memref<16x128xf32, #tpu.memory_space<vmem>>, vector<16x128xf32>,
    %299 = vector.extract_strided_slice %297 {offsets = [0, 0], sizes = [1, 128], strides = [1, 1]} : vector<16x128xf32> to vector<1x128xf32>
    %c0_107 = arith.constant 0 : index
    %c0_108 = arith.constant 0 : index
    %300 = vector.load %arg17[%c0_107, %c0_108] : memref<1x128xf32, #tpu.memory_space<vmem>>, vector<1x128xf32>
    tpu.vector_store %arg17[%c0_107, %c0_108], %299 {strides = array<i32>} : memref<1x128xf32, #tpu.memory_space<vmem>>, vector<1x128xf32>,
    return
  }
  func.func @transform_0(%arg0: i32) -> (i32, i32) {
    %c0_i32 = arith.constant 0 : i32
    %c0_i32_0 = arith.constant 0 : i32
    %c0_i32_1 = arith.constant 0 : i32
    return %c0_i32, %c0_i32_0 : i32, i32
  }
  func.func @transform_1(%arg0: i32) -> (i32, i32, i32) {
    %c0_i32 = arith.constant 0 : i32
    %c0_i32_0 = arith.constant 0 : i32
    %c0_i32_1 = arith.constant 0 : i32
    %c0_i32_2 = arith.constant 0 : i32
    return %c0_i32, %c0_i32_0, %c0_i32_1 : i32, i32, i32
  }
  func.func @transform_2(%arg0: i32) -> (i32, i32) {
    %c0_i32 = arith.constant 0 : i32
    %c0_i32_0 = arith.constant 0 : i32
    %c0_i32_1 = arith.constant 0 : i32
    return %c0_i32, %c0_i32_0 : i32, i32
  }
  func.func @transform_3(%arg0: i32) -> (i32, i32) {
    %c0_i32 = arith.constant 0 : i32
    %c0_i32_0 = arith.constant 0 : i32
    %c0_i32_1 = arith.constant 0 : i32
    return %c0_i32, %c0_i32_0 : i32, i32
  }
  func.func @transform_4(%arg0: i32) -> (i32, i32, i32) {
    %c0_i32 = arith.constant 0 : i32
    %c0_i32_0 = arith.constant 0 : i32
    %c0_i32_1 = arith.constant 0 : i32
    return %arg0, %c0_i32, %c0_i32_0 : i32, i32, i32
  }
  func.func @transform_5(%arg0: i32) -> (i32, i32, i32) {
    %c0_i32 = arith.constant 0 : i32
    %c0_i32_0 = arith.constant 0 : i32
    %c0_i32_1 = arith.constant 0 : i32
    return %arg0, %c0_i32, %c0_i32_0 : i32, i32, i32
  }
  func.func @transform_6(%arg0: i32) -> (i32, i32, i32) {
    %c0_i32 = arith.constant 0 : i32
    %c0_i32_0 = arith.constant 0 : i32
    %c0_i32_1 = arith.constant 0 : i32
    return %arg0, %c0_i32, %c0_i32_0 : i32, i32, i32
  }
  func.func @transform_7(%arg0: i32) -> (i32, i32, i32) {
    %c0_i32 = arith.constant 0 : i32
    %c0_i32_0 = arith.constant 0 : i32
    %c0_i32_1 = arith.constant 0 : i32
    return %arg0, %c0_i32, %c0_i32_0 : i32, i32, i32
  }
  func.func @transform_8(%arg0: i32) -> (i32, i32, i32) {
    %c0_i32 = arith.constant 0 : i32
    %c0_i32_0 = arith.constant 0 : i32
    %c0_i32_1 = arith.constant 0 : i32
    return %arg0, %c0_i32, %c0_i32_0 : i32, i32, i32
  }
  func.func @transform_9(%arg0: i32) -> (i32, i32, i32) {
    %c0_i32 = arith.constant 0 : i32
    %c0_i32_0 = arith.constant 0 : i32
    %c0_i32_1 = arith.constant 0 : i32
    return %arg0, %c0_i32, %c0_i32_0 : i32, i32, i32
  }
  func.func @transform_10(%arg0: i32) -> (i32, i32, i32) {
    %c0_i32 = arith.constant 0 : i32
    %c0_i32_0 = arith.constant 0 : i32
    %c0_i32_1 = arith.constant 0 : i32
    return %arg0, %c0_i32, %c0_i32_0 : i32, i32, i32
  }
  func.func @transform_11(%arg0: i32) -> (i32, i32, i32) {
    %c0_i32 = arith.constant 0 : i32
    %c0_i32_0 = arith.constant 0 : i32
    %c0_i32_1 = arith.constant 0 : i32
    return %arg0, %c0_i32, %c0_i32_0 : i32, i32, i32
  }
  func.func @transform_12(%arg0: i32) -> (i32, i32, i32) {
    %c0_i32 = arith.constant 0 : i32
    %c0_i32_0 = arith.constant 0 : i32
    %c0_i32_1 = arith.constant 0 : i32
    return %arg0, %c0_i32, %c0_i32_0 : i32, i32, i32
  }
  func.func @transform_13(%arg0: i32) -> (i32, i32, i32) {
    %c0_i32 = arith.constant 0 : i32
    %c0_i32_0 = arith.constant 0 : i32
    %c0_i32_1 = arith.constant 0 : i32
    return %arg0, %c0_i32, %c0_i32_0 : i32, i32, i32
  }
  func.func @transform_14(%arg0: i32) -> (i32, i32, i32) {
    %c0_i32 = arith.constant 0 : i32
    %c0_i32_0 = arith.constant 0 : i32
    %c0_i32_1 = arith.constant 0 : i32
    return %arg0, %c0_i32, %c0_i32_0 : i32, i32, i32
  }
  func.func @transform_15(%arg0: i32) -> (i32, i32, i32) {
    %c0_i32 = arith.constant 0 : i32
    %c0_i32_0 = arith.constant 0 : i32
    %c0_i32_1 = arith.constant 0 : i32
    return %arg0, %c0_i32, %c0_i32_0 : i32, i32, i32
  }
  func.func @transform_16(%arg0: i32) -> (i32, i32) {
    %c0_i32 = arith.constant 0 : i32
    %c0_i32_0 = arith.constant 0 : i32
    %c0_i32_1 = arith.constant 0 : i32
    return %c0_i32, %c0_i32_0 : i32, i32
  }
}

</mosaic_0001>

<llo_original>
// kernel: tpu_custom_call.1
$region0: #{tpu_custom_call.1}
  #allocation0 [shape = 'u32[]', space=smem, size = 0x4, offset = 0x4, fixed_abs, tag = 'smem constant byte address 0x4 - core index']
  #allocation1 [shape = 'u32[144,128]{1,0:T(1,128)}', space=vmem, size = 0x12000, scoped, tag = 'internal scratch']
  #allocation2 [shape = 'f32[16,128]{1,0:T(8,128)}', space=vmem, size = 0x2000, scoped, tag = 'scratch operand']
  #allocation3 [shape = 'f32[16,128]{1,0:T(8,128)}', space=vmem, size = 0x2000, scoped, tag = 'scratch operand']
  %s0 = inlined_call_operand.hbm [shape: f32[16,128], index: 0, kind: input, shape index: {}]
  %s1 = inlined_call_operand.hbm [shape: f32[2,1,128], index: 1, kind: input, shape index: {}]
  %s2 = inlined_call_operand.hbm [shape: f32[1,128], index: 2, kind: input, shape index: {}]
  %s3 = inlined_call_operand.hbm [shape: f32[1,128], index: 3, kind: input, shape index: {}]
  %s4 = inlined_call_operand.hbm [shape: bf16[2,128,384], index: 4, kind: input, shape index: {}]
  %s5 = inlined_call_operand.vmem [shape: f32[2,1,384], index: 5, kind: input, shape index: {}]
  %s6 = inlined_call_operand.hbm [shape: bf16[2,128,128], index: 6, kind: input, shape index: {}]
  %s7 = inlined_call_operand.vmem [shape: f32[2,1,128], index: 7, kind: input, shape index: {}]
  %s8 = inlined_call_operand.vmem [shape: f32[2,1,128], index: 8, kind: input, shape index: {}]
  %s9 = inlined_call_operand.vmem [shape: f32[2,1,128], index: 9, kind: input, shape index: {}]
  %s10 = inlined_call_operand.hbm [shape: bf16[2,128,256], index: 10, kind: input, shape index: {}]
  %s11 = inlined_call_operand.vmem [shape: f32[2,1,256], index: 11, kind: input, shape index: {}]
  %s12 = inlined_call_operand.hbm [shape: bf16[2,256,128], index: 12, kind: input, shape index: {}]
  %s13 = inlined_call_operand.vmem [shape: f32[2,1,128], index: 13, kind: input, shape index: {}]
  %s14 = inlined_call_operand.vmem [shape: f32[2,1,128], index: 14, kind: input, shape index: {}]
  %s15 = inlined_call_operand.vmem [shape: f32[2,1,128], index: 15, kind: input, shape index: {}]
  %s16 = inlined_call_operand.hbm [shape: f32[1,128], index: 16, kind: output, shape index: {}]
  %s17 = sld [smem:[#allocation0]]
  $region133: #{tpu_custom_call.1} parent=0
    _
  %s19 = ssub.s32 1, %s17
  %s20 = scalar_select 0, %s19, %s17
  $region1: #{tpu_custom_call.1} parent=0
    #allocation4 [shape = 'u8[8192]{0}', space=vmem, size = 0x2000, scoped, tag = 'input window, operand 0, single buffered']
    #allocation5 [shape = 's32[2]{0}', space=sflag, size = 0x8, scoped, tag = 'scoped memory for tpu_custom_call.1']
    #allocation6 [shape = 's32[2]{0}', space=sflag, size = 0x8, scoped, tag = 'scoped memory for tpu_custom_call.1']
    #allocation7 [shape = 'u8[1024]{0}', space=vmem, size = 0x400, scoped, tag = 'input window, operand 1, single buffered']
    #allocation8 [shape = 's32[1]{0}', space=sflag, size = 0x4, scoped, tag = 'scoped memory for tpu_custom_call.1']
    #allocation9 [shape = 'u8[512]{0}', space=vmem, size = 0x400, scoped, tag = 'input window, operand 2, single buffered']
    #allocation10 [shape = 'u8[512]{0}', space=vmem, size = 0x400, scoped, tag = 'input window, operand 3, single buffered']
    #allocation11 [shape = 's32[1]{0}', space=sflag, size = 0x4, scoped, tag = 'scoped memory for tpu_custom_call.1']
    #allocation12 [shape = 'u8[196608]{0}', space=vmem, size = 0x30000, scoped, tag = 'input window, operand 4']
    #allocation13 [shape = 'u8[65536]{0}', space=vmem, size = 0x10000, scoped, tag = 'input window, operand 6']
    #allocation14 [shape = 'u8[131072]{0}', space=vmem, size = 0x20000, scoped, tag = 'input window, operand 10']
    #allocation15 [shape = 'u8[131072]{0}', space=vmem, size = 0x20000, scoped, tag = 'input window, operand 12']
    #allocation16 [shape = 'u8[512]{0}', space=vmem, size = 0x400, scoped, tag = 'output window, operand 0, single buffered']
    %21 = vsyncpa [#allocation5], 0
    %22 = vsyncpa [#allocation8], 0
    %23 = vsyncpa [#allocation11], 0
    %24 = vsyncpa [#allocation6], 0
    loop: start=0, step=1, limit=4
    $region2: #{tpu_custom_call.1} parent=1 // loop_pre_header
      _
    $region3: #{tpu_custom_call.1} parent=1 // loop_header
      %s26 = sphi 0, %s30
      %p27 = scmp.ge.s32.totalorder %s26, 4
      %s34 = sphi 0, %s34
      %s36 = sphi 0, %s34
      %s37 = sphi 0, %s36
      %s51 = sphi 0, %s37
      %s55 = sphi 0, %s55
      %s57 = sphi 0, %s55
      %s58 = sphi 0, %s57
      %s72 = sphi 0, %s58
      %s76 = sphi 0, %s76
      %s78 = sphi 0, %s76
      %s79 = sphi 0, %s78
      %s93 = sphi 0, %s79
      %s97 = sphi 0, %s97
      %s99 = sphi 0, %s97
      %s100 = sphi 0, %s99
      %s114 = sphi 0, %s100
      %s120 = sphi 0, %s122
      %s123 = sphi 0, %s120
      %s124 = sphi 0, %s123
      %s140 = sphi 0, %s124
      %s146 = sphi 0, %s148
      %s149 = sphi 0, %s146
      %s150 = sphi 0, %s149
      %s166 = sphi 0, %s150
      %s172 = sphi 0, %s174
      %s175 = sphi 0, %s172
      %s176 = sphi 0, %s175
      %s192 = sphi 0, %s176
      %s198 = sphi 0, %s200
      %s201 = sphi 0, %s198
      %s202 = sphi 0, %s201
      %s218 = sphi 0, %s202
      %s224 = sphi 0, %s226
      %s227 = sphi 0, %s224
      %s228 = sphi 0, %s227
      %s244 = sphi 0, %s228
      %s250 = sphi 0, %s252
      %s253 = sphi 0, %s250
      %s254 = sphi 0, %s253
      %s270 = sphi 0, %s254
      %s276 = sphi 0, %s278
      %s279 = sphi 0, %s276
      %s280 = sphi 0, %s279
      %s296 = sphi 0, %s280
      %s302 = sphi 0, %s304
      %s305 = sphi 0, %s302
      %s306 = sphi 0, %s305
      %s322 = sphi 0, %s306
      %s328 = sphi 0, %s330
      %s331 = sphi 0, %s328
      %s332 = sphi 0, %s331
      %s348 = sphi 0, %s332
      %s354 = sphi 0, %s356
      %s357 = sphi 0, %s354
      %s358 = sphi 0, %s357
      %s374 = sphi 0, %s358
      %s380 = sphi 0, %s382
      %s383 = sphi 0, %s380
      %s384 = sphi 0, %s383
      %s400 = sphi 0, %s384
      %s406 = sphi 0, %s408
      %s409 = sphi 0, %s406
      %s410 = sphi 0, %s409
      %s426 = sphi 0, %s410
      %s430 = sphi 0, %s430
      %s432 = sphi 0, %s430
      %s433 = sphi 0, %s432
      %s447 = sphi 0, %s433
    $region4: #{tpu_custom_call.1} parent=1 // loop_header_branch
      %29 = sbr.rel (%p27) target = $region8
    $region5: #{tpu_custom_call.1} parent=1 // loop_body
      %s31 = ssub.s32 %s26, 1
      %s32 = ssub.s32 %s26, 2
      %s33 = sadd.s32 %s26, 1
      %s35 = sadd.s32 %s34, 1
      %p38 = scmp.eq.s32.totalorder %s26, 1
      %p39 = scmp.ne.s32.totalorder %s34, %s36
      %p40 = scmp.eq.s32.totalorder %s26, 0
      %p41 = por %p39, %p40
      %p42 = scmp.ne.s32.totalorder %s34, %s36
      %p43 = scmp.eq.s32.totalorder %s31, 1
      %p44 = por %p42, %p43
      %p45 = scmp.ne.s32.totalorder %s36, %s37
      %p46 = scmp.eq.s32.totalorder %s31, 0
      %p47 = por %p45, %p46
      %p48 = scmp.ne.s32.totalorder %s36, %s37
      %p49 = scmp.eq.s32.totalorder %s32, 1
      %p50 = por %p48, %p49
      %p52 = scmp.ne.s32.totalorder %s37, %s51
      %p53 = scmp.eq.s32.totalorder %s32, 0
      %p54 = por %p52, %p53
      %s56 = sadd.s32 %s55, 1
      %p59 = scmp.eq.s32.totalorder %s26, 1
      %p60 = scmp.ne.s32.totalorder %s55, %s57
      %p61 = scmp.eq.s32.totalorder %s26, 0
      %p62 = por %p60, %p61
      %p63 = scmp.ne.s32.totalorder %s55, %s57
      %p64 = scmp.eq.s32.totalorder %s31, 1
      %p65 = por %p63, %p64
      %p66 = scmp.ne.s32.totalorder %s57, %s58
      %p67 = scmp.eq.s32.totalorder %s31, 0
      %p68 = por %p66, %p67
      %p69 = scmp.ne.s32.totalorder %s57, %s58
      %p70 = scmp.eq.s32.totalorder %s32, 1
      %p71 = por %p69, %p70
      %p73 = scmp.ne.s32.totalorder %s58, %s72
      %p74 = scmp.eq.s32.totalorder %s32, 0
      %p75 = por %p73, %p74
      %s77 = sadd.s32 %s76, 1
      %p80 = scmp.eq.s32.totalorder %s26, 1
      %p81 = scmp.ne.s32.totalorder %s76, %s78
      %p82 = scmp.eq.s32.totalorder %s26, 0
      %p83 = por %p81, %p82
      %p84 = scmp.ne.s32.totalorder %s76, %s78
      %p85 = scmp.eq.s32.totalorder %s31, 1
      %p86 = por %p84, %p85
      %p87 = scmp.ne.s32.totalorder %s78, %s79
      %p88 = scmp.eq.s32.totalorder %s31, 0
      %p89 = por %p87, %p88
      %p90 = scmp.ne.s32.totalorder %s78, %s79
      %p91 = scmp.eq.s32.totalorder %s32, 1
      %p92 = por %p90, %p91
      %p94 = scmp.ne.s32.totalorder %s79, %s93
      %p95 = scmp.eq.s32.totalorder %s32, 0
      %p96 = por %p94, %p95
      %s98 = sadd.s32 %s97, 1
      %p101 = scmp.eq.s32.totalorder %s26, 1
      %p102 = scmp.ne.s32.totalorder %s97, %s99
      %p103 = scmp.eq.s32.totalorder %s26, 0
      %p104 = por %p102, %p103
      %p105 = scmp.ne.s32.totalorder %s97, %s99
      %p106 = scmp.eq.s32.totalorder %s31, 1
      %p107 = por %p105, %p106
      %p108 = scmp.ne.s32.totalorder %s99, %s100
      %p109 = scmp.eq.s32.totalorder %s31, 0
      %p110 = por %p108, %p109
      %p111 = scmp.ne.s32.totalorder %s99, %s100
      %p112 = scmp.eq.s32.totalorder %s32, 1
      %p113 = por %p111, %p112
      %p115 = scmp.ne.s32.totalorder %s100, %s114
      %p116 = scmp.eq.s32.totalorder %s32, 0
      %p117 = por %p115, %p116
      %s118 = ssub.s32 %s26, %s33
      %p119 = scmp.eq.s32.totalorder %s118, 0
      %s121 = sadd.s32 %s120, 1
      %s122 = scalar_select %p119, %s120, %s121
      %p125 = pneg %p119
      %p126 = scmp.eq.s32.totalorder %s26, 1
      %p127 = por %p125, %p126
      %p128 = scmp.ne.s32.totalorder %s120, %s123
      %p129 = scmp.eq.s32.totalorder %s26, 0
      %p130 = por %p128, %p129
      %p131 = scmp.ne.s32.totalorder %s120, %s123
      %p132 = scmp.eq.s32.totalorder %s31, 1
      %p133 = por %p131, %p132
      %p134 = scmp.ne.s32.totalorder %s123, %s124
      %p135 = scmp.eq.s32.totalorder %s31, 0
      %p136 = por %p134, %p135
      %p137 = scmp.ne.s32.totalorder %s123, %s124
      %p138 = scmp.eq.s32.totalorder %s32, 1
      %p139 = por %p137, %p138
      %p141 = scmp.ne.s32.totalorder %s124, %s140
      %p142 = scmp.eq.s32.totalorder %s32, 0
      %p143 = por %p141, %p142
      %s144 = ssub.s32 %s26, %s33
      %p145 = scmp.eq.s32.totalorder %s144, 0
      %s147 = sadd.s32 %s146, 1
      %s148 = scalar_select %p145, %s146, %s147
      %p151 = pneg %p145
      %p152 = scmp.eq.s32.totalorder %s26, 1
      %p153 = por %p151, %p152
      %p154 = scmp.ne.s32.totalorder %s146, %s149
      %p155 = scmp.eq.s32.totalorder %s26, 0
      %p156 = por %p154, %p155
      %p157 = scmp.ne.s32.totalorder %s146, %s149
      %p158 = scmp.eq.s32.totalorder %s31, 1
      %p159 = por %p157, %p158
      %p160 = scmp.ne.s32.totalorder %s149, %s150
      %p161 = scmp.eq.s32.totalorder %s31, 0
      %p162 = por %p160, %p161
      %p163 = scmp.ne.s32.totalorder %s149, %s150
      %p164 = scmp.eq.s32.totalorder %s32, 1
      %p165 = por %p163, %p164
      %p167 = scmp.ne.s32.totalorder %s150, %s166
      %p168 = scmp.eq.s32.totalorder %s32, 0
      %p169 = por %p167, %p168
      %s170 = ssub.s32 %s26, %s33
      %p171 = scmp.eq.s32.totalorder %s170, 0
      %s173 = sadd.s32 %s172, 1
      %s174 = scalar_select %p171, %s172, %s173
      %p177 = pneg %p171
      %p178 = scmp.eq.s32.totalorder %s26, 1
      %p179 = por %p177, %p178
      %p180 = scmp.ne.s32.totalorder %s172, %s175
      %p181 = scmp.eq.s32.totalorder %s26, 0
      %p182 = por %p180, %p181
      %p183 = scmp.ne.s32.totalorder %s172, %s175
      %p184 = scmp.eq.s32.totalorder %s31, 1
      %p185 = por %p183, %p184
      %p186 = scmp.ne.s32.totalorder %s175, %s176
      %p187 = scmp.eq.s32.totalorder %s31, 0
      %p188 = por %p186, %p187
      %p189 = scmp.ne.s32.totalorder %s175, %s176
      %p190 = scmp.eq.s32.totalorder %s32, 1
      %p191 = por %p189, %p190
      %p193 = scmp.ne.s32.totalorder %s176, %s192
      %p194 = scmp.eq.s32.totalorder %s32, 0
      %p195 = por %p193, %p194
      %s196 = ssub.s32 %s26, %s33
      %p197 = scmp.eq.s32.totalorder %s196, 0
      %s199 = sadd.s32 %s198, 1
      %s200 = scalar_select %p197, %s198, %s199
      %p203 = pneg %p197
      %p204 = scmp.eq.s32.totalorder %s26, 1
      %p205 = por %p203, %p204
      %p206 = scmp.ne.s32.totalorder %s198, %s201
      %p207 = scmp.eq.s32.totalorder %s26, 0
      %p208 = por %p206, %p207
      %p209 = scmp.ne.s32.totalorder %s198, %s201
      %p210 = scmp.eq.s32.totalorder %s31, 1
      %p211 = por %p209, %p210
      %p212 = scmp.ne.s32.totalorder %s201, %s202
      %p213 = scmp.eq.s32.totalorder %s31, 0
      %p214 = por %p212, %p213
      %p215 = scmp.ne.s32.totalorder %s201, %s202
      %p216 = scmp.eq.s32.totalorder %s32, 1
      %p217 = por %p215, %p216
      %p219 = scmp.ne.s32.totalorder %s202, %s218
      %p220 = scmp.eq.s32.totalorder %s32, 0
      %p221 = por %p219, %p220
      %s222 = ssub.s32 %s26, %s33
      %p223 = scmp.eq.s32.totalorder %s222, 0
      %s225 = sadd.s32 %s224, 1
      %s226 = scalar_select %p223, %s224, %s225
      %p229 = pneg %p223
      %p230 = scmp.eq.s32.totalorder %s26, 1
      %p231 = por %p229, %p230
      %p232 = scmp.ne.s32.totalorder %s224, %s227
      %p233 = scmp.eq.s32.totalorder %s26, 0
      %p234 = por %p232, %p233
      %p235 = scmp.ne.s32.totalorder %s224, %s227
      %p236 = scmp.eq.s32.totalorder %s31, 1
      %p237 = por %p235, %p236
      %p238 = scmp.ne.s32.totalorder %s227, %s228
      %p239 = scmp.eq.s32.totalorder %s31, 0
      %p240 = por %p238, %p239
      %p241 = scmp.ne.s32.totalorder %s227, %s228
      %p242 = scmp.eq.s32.totalorder %s32, 1
      %p243 = por %p241, %p242
      %p245 = scmp.ne.s32.totalorder %s228, %s244
      %p246 = scmp.eq.s32.totalorder %s32, 0
      %p247 = por %p245, %p246
      %s248 = ssub.s32 %s26, %s33
      %p249 = scmp.eq.s32.totalorder %s248, 0
      %s251 = sadd.s32 %s250, 1
      %s252 = scalar_select %p249, %s250, %s251
      %p255 = pneg %p249
      %p256 = scmp.eq.s32.totalorder %s26, 1
      %p257 = por %p255, %p256
      %p258 = scmp.ne.s32.totalorder %s250, %s253
      %p259 = scmp.eq.s32.totalorder %s26, 0
      %p260 = por %p258, %p259
      %p261 = scmp.ne.s32.totalorder %s250, %s253
      %p262 = scmp.eq.s32.totalorder %s31, 1
      %p263 = por %p261, %p262
      %p264 = scmp.ne.s32.totalorder %s253, %s254
      %p265 = scmp.eq.s32.totalorder %s31, 0
      %p266 = por %p264, %p265
      %p267 = scmp.ne.s32.totalorder %s253, %s254
      %p268 = scmp.eq.s32.totalorder %s32, 1
      %p269 = por %p267, %p268
      %p271 = scmp.ne.s32.totalorder %s254, %s270
      %p272 = scmp.eq.s32.totalorder %s32, 0
      %p273 = por %p271, %p272
      %s274 = ssub.s32 %s26, %s33
      %p275 = scmp.eq.s32.totalorder %s274, 0
      %s277 = sadd.s32 %s276, 1
      %s278 = scalar_select %p275, %s276, %s277
      %p281 = pneg %p275
      %p282 = scmp.eq.s32.totalorder %s26, 1
      %p283 = por %p281, %p282
      %p284 = scmp.ne.s32.totalorder %s276, %s279
      %p285 = scmp.eq.s32.totalorder %s26, 0
      %p286 = por %p284, %p285
      %p287 = scmp.ne.s32.totalorder %s276, %s279
      %p288 = scmp.eq.s32.totalorder %s31, 1
      %p289 = por %p287, %p288
      %p290 = scmp.ne.s32.totalorder %s279, %s280
      %p291 = scmp.eq.s32.totalorder %s31, 0
      %p292 = por %p290, %p291
      %p293 = scmp.ne.s32.totalorder %s279, %s280
      %p294 = scmp.eq.s32.totalorder %s32, 1
      %p295 = por %p293, %p294
      %p297 = scmp.ne.s32.totalorder %s280, %s296
      %p298 = scmp.eq.s32.totalorder %s32, 0
      %p299 = por %p297, %p298
      %s300 = ssub.s32 %s26, %s33
      %p301 = scmp.eq.s32.totalorder %s300, 0
      %s303 = sadd.s32 %s302, 1
      %s304 = scalar_select %p301, %s302, %s303
      %p307 = pneg %p301
      %p308 = scmp.eq.s32.totalorder %s26, 1
      %p309 = por %p307, %p308
      %p310 = scmp.ne.s32.totalorder %s302, %s305
      %p311 = scmp.eq.s32.totalorder %s26, 0
      %p312 = por %p310, %p311
      %p313 = scmp.ne.s32.totalorder %s302, %s305
      %p314 = scmp.eq.s32.totalorder %s31, 1
      %p315 = por %p313, %p314
      %p316 = scmp.ne.s32.totalorder %s305, %s306
      %p317 = scmp.eq.s32.totalorder %s31, 0
      %p318 = por %p316, %p317
      %p319 = scmp.ne.s32.totalorder %s305, %s306
      %p320 = scmp.eq.s32.totalorder %s32, 1
      %p321 = por %p319, %p320
      %p323 = scmp.ne.s32.totalorder %s306, %s322
      %p324 = scmp.eq.s32.totalorder %s32, 0
      %p325 = por %p323, %p324
      %s326 = ssub.s32 %s26, %s33
      %p327 = scmp.eq.s32.totalorder %s326, 0
      %s329 = sadd.s32 %s328, 1
      %s330 = scalar_select %p327, %s328, %s329
      %p333 = pneg %p327
      %p334 = scmp.eq.s32.totalorder %s26, 1
      %p335 = por %p333, %p334
      %p336 = scmp.ne.s32.totalorder %s328, %s331
      %p337 = scmp.eq.s32.totalorder %s26, 0
      %p338 = por %p336, %p337
      %p339 = scmp.ne.s32.totalorder %s328, %s331
      %p340 = scmp.eq.s32.totalorder %s31, 1
      %p341 = por %p339, %p340
      %p342 = scmp.ne.s32.totalorder %s331, %s332
      %p343 = scmp.eq.s32.totalorder %s31, 0
      %p344 = por %p342, %p343
      %p345 = scmp.ne.s32.totalorder %s331, %s332
      %p346 = scmp.eq.s32.totalorder %s32, 1
      %p347 = por %p345, %p346
      %p349 = scmp.ne.s32.totalorder %s332, %s348
      %p350 = scmp.eq.s32.totalorder %s32, 0
      %p351 = por %p349, %p350
      %s352 = ssub.s32 %s26, %s33
      %p353 = scmp.eq.s32.totalorder %s352, 0
      %s355 = sadd.s32 %s354, 1
      %s356 = scalar_select %p353, %s354, %s355
      %p359 = pneg %p353
      %p360 = scmp.eq.s32.totalorder %s26, 1
      %p361 = por %p359, %p360
      %p362 = scmp.ne.s32.totalorder %s354, %s357
      %p363 = scmp.eq.s32.totalorder %s26, 0
      %p364 = por %p362, %p363
      %p365 = scmp.ne.s32.totalorder %s354, %s357
      %p366 = scmp.eq.s32.totalorder %s31, 1
      %p367 = por %p365, %p366
      %p368 = scmp.ne.s32.totalorder %s357, %s358
      %p369 = scmp.eq.s32.totalorder %s31, 0
      %p370 = por %p368, %p369
      %p371 = scmp.ne.s32.totalorder %s357, %s358
      %p372 = scmp.eq.s32.totalorder %s32, 1
      %p373 = por %p371, %p372
      %p375 = scmp.ne.s32.totalorder %s358, %s374
      %p376 = scmp.eq.s32.totalorder %s32, 0
      %p377 = por %p375, %p376
      %s378 = ssub.s32 %s26, %s33
      %p379 = scmp.eq.s32.totalorder %s378, 0
      %s381 = sadd.s32 %s380, 1
      %s382 = scalar_select %p379, %s380, %s381
      %p385 = pneg %p379
      %p386 = scmp.eq.s32.totalorder %s26, 1
      %p387 = por %p385, %p386
      %p388 = scmp.ne.s32.totalorder %s380, %s383
      %p389 = scmp.eq.s32.totalorder %s26, 0
      %p390 = por %p388, %p389
      %p391 = scmp.ne.s32.totalorder %s380, %s383
      %p392 = scmp.eq.s32.totalorder %s31, 1
      %p393 = por %p391, %p392
      %p394 = scmp.ne.s32.totalorder %s383, %s384
      %p395 = scmp.eq.s32.totalorder %s31, 0
      %p396 = por %p394, %p395
      %p397 = scmp.ne.s32.totalorder %s383, %s384
      %p398 = scmp.eq.s32.totalorder %s32, 1
      %p399 = por %p397, %p398
      %p401 = scmp.ne.s32.totalorder %s384, %s400
      %p402 = scmp.eq.s32.totalorder %s32, 0
      %p403 = por %p401, %p402
      %s404 = ssub.s32 %s26, %s33
      %p405 = scmp.eq.s32.totalorder %s404, 0
      %s407 = sadd.s32 %s406, 1
      %s408 = scalar_select %p405, %s406, %s407
      %p411 = pneg %p405
      %p412 = scmp.eq.s32.totalorder %s26, 1
      %p413 = por %p411, %p412
      %p414 = scmp.ne.s32.totalorder %s406, %s409
      %p415 = scmp.eq.s32.totalorder %s26, 0
      %p416 = por %p414, %p415
      %p417 = scmp.ne.s32.totalorder %s406, %s409
      %p418 = scmp.eq.s32.totalorder %s31, 1
      %p419 = por %p417, %p418
      %p420 = scmp.ne.s32.totalorder %s409, %s410
      %p421 = scmp.eq.s32.totalorder %s31, 0
      %p422 = por %p420, %p421
      %p423 = scmp.ne.s32.totalorder %s409, %s410
      %p424 = scmp.eq.s32.totalorder %s32, 1
      %p425 = por %p423, %p424
      %p427 = scmp.ne.s32.totalorder %s410, %s426
      %p428 = scmp.eq.s32.totalorder %s32, 0
      %p429 = por %p427, %p428
      %s431 = sadd.s32 %s430, 1
      %p434 = scmp.eq.s32.totalorder %s26, 1
      %p435 = scmp.ne.s32.totalorder %s430, %s432
      %p436 = scmp.eq.s32.totalorder %s26, 0
      %p437 = por %p435, %p436
      %p438 = scmp.ne.s32.totalorder %s430, %s432
      %p439 = scmp.eq.s32.totalorder %s31, 1
      %p440 = por %p438, %p439
      %p441 = scmp.ne.s32.totalorder %s432, %s433
      %p442 = scmp.eq.s32.totalorder %s31, 0
      %p443 = por %p441, %p442
      %p444 = scmp.ne.s32.totalorder %s432, %s433
      %p445 = scmp.eq.s32.totalorder %s32, 1
      %p446 = por %p444, %p445
      %p448 = scmp.ne.s32.totalorder %s433, %s447
      %p449 = scmp.eq.s32.totalorder %s32, 0
      %p450 = por %p448, %p449
      %p451 = scmp.le.s32.totalorder 1, %s26
      %p452 = scmp.lt.s32.totalorder %s26, 3
      %p453 = pnand %p451, %p452
      %p454 = pneg %p453
      // Predicated region
      $region9: #{tpu_custom_call.1} parent=5 // pred_check
        _
      $region10: #{tpu_custom_call.1} parent=5 // pred_check_branch
        %456 = sbr.rel (%p453) target = $region12
      $region11: #{tpu_custom_call.1} parent=5 // pred_region
        %s457 = ssub.s32 %s26, 1
        // Predicated region
        $region13: #{tpu_custom_call.1} parent=11 // pred_check
          %p458 = pneg %p47
        $region14: #{tpu_custom_call.1} parent=11 // pred_check_branch
          %460 = sbr.rel (%p458) target = $region16
        $region15: #{tpu_custom_call.1} parent=11 // pred_region
          %s462 = ssub.s32 256, 256
          %463 = vsyncadd [#allocation5], %s462
          %s464 = sshll.u32 [#allocation4], 4
          %s465 = int_to_ptr.vmem [resolvable:$true] %s464
          %470 = dma.hbm_to_vmem [thread:$0]  %s0, 256, %s465, [#allocation5], 128, 128, 8
        $region16: #{tpu_custom_call.1} parent=11 // pred_fallthru
          _
        // Predicated region
        $region17: #{tpu_custom_call.1} parent=11 // pred_check
          %p471 = pneg %p68
        $region18: #{tpu_custom_call.1} parent=11 // pred_check_branch
          %473 = sbr.rel (%p471) target = $region20
        $region19: #{tpu_custom_call.1} parent=11 // pred_region
          %s475 = ssub.s32 32, 32
          %476 = vsyncadd [#allocation8], %s475
          %s477 = sshll.u32 [#allocation7], 4
          %s478 = int_to_ptr.vmem [resolvable:$true] %s477
          %483 = dma.hbm_to_vmem [thread:$0]  %s1, 32, %s478, [#allocation8], 16, 16, 1
        $region20: #{tpu_custom_call.1} parent=11 // pred_fallthru
          _
        // Predicated region
        $region21: #{tpu_custom_call.1} parent=11 // pred_check
          %p484 = pneg %p89
        $region22: #{tpu_custom_call.1} parent=11 // pred_check_branch
          %486 = sbr.rel (%p484) target = $region24
        $region23: #{tpu_custom_call.1} parent=11 // pred_region
          %s488 = ssub.s32 16, 16
          %489 = vsyncadd [#allocation8], %s488
          %s491 = sshll.u32 [#allocation9], 4
          %s492 = int_to_ptr.vmem [resolvable:$true] %s491
          %494 = dma.hbm_to_vmem [thread:$0]  %s2, 16, %s492, [#allocation8]
        $region24: #{tpu_custom_call.1} parent=11 // pred_fallthru
          _
        // Predicated region
        $region25: #{tpu_custom_call.1} parent=11 // pred_check
          %p495 = pneg %p110
        $region26: #{tpu_custom_call.1} parent=11 // pred_check_branch
          %497 = sbr.rel (%p495) target = $region28
        $region27: #{tpu_custom_call.1} parent=11 // pred_region
          %s499 = ssub.s32 16, 16
          %500 = vsyncadd [#allocation11], %s499
          %s502 = sshll.u32 [#allocation10], 4
          %s503 = int_to_ptr.vmem [resolvable:$true] %s502
          %505 = dma.hbm_to_vmem [thread:$0]  %s3, 16, %s503, [#allocation11]
        $region28: #{tpu_custom_call.1} parent=11 // pred_fallthru
          _
      $region12: #{tpu_custom_call.1} parent=5 // pred_fallthru
        _
      %p506 = scmp.lt.s32.totalorder %s26, 2
      // Predicated region
      $region29: #{tpu_custom_call.1} parent=5 // pred_check
        %p507 = pneg %p506
      $region30: #{tpu_custom_call.1} parent=5 // pred_check_branch
        %509 = sbr.rel (%p507) target = $region32
      $region31: #{tpu_custom_call.1} parent=5 // pred_region
        // Predicated region
        $region33: #{tpu_custom_call.1} parent=31 // pred_check
          %p510 = pneg %p130
        $region34: #{tpu_custom_call.1} parent=31 // pred_check_branch
          %512 = sbr.rel (%p510) target = $region36
        $region35: #{tpu_custom_call.1} parent=31 // pred_region
          %s513 = sand.u32 %s26, 1
          %s514 = scalar_lea.sflag [#allocation5], %s513
          %s515 = sand.u32 %s120, 1
          %s516 = smul.addr %s515, 192
          %s517 = scalar_lea.vmem [#allocation12], %s516
          %s519 = ssub.s32 3072, 3072
          %520 = vsyncadd %s514, %s519
          %s521 = smul.addr %s26, 48
          %s522 = smul.addr %s521, 64
          %s523 = scalar_lea.hbm %s4, %s522
          %s524 = sshll.u32 %s517, 4
          %s525 = int_to_ptr.vmem [resolvable:$true] %s524
          %530 = dma.hbm_to_vmem [thread:$0]  %s523, 3072, %s525, %s514, 192, 192, 12
        $region36: #{tpu_custom_call.1} parent=31 // pred_fallthru
          _
        // Predicated region
        $region37: #{tpu_custom_call.1} parent=31 // pred_check
          %p531 = pneg %p156
        $region38: #{tpu_custom_call.1} parent=31 // pred_check_branch
          %533 = sbr.rel (%p531) target = $region40
        $region39: #{tpu_custom_call.1} parent=31 // pred_region
          %p534 = scmp.lt.s32.totalorder %s26, 1
          %s535 = scalar_select %p534, %s26, 1
          %s536 = smul.addr %s535, 3
          %s537 = scalar_lea.vmem %s5, %s536
        $region40: #{tpu_custom_call.1} parent=31 // pred_fallthru
          _
        // Predicated region
        $region41: #{tpu_custom_call.1} parent=31 // pred_check
          %p538 = pneg %p182
        $region42: #{tpu_custom_call.1} parent=31 // pred_check_branch
          %540 = sbr.rel (%p538) target = $region44
        $region43: #{tpu_custom_call.1} parent=31 // pred_region
          %s541 = sand.u32 %s26, 1
          %s542 = scalar_lea.sflag [#allocation5], %s541
          %s543 = sand.u32 %s172, 1
          %s544 = smul.addr %s543, 64
          %s545 = scalar_lea.vmem [#allocation13], %s544
          %s547 = ssub.s32 1024, 1024
          %548 = vsyncadd %s542, %s547
          %s549 = smul.addr %s26, 16
          %s550 = smul.addr %s549, 64
          %s551 = scalar_lea.hbm %s6, %s550
          %s552 = sshll.u32 %s545, 4
          %s553 = int_to_ptr.vmem [resolvable:$true] %s552
          %558 = dma.hbm_to_vmem [thread:$0]  %s551, 1024, %s553, %s542, 64, 64, 4
        $region44: #{tpu_custom_call.1} parent=31 // pred_fallthru
          _
        // Predicated region
        $region45: #{tpu_custom_call.1} parent=31 // pred_check
          %p559 = pneg %p208
        $region46: #{tpu_custom_call.1} parent=31 // pred_check_branch
          %561 = sbr.rel (%p559) target = $region48
        $region47: #{tpu_custom_call.1} parent=31 // pred_region
          %p562 = scmp.lt.s32.totalorder %s26, 1
          %s563 = scalar_select %p562, %s26, 1
          %s564 = scalar_lea.vmem %s7, %s563
        $region48: #{tpu_custom_call.1} parent=31 // pred_fallthru
          _
        // Predicated region
        $region49: #{tpu_custom_call.1} parent=31 // pred_check
          %p565 = pneg %p234
        $region50: #{tpu_custom_call.1} parent=31 // pred_check_branch
          %567 = sbr.rel (%p565) target = $region52
        $region51: #{tpu_custom_call.1} parent=31 // pred_region
          %p568 = scmp.lt.s32.totalorder %s26, 1
          %s569 = scalar_select %p568, %s26, 1
          %s570 = scalar_lea.vmem %s8, %s569
        $region52: #{tpu_custom_call.1} parent=31 // pred_fallthru
          _
        // Predicated region
        $region53: #{tpu_custom_call.1} parent=31 // pred_check
          %p571 = pneg %p260
        $region54: #{tpu_custom_call.1} parent=31 // pred_check_branch
          %573 = sbr.rel (%p571) target = $region56
        $region55: #{tpu_custom_call.1} parent=31 // pred_region
          %p574 = scmp.lt.s32.totalorder %s26, 1
          %s575 = scalar_select %p574, %s26, 1
          %s576 = scalar_lea.vmem %s9, %s575
        $region56: #{tpu_custom_call.1} parent=31 // pred_fallthru
          _
        // Predicated region
        $region57: #{tpu_custom_call.1} parent=31 // pred_check
          %p577 = pneg %p286
        $region58: #{tpu_custom_call.1} parent=31 // pred_check_branch
          %579 = sbr.rel (%p577) target = $region60
        $region59: #{tpu_custom_call.1} parent=31 // pred_region
          %s580 = sand.u32 %s26, 1
          %s581 = scalar_lea.sflag [#allocation5], %s580
          %s582 = sand.u32 %s276, 1
          %s583 = smul.addr %s582, 128
          %s584 = scalar_lea.vmem [#allocation14], %s583
          %s586 = ssub.s32 2048, 2048
          %587 = vsyncadd %s581, %s586
          %s588 = smul.addr %s26, 32
          %s589 = smul.addr %s588, 64
          %s590 = scalar_lea.hbm %s10, %s589
          %s591 = sshll.u32 %s584, 4
          %s592 = int_to_ptr.vmem [resolvable:$true] %s591
          %597 = dma.hbm_to_vmem [thread:$0]  %s590, 2048, %s592, %s581, 128, 128, 8
        $region60: #{tpu_custom_call.1} parent=31 // pred_fallthru
          _
        // Predicated region
        $region61: #{tpu_custom_call.1} parent=31 // pred_check
          %p598 = pneg %p312
        $region62: #{tpu_custom_call.1} parent=31 // pred_check_branch
          %600 = sbr.rel (%p598) target = $region64
        $region63: #{tpu_custom_call.1} parent=31 // pred_region
          %p601 = scmp.lt.s32.totalorder %s26, 1
          %s602 = scalar_select %p601, %s26, 1
          %s603 = smul.addr %s602, 2
          %s604 = scalar_lea.vmem %s11, %s603
        $region64: #{tpu_custom_call.1} parent=31 // pred_fallthru
          _
        // Predicated region
        $region65: #{tpu_custom_call.1} parent=31 // pred_check
          %p605 = pneg %p338
        $region66: #{tpu_custom_call.1} parent=31 // pred_check_branch
          %607 = sbr.rel (%p605) target = $region68
        $region67: #{tpu_custom_call.1} parent=31 // pred_region
          %s608 = sand.u32 %s26, 1
          %s609 = scalar_lea.sflag [#allocation5], %s608
          %s610 = sand.u32 %s328, 1
          %s611 = smul.addr %s610, 128
          %s612 = scalar_lea.vmem [#allocation15], %s611
          %s614 = ssub.s32 2048, 2048
          %615 = vsyncadd %s609, %s614
          %s616 = smul.addr %s26, 32
          %s617 = smul.addr %s616, 64
          %s618 = scalar_lea.hbm %s12, %s617
          %s619 = sshll.u32 %s612, 4
          %s620 = int_to_ptr.vmem [resolvable:$true] %s619
          %625 = dma.hbm_to_vmem [thread:$0]  %s618, 2048, %s620, %s609, 64, 64, 4
        $region68: #{tpu_custom_call.1} parent=31 // pred_fallthru
          _
        // Predicated region
        $region69: #{tpu_custom_call.1} parent=31 // pred_check
          %p626 = pneg %p364
        $region70: #{tpu_custom_call.1} parent=31 // pred_check_branch
          %628 = sbr.rel (%p626) target = $region72
        $region71: #{tpu_custom_call.1} parent=31 // pred_region
          %p629 = scmp.lt.s32.totalorder %s26, 1
          %s630 = scalar_select %p629, %s26, 1
          %s631 = scalar_lea.vmem %s13, %s630
        $region72: #{tpu_custom_call.1} parent=31 // pred_fallthru
          _
        // Predicated region
        $region73: #{tpu_custom_call.1} parent=31 // pred_check
          %p632 = pneg %p390
        $region74: #{tpu_custom_call.1} parent=31 // pred_check_branch
          %634 = sbr.rel (%p632) target = $region76
        $region75: #{tpu_custom_call.1} parent=31 // pred_region
          %p635 = scmp.lt.s32.totalorder %s26, 1
          %s636 = scalar_select %p635, %s26, 1
          %s637 = scalar_lea.vmem %s14, %s636
        $region76: #{tpu_custom_call.1} parent=31 // pred_fallthru
          _
        // Predicated region
        $region77: #{tpu_custom_call.1} parent=31 // pred_check
          %p638 = pneg %p416
        $region78: #{tpu_custom_call.1} parent=31 // pred_check_branch
          %640 = sbr.rel (%p638) target = $region80
        $region79: #{tpu_custom_call.1} parent=31 // pred_region
          %p641 = scmp.lt.s32.totalorder %s26, 1
          %s642 = scalar_select %p641, %s26, 1
          %s643 = scalar_lea.vmem %s15, %s642
        $region80: #{tpu_custom_call.1} parent=31 // pred_fallthru
          _
      $region32: #{tpu_custom_call.1} parent=5 // pred_fallthru
        _
      %p644 = scmp.le.s32.totalorder 1, %s26
      %p645 = scmp.lt.s32.totalorder %s26, 3
      %p646 = pnand %p644, %p645
      %p647 = pneg %p646
      // Predicated region
      $region81: #{tpu_custom_call.1} parent=5 // pred_check
        _
      $region82: #{tpu_custom_call.1} parent=5 // pred_check_branch
        %649 = sbr.rel (%p646) target = $region84
      $region83: #{tpu_custom_call.1} parent=5 // pred_region
        %s650 = ssub.s32 %s26, 1
        // Predicated region
        $region85: #{tpu_custom_call.1} parent=83 // pred_check
          %p651 = pneg %p47
        $region86: #{tpu_custom_call.1} parent=83 // pred_check_branch
          %653 = sbr.rel (%p651) target = $region88
        $region87: #{tpu_custom_call.1} parent=83 // pred_region
          %654 = dma.done [#allocation5], 256
        $region88: #{tpu_custom_call.1} parent=83 // pred_fallthru
          _
        // Predicated region
        $region89: #{tpu_custom_call.1} parent=83 // pred_check
          %p655 = pneg %p68
        $region90: #{tpu_custom_call.1} parent=83 // pred_check_branch
          %657 = sbr.rel (%p655) target = $region92
        $region91: #{tpu_custom_call.1} parent=83 // pred_region
          %658 = dma.done [#allocation8], 32
        $region92: #{tpu_custom_call.1} parent=83 // pred_fallthru
          _
        // Predicated region
        $region93: #{tpu_custom_call.1} parent=83 // pred_check
          %p659 = pneg %p89
        $region94: #{tpu_custom_call.1} parent=83 // pred_check_branch
          %661 = sbr.rel (%p659) target = $region96
        $region95: #{tpu_custom_call.1} parent=83 // pred_region
          %662 = dma.done [#allocation8], 16
        $region96: #{tpu_custom_call.1} parent=83 // pred_fallthru
          _
        // Predicated region
        $region97: #{tpu_custom_call.1} parent=83 // pred_check
          %p663 = pneg %p110
        $region98: #{tpu_custom_call.1} parent=83 // pred_check_branch
          %665 = sbr.rel (%p663) target = $region100
        $region99: #{tpu_custom_call.1} parent=83 // pred_region
          %666 = dma.done [#allocation11], 16
        $region100: #{tpu_custom_call.1} parent=83 // pred_fallthru
          _
        %s667 = sand.u32 %s31, 1
        %s668 = scalar_lea.sflag [#allocation5], %s667
        %s669 = sand.u32 %s123, 1
        %s670 = smul.addr %s669, 192
        %s671 = scalar_lea.vmem [#allocation12], %s670
        // Predicated region
        $region101: #{tpu_custom_call.1} parent=83 // pred_check
          %p672 = pneg %p136
        $region102: #{tpu_custom_call.1} parent=83 // pred_check_branch
          %674 = sbr.rel (%p672) target = $region104
        $region103: #{tpu_custom_call.1} parent=83 // pred_region
          %675 = dma.done %s668, 3072
        $region104: #{tpu_custom_call.1} parent=83 // pred_fallthru
          _
        %s676 = sand.u32 %s31, 1
        %s677 = scalar_lea.sflag [#allocation5], %s676
        %s678 = sand.u32 %s175, 1
        %s679 = smul.addr %s678, 64
        %s680 = scalar_lea.vmem [#allocation13], %s679
        // Predicated region
        $region105: #{tpu_custom_call.1} parent=83 // pred_check
          %p681 = pneg %p188
        $region106: #{tpu_custom_call.1} parent=83 // pred_check_branch
          %683 = sbr.rel (%p681) target = $region108
        $region107: #{tpu_custom_call.1} parent=83 // pred_region
          %684 = dma.done %s677, 1024
        $region108: #{tpu_custom_call.1} parent=83 // pred_fallthru
          _
        %s685 = sand.u32 %s31, 1
        %s686 = scalar_lea.sflag [#allocation5], %s685
        %s687 = sand.u32 %s279, 1
        %s688 = smul.addr %s687, 128
        %s689 = scalar_lea.vmem [#allocation14], %s688
        // Predicated region
        $region109: #{tpu_custom_call.1} parent=83 // pred_check
          %p690 = pneg %p292
        $region110: #{tpu_custom_call.1} parent=83 // pred_check_branch
          %692 = sbr.rel (%p690) target = $region112
        $region111: #{tpu_custom_call.1} parent=83 // pred_region
          %693 = dma.done %s686, 2048
        $region112: #{tpu_custom_call.1} parent=83 // pred_fallthru
          _
        %s694 = sand.u32 %s31, 1
        %s695 = scalar_lea.sflag [#allocation5], %s694
        %s696 = sand.u32 %s331, 1
        %s697 = smul.addr %s696, 128
        %s698 = scalar_lea.vmem [#allocation15], %s697
        // Predicated region
        $region113: #{tpu_custom_call.1} parent=83 // pred_check
          %p699 = pneg %p344
        $region114: #{tpu_custom_call.1} parent=83 // pred_check_branch
          %701 = sbr.rel (%p699) target = $region116
        $region115: #{tpu_custom_call.1} parent=83 // pred_region
          %702 = dma.done %s695, 2048
        $region116: #{tpu_custom_call.1} parent=83 // pred_fallthru
          _
        %p703 = pneg %p47
        %p704 = pneg %p44
        %p705 = pneg %p68
        %p706 = pneg %p65
        %p707 = pneg %p89
        %p708 = pneg %p86
        %p709 = pneg %p110
        %p710 = pneg %p107
        %s711 = sand.u32 %s31, 1
        %s712 = scalar_lea.sflag [#allocation5], %s711
        %s713 = sand.u32 %s123, 1
        %s714 = smul.addr %s713, 192
        %s715 = scalar_lea.vmem [#allocation12], %s714
        %p716 = pneg %p136
        %p717 = pneg %p133
        %p718 = scmp.lt.s32.totalorder %s31, 1
        %s719 = scalar_select %p718, %s31, 1
        %s720 = smul.addr %s719, 3
        %s721 = scalar_lea.vmem %s5, %s720
        %p722 = pneg %p162
        %p723 = pneg %p159
        %s724 = sand.u32 %s31, 1
        %s725 = scalar_lea.sflag [#allocation5], %s724
        %s726 = sand.u32 %s175, 1
        %s727 = smul.addr %s726, 64
        %s728 = scalar_lea.vmem [#allocation13], %s727
        %p729 = pneg %p188
        %p730 = pneg %p185
        %p731 = scmp.lt.s32.totalorder %s31, 1
        %s732 = scalar_select %p731, %s31, 1
        %s733 = scalar_lea.vmem %s7, %s732
        %p734 = pneg %p214
        %p735 = pneg %p211
        %p736 = scmp.lt.s32.totalorder %s31, 1
        %s737 = scalar_select %p736, %s31, 1
        %s738 = scalar_lea.vmem %s8, %s737
        %p739 = pneg %p240
        %p740 = pneg %p237
        %p741 = scmp.lt.s32.totalorder %s31, 1
        %s742 = scalar_select %p741, %s31, 1
        %s743 = scalar_lea.vmem %s9, %s742
        %p744 = pneg %p266
        %p745 = pneg %p263
        %s746 = sand.u32 %s31, 1
        %s747 = scalar_lea.sflag [#allocation5], %s746
        %s748 = sand.u32 %s279, 1
        %s749 = smul.addr %s748, 128
        %s750 = scalar_lea.vmem [#allocation14], %s749
        %p751 = pneg %p292
        %p752 = pneg %p289
        %p753 = scmp.lt.s32.totalorder %s31, 1
        %s754 = scalar_select %p753, %s31, 1
        %s755 = smul.addr %s754, 2
        %s756 = scalar_lea.vmem %s11, %s755
        %p757 = pneg %p318
        %p758 = pneg %p315
        %s759 = sand.u32 %s31, 1
        %s760 = scalar_lea.sflag [#allocation5], %s759
        %s761 = sand.u32 %s331, 1
        %s762 = smul.addr %s761, 128
        %s763 = scalar_lea.vmem [#allocation15], %s762
        %p764 = pneg %p344
        %p765 = pneg %p341
        %p766 = scmp.lt.s32.totalorder %s31, 1
        %s767 = scalar_select %p766, %s31, 1
        %s768 = scalar_lea.vmem %s13, %s767
        %p769 = pneg %p370
        %p770 = pneg %p367
        %p771 = scmp.lt.s32.totalorder %s31, 1
        %s772 = scalar_select %p771, %s31, 1
        %s773 = scalar_lea.vmem %s14, %s772
        %p774 = pneg %p396
        %p775 = pneg %p393
        %p776 = scmp.lt.s32.totalorder %s31, 1
        %s777 = scalar_select %p776, %s31, 1
        %s778 = scalar_lea.vmem %s15, %s777
        %p779 = pneg %p422
        %p780 = pneg %p419
        %p781 = pneg %p443
        %p782 = pneg %p440
        %p783 = scmp.lt.s32.totalorder %s31, 1
        %s784 = scalar_select %p783, %s31, 1
        %s785 = smul.addr %s784, 3
        %s786 = scalar_lea.vmem %s5, %s785
        %p787 = scmp.lt.s32.totalorder %s31, 1
        %s788 = scalar_select %p787, %s31, 1
        %s789 = scalar_lea.vmem %s7, %s788
        %p790 = scmp.lt.s32.totalorder %s31, 1
        %s791 = scalar_select %p790, %s31, 1
        %s792 = scalar_lea.vmem %s8, %s791
        %p793 = scmp.lt.s32.totalorder %s31, 1
        %s794 = scalar_select %p793, %s31, 1
        %s795 = scalar_lea.vmem %s9, %s794
        %p796 = scmp.lt.s32.totalorder %s31, 1
        %s797 = scalar_select %p796, %s31, 1
        %s798 = smul.addr %s797, 2
        %s799 = scalar_lea.vmem %s11, %s798
        %p800 = scmp.lt.s32.totalorder %s31, 1
        %s801 = scalar_select %p800, %s31, 1
        %s802 = scalar_lea.vmem %s13, %s801
        %p803 = scmp.lt.s32.totalorder %s31, 1
        %s804 = scalar_select %p803, %s31, 1
        %s805 = scalar_lea.vmem %s14, %s804
        %p806 = scmp.lt.s32.totalorder %s31, 1
        %s807 = scalar_select %p806, %s31, 1
        %s808 = scalar_lea.vmem %s15, %s807
        %p810 = scmp.eq.s32.totalorder %s31, 0
        // Predicated region
        $region117: #{tpu_custom_call.1} parent=83 // pred_check
          %p811 = pneg %p810
        $region118: #{tpu_custom_call.1} parent=83 // pred_check_branch
          %813 = sbr.rel (%p811) target = $region120
        $region119: #{tpu_custom_call.1} parent=83 // pred_region
          %v814 = vld [vmem:[#allocation4] sm:$0xff]
          %v815 = vld [vmem:[#allocation4 + $0x8] sm:$0xff]
          %v816 = vld [vmem:[#allocation9] sm:$0x1]
          %v817 = vld [vmem:[#allocation10] sm:$0x1]
          %818 = vadd.xlane.f32.xlu0 %v814
          %v819 = vpop.xlane.xlu0 %818
          %820 = vadd.xlane.f32.xlu0 %v815
          %v821 = vpop.xlane.xlu0 %820
          %v822 = vrcp.pop 128.0
          %v823 = vmul.f32 %v819, %v822
          %v824 = vmul.f32 %v821, %v822
          %v825 = vsub.f32 %v814, %v823
          %v826 = vsub.f32 %v815, %v824
          %v827 = vmul.f32 %v825, %v825
          %v828 = vmul.f32 %v826, %v826
          %829 = vadd.xlane.f32.xlu0 %v827
          %v830 = vpop.xlane.xlu0 %829
          %831 = vadd.xlane.f32.xlu0 %v828
          %v832 = vpop.xlane.xlu0 %831
          %v833 = vmul.f32 %v830, %v822
          %v834 = vmul.f32 %v832, %v822
          %v835 = vadd.f32 %v833, 1e-12
          %v836 = vadd.f32 %v834, 1e-12
          %v837 = vrsqrt.pop %v835
          %v838 = vrsqrt.pop %v836
          %v839 = vmul.f32 %v825, %v837
          %v840 = vmul.f32 %v826, %v838
          %v842 = vlaneseq
          %v843 = vshrl.u32 %v842, 7
          %v844 = vsub.s32 0, %v843
          %v845 = vrot.slane %v816, %v844
          %v847 = vmul.f32 %v839, %v845
          %v848 = vmul.f32 %v840, %v845
          %v850 = vlaneseq
          %v851 = vshrl.u32 %v850, 7
          %v852 = vsub.s32 0, %v851
          %v853 = vrot.slane %v817, %v852
          %v855 = vadd.f32 %v847, %v853
          %v856 = vadd.f32 %v848, %v853
          %857 = vst [vmem:[#allocation2] sm:$0xff] %v855
          %858 = vst [vmem:[#allocation2 + $0x8] sm:$0xff] %v856
        $region120: #{tpu_custom_call.1} parent=83 // pred_fallthru
          _
        %v859 = vld [vmem:[#allocation2] sm:$0xff]
        %v860 = vld [vmem:[#allocation2 + $0x8] sm:$0xff]
        %v861 = vpack.c.bf16 %v860, %v859
        %v862 = vld [vmem:[%s671] sm:$0xff]
        %v863 = vld [vmem:[%s671 + $0x8] sm:$0xf]
        %v864 = vld [vmem:[%s671 + $0xc] sm:$0xff]
        %v865 = vld [vmem:[%s671 + $0x14] sm:$0xf]
        %v866 = vld [vmem:[%s671 + $0x18] sm:$0xff]
        %v867 = vld [vmem:[%s671 + $0x20] sm:$0xf]
        %v868 = vld [vmem:[%s671 + $0x24] sm:$0xff]
        %v869 = vld [vmem:[%s671 + $0x2c] sm:$0xf]
        %v870 = vld [vmem:[%s671 + $0x30] sm:$0xff]
        %v871 = vld [vmem:[%s671 + $0x38] sm:$0xf]
        %v872 = vld [vmem:[%s671 + $0x3c] sm:$0xff]
        %v873 = vld [vmem:[%s671 + $0x44] sm:$0xf]
        %v874 = vld [vmem:[%s671 + $0x48] sm:$0xff]
        %v875 = vld [vmem:[%s671 + $0x50] sm:$0xf]
        %v876 = vld [vmem:[%s671 + $0x54] sm:$0xff]
        %v877 = vld [vmem:[%s671 + $0x5c] sm:$0xf]
        %v878 = vld [vmem:[%s671 + $0x60] sm:$0xff]
        %v879 = vld [vmem:[%s671 + $0x68] sm:$0xf]
        %v880 = vld [vmem:[%s671 + $0x6c] sm:$0xff]
        %v881 = vld [vmem:[%s671 + $0x74] sm:$0xf]
        %v882 = vld [vmem:[%s671 + $0x78] sm:$0xff]
        %v883 = vld [vmem:[%s671 + $0x80] sm:$0xf]
        %v884 = vld [vmem:[%s671 + $0x84] sm:$0xff]
        %v885 = vld [vmem:[%s671 + $0x8c] sm:$0xf]
        %v886 = vld [vmem:[%s671 + $0x90] sm:$0xff]
        %v887 = vld [vmem:[%s671 + $0x98] sm:$0xf]
        %v888 = vld [vmem:[%s671 + $0x9c] sm:$0xff]
        %v889 = vld [vmem:[%s671 + $0xa4] sm:$0xf]
        %v890 = vld [vmem:[%s671 + $0xa8] sm:$0xff]
        %v891 = vld [vmem:[%s671 + $0xb0] sm:$0xf]
        %v892 = vld [vmem:[%s671 + $0xb4] sm:$0xff]
        %v893 = vld [vmem:[%s671 + $0xbc] sm:$0xf]
        %v894 = vld [vmem:[%s786] sm:$0x7]
        %v896 = vlaneseq
        %v897 = vshrl.u32 %v896, 7
        %v898 = vsub.s32 0, %v897
        %v899 = vrot.slane %v894, %v898
        %v900 = vlaneseq
        %v901 = vshrl.u32 %v900, 7
        %v902 = vsub.s32 1, %v901
        %v903 = vrot.slane %v894, %v902
        %v904 = vlaneseq
        %v905 = vshrl.u32 %v904, 7
        %v906 = vsub.s32 2, %v905
        %v907 = vrot.slane %v894, %v906
        %v943 = vunpack.c.l.b16 %v862
        %v944 = vunpack.c.h.b16 %v862
        %v945 = vunpack.c.l.b16 %v863
        %v946 = vunpack.c.l.b16 %v864
        %v947 = vunpack.c.h.b16 %v864
        %v948 = vunpack.c.l.b16 %v865
        %v949 = vunpack.c.l.b16 %v866
        %v950 = vunpack.c.h.b16 %v866
        %v951 = vunpack.c.l.b16 %v867
        %v952 = vunpack.c.l.b16 %v868
        %v953 = vunpack.c.h.b16 %v868
        %v954 = vunpack.c.l.b16 %v869
        %v955 = vunpack.c.l.b16 %v870
        %v956 = vunpack.c.h.b16 %v870
        %v957 = vunpack.c.l.b16 %v871
        %v958 = vunpack.c.l.b16 %v872
        %v959 = vunpack.c.h.b16 %v872
        %v960 = vunpack.c.l.b16 %v873
        %v961 = vunpack.c.l.b16 %v874
        %v962 = vunpack.c.h.b16 %v874
        %v963 = vunpack.c.l.b16 %v875
        %v964 = vunpack.c.l.b16 %v876
        %v965 = vunpack.c.h.b16 %v876
        %v966 = vunpack.c.l.b16 %v877
        %v967 = vunpack.c.l.b16 %v878
        %v968 = vunpack.c.h.b16 %v878
        %v969 = vunpack.c.l.b16 %v879
        %v970 = vunpack.c.l.b16 %v880
        %v971 = vunpack.c.h.b16 %v880
        %v972 = vunpack.c.l.b16 %v881
        %v973 = vunpack.c.l.b16 %v882
        %v974 = vunpack.c.h.b16 %v882
        %v975 = vunpack.c.l.b16 %v883
        %v976 = vunpack.c.l.b16 %v884
        %v977 = vunpack.c.h.b16 %v884
        %v978 = vunpack.c.l.b16 %v885
        %v979 = vunpack.c.l.b16 %v886
        %v980 = vunpack.c.h.b16 %v886
        %v981 = vunpack.c.l.b16 %v887
        %v982 = vunpack.c.l.b16 %v888
        %v983 = vunpack.c.h.b16 %v888
        %v984 = vunpack.c.l.b16 %v889
        %v985 = vunpack.c.l.b16 %v890
        %v986 = vunpack.c.h.b16 %v890
        %v987 = vunpack.c.l.b16 %v891
        %v988 = vunpack.c.l.b16 %v892
        %v989 = vunpack.c.h.b16 %v892
        %v990 = vunpack.c.l.b16 %v893
        %v991 = vpack.c.b16 %v946, %v943
        %v992 = vpack.c.b16 %v947, %v944
        %v993 = vpack.c.b16 %v948, %v945
        %v994 = vpack.c.b16 %v952, %v949
        %v995 = vpack.c.b16 %v953, %v950
        %v996 = vpack.c.b16 %v954, %v951
        %v997 = vpack.c.b16 %v958, %v955
        %v998 = vpack.c.b16 %v959, %v956
        %v999 = vpack.c.b16 %v960, %v957
        %v1000 = vpack.c.b16 %v964, %v961
        %v1001 = vpack.c.b16 %v965, %v962
        %v1002 = vpack.c.b16 %v966, %v963
        %v1003 = vpack.c.b16 %v970, %v967
        %v1004 = vpack.c.b16 %v971, %v968
        %v1005 = vpack.c.b16 %v972, %v969
        %v1006 = vpack.c.b16 %v976, %v973
        %v1007 = vpack.c.b16 %v977, %v974
        %v1008 = vpack.c.b16 %v978, %v975
        %v1009 = vpack.c.b16 %v982, %v979
        %v1010 = vpack.c.b16 %v983, %v980
        %v1011 = vpack.c.b16 %v984, %v981
        %v1012 = vpack.c.b16 %v988, %v985
        %v1013 = vpack.c.b16 %v989, %v986
        %v1014 = vpack.c.b16 %v990, %v987
        %1039 = vmatprep.subr.bf16.mxu0 %v1013
        %1040 = vmatpush1.bf16.msra.mxu0 %v1012
        %1041 = vmatprep.subr.bf16.mxu0 %v1010
        %1042 = vmatpush1.bf16.msra.mxu0 %v1009
        %1043 = vmatprep.subr.bf16.mxu0 %v1007
        %1044 = vmatpush1.bf16.msra.mxu0 %v1006
        %1045 = vmatprep.subr.bf16.mxu0 %v1004
        %1046 = vmatpush1.bf16.msra.mxu0 %v1003
        %1047 = vmatprep.subr.bf16.mxu0 %v1001
        %1048 = vmatpush1.bf16.msra.mxu0 %v1000
        %1049 = vmatprep.subr.bf16.mxu0 %v998
        %1050 = vmatpush1.bf16.msra.mxu0 %v997
        %1051 = vmatprep.subr.bf16.mxu0 %v995
        %1052 = vmatpush1.bf16.msra.mxu0 %v994
        %1053 = vmatprep.subr.bf16.mxu0 %v992
        %1054 = vmatpush1.bf16.msra.mxu0 %v991
        %1055 = vmatprep.subr.bf16.mxu0 0
        %1056 = vmatpush2.bf16.msra.mxu0 0
        %1057 = vmatprep.subr.bf16.mxu0 0
        %1058 = vmatpush2.bf16.msra.mxu0 0
        %1059 = vmatprep.subr.bf16.mxu0 0
        %1060 = vmatpush2.bf16.msra.mxu0 0
        %1061 = vmatprep.subr.bf16.mxu0 0
        %1062 = vmatpush2.bf16.msra.mxu0 0
        %1063 = vmatprep.subr.bf16.mxu0 0
        %1064 = vmatpush2.bf16.msra.mxu0 0
        %1065 = vmatprep.subr.bf16.mxu0 0
        %1066 = vmatpush2.bf16.msra.mxu0 0
        %1067 = vmatprep.subr.bf16.mxu0 0
        %1068 = vmatpush2.bf16.msra.mxu0 0
        %1069 = vmatprep.subr.bf16.mxu0 0
        %1070 = vmatpush2.bf16.msra.mxu0 0
        %1071 = vmatprep.mubr.bf16.mxu0 0
        %1072 = vmatmul.mubr.bf16.gmra.mxu0 %v861
        %v1073 = vpop.f32.mrf.mxu0
        %v1074 = vadd.f32 %v899, %v1073
        %v1075 = vpop.f32.mrf.mxu0
        %v1076 = vadd.f32 %v903, %v1075
        %v1077 = vpop.f32.mrf.mxu0
        %v1078 = vadd.f32 %v899, %v1077
        %v1079 = vpop.f32.mrf.mxu0
        %v1080 = vadd.f32 %v903, %v1079
        %1081 = vdwg.mxu0
        %1082 = vmatprep.subr.bf16.mxu0 0
        %1083 = vmatpush1.bf16.msra.mxu0 %v1014
        %1084 = vmatprep.subr.bf16.mxu0 0
        %1085 = vmatpush1.bf16.msra.mxu0 %v1011
        %1086 = vmatprep.subr.bf16.mxu0 0
        %1087 = vmatpush1.bf16.msra.mxu0 %v1008
        %1088 = vmatprep.subr.bf16.mxu0 0
        %1089 = vmatpush1.bf16.msra.mxu0 %v1005
        %1090 = vmatprep.subr.bf16.mxu0 0
        %1091 = vmatpush1.bf16.msra.mxu0 %v1002
        %1092 = vmatprep.subr.bf16.mxu0 0
        %1093 = vmatpush1.bf16.msra.mxu0 %v999
        %1094 = vmatprep.subr.bf16.mxu0 0
        %1095 = vmatpush1.bf16.msra.mxu0 %v996
        %1096 = vmatprep.subr.bf16.mxu0 0
        %1097 = vmatpush1.bf16.msra.mxu0 %v993
        %1098 = vmatprep.subr.bf16.mxu0 0
        %1099 = vmatpush2.bf16.msra.mxu0 0
        %1100 = vmatprep.subr.bf16.mxu0 0
        %1101 = vmatpush2.bf16.msra.mxu0 0
        %1102 = vmatprep.subr.bf16.mxu0 0
        %1103 = vmatpush2.bf16.msra.mxu0 0
        %1104 = vmatprep.subr.bf16.mxu0 0
        %1105 = vmatpush2.bf16.msra.mxu0 0
        %1106 = vmatprep.subr.bf16.mxu0 0
        %1107 = vmatpush2.bf16.msra.mxu0 0
        %1108 = vmatprep.subr.bf16.mxu0 0
        %1109 = vmatpush2.bf16.msra.mxu0 0
        %1110 = vmatprep.subr.bf16.mxu0 0
        %1111 = vmatpush2.bf16.msra.mxu0 0
        %1112 = vmatprep.subr.bf16.mxu0 0
        %1113 = vmatpush2.bf16.msra.mxu0 0
        %1114 = vmatprep.mubr.bf16.mxu0 0
        %1115 = vmatmul.mubr.bf16.gmra.mxu0 %v861
        %v1116 = vpop.f32.mrf.mxu0
        %v1117 = vadd.f32 %v907, %v1116
        %v1118 = vpop.f32.mrf.mxu0
        %v1119 = vpop.f32.mrf.mxu0
        %v1120 = vadd.f32 %v907, %v1119
        %v1121 = vpop.f32.mrf.mxu0
        %1122 = vdwg.mxu0
        %v1123 = vmul.f32 %v1074, 0.17677669
        %v1124 = vmul.f32 %v1078, 0.17677669
        %v1125 = vld [vmem:[#allocation7] sm:$0x1]
        %v1126 = vld [vmem:[#allocation7 + $0x1] sm:$0x1]
        %v1127 = vpack.c.bf16 %v1123, %v1123
        %1128 = vxpose.xlu0.b32.start [1/16] %v1076, 128
        %1129 = vxpose.xlu0.b32.cont [2/16] 0.0, 128
        %1130 = vxpose.xlu0.b32.cont [3/16] 0.0, 128
        %1131 = vxpose.xlu0.b32.cont [4/16] 0.0, 128
        %1132 = vxpose.xlu0.b32.cont [5/16] 0.0, 128
        %1133 = vxpose.xlu0.b32.cont [6/16] 0.0, 128
        %1134 = vxpose.xlu0.b32.cont [7/16] 0.0, 128
        %1135 = vxpose.xlu0.b32.cont [8/16] 0.0, 128
        %1136 = vxpose.xlu0.b32.cont [9/16] 0.0, 128
        %1137 = vxpose.xlu0.b32.cont [10/16] 0.0, 128
        %1138 = vxpose.xlu0.b32.cont [11/16] 0.0, 128
        %1139 = vxpose.xlu0.b32.cont [12/16] 0.0, 128
        %1140 = vxpose.xlu0.b32.cont [13/16] 0.0, 128
        %1141 = vxpose.xlu0.b32.cont [14/16] 0.0, 128
        %1142 = vxpose.xlu0.b32.cont [15/16] 0.0, 128
        %1143 = vxpose.xlu0.b32.end [16/16] 0.0, 128
        %v1144 = vpop.trf.xlu0
        %v1145 = vpop.trf.xlu0
        %v1146 = vpop.trf.xlu0
        %v1147 = vpop.trf.xlu0
        %v1148 = vpop.trf.xlu0
        %v1149 = vpop.trf.xlu0
        %v1150 = vpop.trf.xlu0
        %v1151 = vpop.trf.xlu0
        %v1152 = vpop.trf.xlu0
        %v1153 = vpop.trf.xlu0
        %v1154 = vpop.trf.xlu0
        %v1155 = vpop.trf.xlu0
        %v1156 = vpop.trf.xlu0
        %v1157 = vpop.trf.xlu0
        %v1158 = vpop.trf.xlu0
        %v1159 = vpop.trf.xlu0
        %v1160 = vpack.c.bf16 %v1145, %v1144
        %v1161 = vpack.c.bf16 %v1147, %v1146
        %v1163 = vlaneseq
        %v1164 = vshrl.u32 %v1163, 7
        %v1165 = vsub.s32 0, %v1164
        %v1166 = vrot.slane %v1125, %v1165
        %vm1168 = vcmask 261120
        %v1170 = vsel %vm1168, %v1127, 0
        %1172 = vmatprep.subr.bf16.mxu0 0
        %1173 = vmatpush1.bf16.msra.mxu0 0
        %1174 = vmatprep.subr.bf16.mxu0 0
        %1175 = vmatpush1.bf16.msra.mxu0 0
        %1176 = vmatprep.subr.bf16.mxu0 0
        %1177 = vmatpush1.bf16.msra.mxu0 0
        %1178 = vmatprep.subr.bf16.mxu0 0
        %1179 = vmatpush1.bf16.msra.mxu0 0
        %1180 = vmatprep.subr.bf16.mxu0 0
        %1181 = vmatpush1.bf16.msra.mxu0 0
        %1182 = vmatprep.subr.bf16.mxu0 0
        %1183 = vmatpush1.bf16.msra.mxu0 0
        %1184 = vmatprep.subr.bf16.mxu0 0
        %1185 = vmatpush1.bf16.msra.mxu0 %v1161
        %1186 = vmatprep.subr.bf16.mxu0 0
        %1187 = vmatpush1.bf16.msra.mxu0 %v1160
        %1188 = vmatprep.subr.bf16.mxu0 0
        %1189 = vmatpush2.bf16.msra.mxu0 0
        %1190 = vmatprep.subr.bf16.mxu0 0
        %1191 = vmatpush2.bf16.msra.mxu0 0
        %1192 = vmatprep.subr.bf16.mxu0 0
        %1193 = vmatpush2.bf16.msra.mxu0 0
        %1194 = vmatprep.subr.bf16.mxu0 0
        %1195 = vmatpush2.bf16.msra.mxu0 0
        %1196 = vmatprep.subr.bf16.mxu0 0
        %1197 = vmatpush2.bf16.msra.mxu0 0
        %1198 = vmatprep.subr.bf16.mxu0 0
        %1199 = vmatpush2.bf16.msra.mxu0 0
        %1200 = vmatprep.subr.bf16.mxu0 0
        %1201 = vmatpush2.bf16.msra.mxu0 0
        %1202 = vmatprep.subr.bf16.mxu0 0
        %1203 = vmatpush2.bf16.msra.mxu0 0
        %1204 = vmatprep.mubr.bf16.mxu0 0
        %1205 = vmatmul.mubr.bf16.gmra.mxu0 %v1170
        %v1206 = vpop.f32.mrf.mxu0
        %v1207 = vadd.f32 %v1166, %v1206
        %v1208 = vpop.f32.mrf.mxu0
        %v1209 = vpop.f32.mrf.mxu0
        %v1210 = vpop.f32.mrf.mxu0
        %1211 = vdwg.mxu0
        %vm1212 = vcmask 64512
        %v1213 = vsel %vm1212, %v1207, -inf
        %1214 = vmax.xlane.f32.xlu0 %v1213
        %v1215 = vpop.xlane.xlu0 %1214
        %v1216 = vsub.f32 %v1207, %v1215
        %v1217 = vmul.f32 %v1216, 1.442695
        %v1218 = vpow.pop %v1217
        %v1219 = vsel %vm1212, %v1218, 0.0
        %1220 = vadd.xlane.f32.xlu0 %v1219
        %v1221 = vpop.xlane.xlu0 %1220
        %v1222 = vrcp.pop %v1221
        %v1223 = vmul.f32 %v1218, %v1222
        %v1224 = vpack.c.bf16 %v1223, %v1223
        %v1225 = vpack.c.bf16 %v1117, %v1117
        %v1227 = vsel %vm1212, %v1224, 0
        %vm1229 = vcmask 1043456
        %v1231 = vsel %vm1229, %v1225, 0
        %1233 = vmatprep.subr.bf16.mxu0 0
        %1234 = vmatpush1.bf16.msra.mxu0 0
        %1235 = vmatprep.subr.bf16.mxu0 0
        %1236 = vmatpush1.bf16.msra.mxu0 0
        %1237 = vmatprep.subr.bf16.mxu0 0
        %1238 = vmatpush1.bf16.msra.mxu0 0
        %1239 = vmatprep.subr.bf16.mxu0 0
        %1240 = vmatpush1.bf16.msra.mxu0 0
        %1241 = vmatprep.subr.bf16.mxu0 0
        %1242 = vmatpush1.bf16.msra.mxu0 0
        %1243 = vmatprep.subr.bf16.mxu0 0
        %1244 = vmatpush1.bf16.msra.mxu0 0
        %1245 = vmatprep.subr.bf16.mxu0 0
        %1246 = vmatpush1.bf16.msra.mxu0 0
        %1247 = vmatprep.subr.bf16.mxu0 0
        %1248 = vmatpush1.bf16.msra.mxu0 %v1231
        %1249 = vmatprep.subr.bf16.mxu0 0
        %1250 = vmatpush2.bf16.msra.mxu0 0
        %1251 = vmatprep.subr.bf16.mxu0 0
        %1252 = vmatpush2.bf16.msra.mxu0 0
        %1253 = vmatprep.subr.bf16.mxu0 0
        %1254 = vmatpush2.bf16.msra.mxu0 0
        %1255 = vmatprep.subr.bf16.mxu0 0
        %1256 = vmatpush2.bf16.msra.mxu0 0
        %1257 = vmatprep.subr.bf16.mxu0 0
        %1258 = vmatpush2.bf16.msra.mxu0 0
        %1259 = vmatprep.subr.bf16.mxu0 0
        %1260 = vmatpush2.bf16.msra.mxu0 0
        %1261 = vmatprep.subr.bf16.mxu0 0
        %1262 = vmatpush2.bf16.msra.mxu0 0
        %1263 = vmatprep.subr.bf16.mxu0 0
        %1264 = vmatpush2.bf16.msra.mxu0 0
        %1265 = vmatprep.mubr.bf16.mxu0 0
        %1266 = vmatmul.mubr.bf16.gmra.mxu0 %v1227
        %v1267 = vpop.f32.mrf.mxu0
        %v1268 = vadd.f32 0.0, %v1267
        %v1269 = vpop.f32.mrf.mxu0
        %v1270 = vpop.f32.mrf.mxu0
        %v1271 = vpop.f32.mrf.mxu0
        %1272 = vdwg.mxu0
        %1273 = vst.msk [vmem:[#allocation3] sm:$0xff] %vm1168, %v1268
        %1275 = vrot.lane.b32.xlu0 %v1076, 96
        %v1276 = vpop.permute.xlu0 %1275
        %1278 = vxpose.xlu0.b32.start [1/16] %v1276, 128
        %1279 = vxpose.xlu0.b32.cont [2/16] 0.0, 128
        %1280 = vxpose.xlu0.b32.cont [3/16] 0.0, 128
        %1281 = vxpose.xlu0.b32.cont [4/16] 0.0, 128
        %1282 = vxpose.xlu0.b32.cont [5/16] 0.0, 128
        %1283 = vxpose.xlu0.b32.cont [6/16] 0.0, 128
        %1284 = vxpose.xlu0.b32.cont [7/16] 0.0, 128
        %1285 = vxpose.xlu0.b32.cont [8/16] 0.0, 128
        %1286 = vxpose.xlu0.b32.cont [9/16] 0.0, 128
        %1287 = vxpose.xlu0.b32.cont [10/16] 0.0, 128
        %1288 = vxpose.xlu0.b32.cont [11/16] 0.0, 128
        %1289 = vxpose.xlu0.b32.cont [12/16] 0.0, 128
        %1290 = vxpose.xlu0.b32.cont [13/16] 0.0, 128
        %1291 = vxpose.xlu0.b32.cont [14/16] 0.0, 128
        %1292 = vxpose.xlu0.b32.cont [15/16] 0.0, 128
        %1293 = vxpose.xlu0.b32.end [16/16] 0.0, 128
        %v1294 = vpop.trf.xlu0
        %v1295 = vpop.trf.xlu0
        %v1296 = vpop.trf.xlu0
        %v1297 = vpop.trf.xlu0
        %v1298 = vpop.trf.xlu0
        %v1299 = vpop.trf.xlu0
        %v1300 = vpop.trf.xlu0
        %v1301 = vpop.trf.xlu0
        %v1302 = vpop.trf.xlu0
        %v1303 = vpop.trf.xlu0
        %v1304 = vpop.trf.xlu0
        %v1305 = vpop.trf.xlu0
        %v1306 = vpop.trf.xlu0
        %v1307 = vpop.trf.xlu0
        %v1308 = vpop.trf.xlu0
        %v1309 = vpop.trf.xlu0
        %v1310 = vpack.c.bf16 %v1295, %v1294
        %v1311 = vpack.c.bf16 %v1297, %v1296
        %1313 = vrot.lane.b32.xlu0 %v1127, 96
        %v1314 = vpop.permute.xlu0 %1313
        %v1316 = vsel %vm1168, %v1314, 0
        %1318 = vmatprep.subr.bf16.mxu0 0
        %1319 = vmatpush1.bf16.msra.mxu0 0
        %1320 = vmatprep.subr.bf16.mxu0 0
        %1321 = vmatpush1.bf16.msra.mxu0 0
        %1322 = vmatprep.subr.bf16.mxu0 0
        %1323 = vmatpush1.bf16.msra.mxu0 0
        %1324 = vmatprep.subr.bf16.mxu0 0
        %1325 = vmatpush1.bf16.msra.mxu0 0
        %1326 = vmatprep.subr.bf16.mxu0 0
        %1327 = vmatpush1.bf16.msra.mxu0 0
        %1328 = vmatprep.subr.bf16.mxu0 0
        %1329 = vmatpush1.bf16.msra.mxu0 0
        %1330 = vmatprep.subr.bf16.mxu0 0
        %1331 = vmatpush1.bf16.msra.mxu0 %v1311
        %1332 = vmatprep.subr.bf16.mxu0 0
        %1333 = vmatpush1.bf16.msra.mxu0 %v1310
        %1334 = vmatprep.subr.bf16.mxu0 0
        %1335 = vmatpush2.bf16.msra.mxu0 0
        %1336 = vmatprep.subr.bf16.mxu0 0
        %1337 = vmatpush2.bf16.msra.mxu0 0
        %1338 = vmatprep.subr.bf16.mxu0 0
        %1339 = vmatpush2.bf16.msra.mxu0 0
        %1340 = vmatprep.subr.bf16.mxu0 0
        %1341 = vmatpush2.bf16.msra.mxu0 0
        %1342 = vmatprep.subr.bf16.mxu0 0
        %1343 = vmatpush2.bf16.msra.mxu0 0
        %1344 = vmatprep.subr.bf16.mxu0 0
        %1345 = vmatpush2.bf16.msra.mxu0 0
        %1346 = vmatprep.subr.bf16.mxu0 0
        %1347 = vmatpush2.bf16.msra.mxu0 0
        %1348 = vmatprep.subr.bf16.mxu0 0
        %1349 = vmatpush2.bf16.msra.mxu0 0
        %1350 = vmatprep.mubr.bf16.mxu0 0
        %1351 = vmatmul.mubr.bf16.gmra.mxu0 %v1316
        %v1352 = vpop.f32.mrf.mxu0
        %v1353 = vadd.f32 %v1166, %v1352
        %v1354 = vpop.f32.mrf.mxu0
        %v1355 = vpop.f32.mrf.mxu0
        %v1356 = vpop.f32.mrf.mxu0
        %1357 = vdwg.mxu0
        %v1358 = vsel %vm1212, %v1353, -inf
        %1359 = vmax.xlane.f32.xlu0 %v1358
        %v1360 = vpop.xlane.xlu0 %1359
        %v1361 = vsub.f32 %v1353, %v1360
        %v1362 = vmul.f32 %v1361, 1.442695
        %v1363 = vpow.pop %v1362
        %v1364 = vsel %vm1212, %v1363, 0.0
        %1365 = vadd.xlane.f32.xlu0 %v1364
        %v1366 = vpop.xlane.xlu0 %1365
        %v1367 = vrcp.pop %v1366
        %v1368 = vmul.f32 %v1363, %v1367
        %v1369 = vpack.c.bf16 %v1368, %v1368
        %1371 = vrot.lane.b32.xlu0 %v1225, 96
        %v1372 = vpop.permute.xlu0 %1371
        %v1374 = vsel %vm1212, %v1369, 0
        %v1377 = vsel %vm1229, %v1372, 0
        %1379 = vmatprep.subr.bf16.mxu0 0
        %1380 = vmatpush1.bf16.msra.mxu0 0
        %1381 = vmatprep.subr.bf16.mxu0 0
        %1382 = vmatpush1.bf16.msra.mxu0 0
        %1383 = vmatprep.subr.bf16.mxu0 0
        %1384 = vmatpush1.bf16.msra.mxu0 0
        %1385 = vmatprep.subr.bf16.mxu0 0
        %1386 = vmatpush1.bf16.msra.mxu0 0
        %1387 = vmatprep.subr.bf16.mxu0 0
        %1388 = vmatpush1.bf16.msra.mxu0 0
        %1389 = vmatprep.subr.bf16.mxu0 0
        %1390 = vmatpush1.bf16.msra.mxu0 0
        %1391 = vmatprep.subr.bf16.mxu0 0
        %1392 = vmatpush1.bf16.msra.mxu0 0
        %1393 = vmatprep.subr.bf16.mxu0 0
        %1394 = vmatpush1.bf16.msra.mxu0 %v1377
        %1395 = vmatprep.subr.bf16.mxu0 0
        %1396 = vmatpush2.bf16.msra.mxu0 0
        %1397 = vmatprep.subr.bf16.mxu0 0
        %1398 = vmatpush2.bf16.msra.mxu0 0
        %1399 = vmatprep.subr.bf16.mxu0 0
        %1400 = vmatpush2.bf16.msra.mxu0 0
        %1401 = vmatprep.subr.bf16.mxu0 0
        %1402 = vmatpush2.bf16.msra.mxu0 0
        %1403 = vmatprep.subr.bf16.mxu0 0
        %1404 = vmatpush2.bf16.msra.mxu0 0
        %1405 = vmatprep.subr.bf16.mxu0 0
        %1406 = vmatpush2.bf16.msra.mxu0 0
        %1407 = vmatprep.subr.bf16.mxu0 0
        %1408 = vmatpush2.bf16.msra.mxu0 0
        %1409 = vmatprep.subr.bf16.mxu0 0
        %1410 = vmatpush2.bf16.msra.mxu0 0
        %1411 = vmatprep.mubr.bf16.mxu0 0
        %1412 = vmatmul.mubr.bf16.gmra.mxu0 %v1374
        %v1413 = vpop.f32.mrf.mxu0
        %v1414 = vadd.f32 0.0, %v1413
        %v1415 = vpop.f32.mrf.mxu0
        %v1416 = vpop.f32.mrf.mxu0
        %v1417 = vpop.f32.mrf.mxu0
        %1418 = vdwg.mxu0
        %1420 = vrot.lane.b32.xlu0 %v1414, 32
        %v1421 = vpop.permute.xlu0 %1420
        %vm1423 = vcmask 523520
        %1424 = vst.msk [vmem:[#allocation3] sm:$0xff] %vm1423, %v1421
        %1425 = vrot.lane.b32.xlu0 %v1076, 64
        %v1426 = vpop.permute.xlu0 %1425
        %1428 = vxpose.xlu0.b32.start [1/16] %v1426, 128
        %1429 = vxpose.xlu0.b32.cont [2/16] 0.0, 128
        %1430 = vxpose.xlu0.b32.cont [3/16] 0.0, 128
        %1431 = vxpose.xlu0.b32.cont [4/16] 0.0, 128
        %1432 = vxpose.xlu0.b32.cont [5/16] 0.0, 128
        %1433 = vxpose.xlu0.b32.cont [6/16] 0.0, 128
        %1434 = vxpose.xlu0.b32.cont [7/16] 0.0, 128
        %1435 = vxpose.xlu0.b32.cont [8/16] 0.0, 128
        %1436 = vxpose.xlu0.b32.cont [9/16] 0.0, 128
        %1437 = vxpose.xlu0.b32.cont [10/16] 0.0, 128
        %1438 = vxpose.xlu0.b32.cont [11/16] 0.0, 128
        %1439 = vxpose.xlu0.b32.cont [12/16] 0.0, 128
        %1440 = vxpose.xlu0.b32.cont [13/16] 0.0, 128
        %1441 = vxpose.xlu0.b32.cont [14/16] 0.0, 128
        %1442 = vxpose.xlu0.b32.cont [15/16] 0.0, 128
        %1443 = vxpose.xlu0.b32.end [16/16] 0.0, 128
        %v1444 = vpop.trf.xlu0
        %v1445 = vpop.trf.xlu0
        %v1446 = vpop.trf.xlu0
        %v1447 = vpop.trf.xlu0
        %v1448 = vpop.trf.xlu0
        %v1449 = vpop.trf.xlu0
        %v1450 = vpop.trf.xlu0
        %v1451 = vpop.trf.xlu0
        %v1452 = vpop.trf.xlu0
        %v1453 = vpop.trf.xlu0
        %v1454 = vpop.trf.xlu0
        %v1455 = vpop.trf.xlu0
        %v1456 = vpop.trf.xlu0
        %v1457 = vpop.trf.xlu0
        %v1458 = vpop.trf.xlu0
        %v1459 = vpop.trf.xlu0
        %v1460 = vpack.c.bf16 %v1445, %v1444
        %v1461 = vpack.c.bf16 %v1447, %v1446
        %1462 = vrot.lane.b32.xlu0 %v1127, 64
        %v1463 = vpop.permute.xlu0 %1462
        %v1465 = vsel %vm1168, %v1463, 0
        %1467 = vmatprep.subr.bf16.mxu0 0
        %1468 = vmatpush1.bf16.msra.mxu0 0
        %1469 = vmatprep.subr.bf16.mxu0 0
        %1470 = vmatpush1.bf16.msra.mxu0 0
        %1471 = vmatprep.subr.bf16.mxu0 0
        %1472 = vmatpush1.bf16.msra.mxu0 0
        %1473 = vmatprep.subr.bf16.mxu0 0
        %1474 = vmatpush1.bf16.msra.mxu0 0
        %1475 = vmatprep.subr.bf16.mxu0 0
        %1476 = vmatpush1.bf16.msra.mxu0 0
        %1477 = vmatprep.subr.bf16.mxu0 0
        %1478 = vmatpush1.bf16.msra.mxu0 0
        %1479 = vmatprep.subr.bf16.mxu0 0
        %1480 = vmatpush1.bf16.msra.mxu0 %v1461
        %1481 = vmatprep.subr.bf16.mxu0 0
        %1482 = vmatpush1.bf16.msra.mxu0 %v1460
        %1483 = vmatprep.subr.bf16.mxu0 0
        %1484 = vmatpush2.bf16.msra.mxu0 0
        %1485 = vmatprep.subr.bf16.mxu0 0
        %1486 = vmatpush2.bf16.msra.mxu0 0
        %1487 = vmatprep.subr.bf16.mxu0 0
        %1488 = vmatpush2.bf16.msra.mxu0 0
        %1489 = vmatprep.subr.bf16.mxu0 0
        %1490 = vmatpush2.bf16.msra.mxu0 0
        %1491 = vmatprep.subr.bf16.mxu0 0
        %1492 = vmatpush2.bf16.msra.mxu0 0
        %1493 = vmatprep.subr.bf16.mxu0 0
        %1494 = vmatpush2.bf16.msra.mxu0 0
        %1495 = vmatprep.subr.bf16.mxu0 0
        %1496 = vmatpush2.bf16.msra.mxu0 0
        %1497 = vmatprep.subr.bf16.mxu0 0
        %1498 = vmatpush2.bf16.msra.mxu0 0
        %1499 = vmatprep.mubr.bf16.mxu0 0
        %1500 = vmatmul.mubr.bf16.gmra.mxu0 %v1465
        %v1501 = vpop.f32.mrf.mxu0
        %v1502 = vadd.f32 %v1166, %v1501
        %v1503 = vpop.f32.mrf.mxu0
        %v1504 = vpop.f32.mrf.mxu0
        %v1505 = vpop.f32.mrf.mxu0
        %1506 = vdwg.mxu0
        %v1507 = vsel %vm1212, %v1502, -inf
        %1508 = vmax.xlane.f32.xlu0 %v1507
        %v1509 = vpop.xlane.xlu0 %1508
        %v1510 = vsub.f32 %v1502, %v1509
        %v1511 = vmul.f32 %v1510, 1.442695
        %v1512 = vpow.pop %v1511
        %v1513 = vsel %vm1212, %v1512, 0.0
        %1514 = vadd.xlane.f32.xlu0 %v1513
        %v1515 = vpop.xlane.xlu0 %1514
        %v1516 = vrcp.pop %v1515
        %v1517 = vmul.f32 %v1512, %v1516
        %v1518 = vpack.c.bf16 %v1517, %v1517
        %1519 = vrot.lane.b32.xlu0 %v1225, 64
        %v1520 = vpop.permute.xlu0 %1519
        %v1522 = vsel %vm1212, %v1518, 0
        %v1525 = vsel %vm1229, %v1520, 0
        %1527 = vmatprep.subr.bf16.mxu0 0
        %1528 = vmatpush1.bf16.msra.mxu0 0
        %1529 = vmatprep.subr.bf16.mxu0 0
        %1530 = vmatpush1.bf16.msra.mxu0 0
        %1531 = vmatprep.subr.bf16.mxu0 0
        %1532 = vmatpush1.bf16.msra.mxu0 0
        %1533 = vmatprep.subr.bf16.mxu0 0
        %1534 = vmatpush1.bf16.msra.mxu0 0
        %1535 = vmatprep.subr.bf16.mxu0 0
        %1536 = vmatpush1.bf16.msra.mxu0 0
        %1537 = vmatprep.subr.bf16.mxu0 0
        %1538 = vmatpush1.bf16.msra.mxu0 0
        %1539 = vmatprep.subr.bf16.mxu0 0
        %1540 = vmatpush1.bf16.msra.mxu0 0
        %1541 = vmatprep.subr.bf16.mxu0 0
        %1542 = vmatpush1.bf16.msra.mxu0 %v1525
        %1543 = vmatprep.subr.bf16.mxu0 0
        %1544 = vmatpush2.bf16.msra.mxu0 0
        %1545 = vmatprep.subr.bf16.mxu0 0
        %1546 = vmatpush2.bf16.msra.mxu0 0
        %1547 = vmatprep.subr.bf16.mxu0 0
        %1548 = vmatpush2.bf16.msra.mxu0 0
        %1549 = vmatprep.subr.bf16.mxu0 0
        %1550 = vmatpush2.bf16.msra.mxu0 0
        %1551 = vmatprep.subr.bf16.mxu0 0
        %1552 = vmatpush2.bf16.msra.mxu0 0
        %1553 = vmatprep.subr.bf16.mxu0 0
        %1554 = vmatpush2.bf16.msra.mxu0 0
        %1555 = vmatprep.subr.bf16.mxu0 0
        %1556 = vmatpush2.bf16.msra.mxu0 0
        %1557 = vmatprep.subr.bf16.mxu0 0
        %1558 = vmatpush2.bf16.msra.mxu0 0
        %1559 = vmatprep.mubr.bf16.mxu0 0
        %1560 = vmatmul.mubr.bf16.gmra.mxu0 %v1522
        %v1561 = vpop.f32.mrf.mxu0
        %v1562 = vadd.f32 0.0, %v1561
        %v1563 = vpop.f32.mrf.mxu0
        %v1564 = vpop.f32.mrf.mxu0
        %v1565 = vpop.f32.mrf.mxu0
        %1566 = vdwg.mxu0
        %1568 = vrot.lane.b32.xlu0 %v1562, 64
        %v1569 = vpop.permute.xlu0 %1568
        %vm1571 = vcmask 785920
        %1572 = vst.msk [vmem:[#allocation3] sm:$0xff] %vm1571, %v1569
        %1573 = vrot.lane.b32.xlu0 %v1076, 32
        %v1574 = vpop.permute.xlu0 %1573
        %1576 = vxpose.xlu0.b32.start [1/16] %v1574, 128
        %1577 = vxpose.xlu0.b32.cont [2/16] 0.0, 128
        %1578 = vxpose.xlu0.b32.cont [3/16] 0.0, 128
        %1579 = vxpose.xlu0.b32.cont [4/16] 0.0, 128
        %1580 = vxpose.xlu0.b32.cont [5/16] 0.0, 128
        %1581 = vxpose.xlu0.b32.cont [6/16] 0.0, 128
        %1582 = vxpose.xlu0.b32.cont [7/16] 0.0, 128
        %1583 = vxpose.xlu0.b32.cont [8/16] 0.0, 128
        %1584 = vxpose.xlu0.b32.cont [9/16] 0.0, 128
        %1585 = vxpose.xlu0.b32.cont [10/16] 0.0, 128
        %1586 = vxpose.xlu0.b32.cont [11/16] 0.0, 128
        %1587 = vxpose.xlu0.b32.cont [12/16] 0.0, 128
        %1588 = vxpose.xlu0.b32.cont [13/16] 0.0, 128
        %1589 = vxpose.xlu0.b32.cont [14/16] 0.0, 128
        %1590 = vxpose.xlu0.b32.cont [15/16] 0.0, 128
        %1591 = vxpose.xlu0.b32.end [16/16] 0.0, 128
        %v1592 = vpop.trf.xlu0
        %v1593 = vpop.trf.xlu0
        %v1594 = vpop.trf.xlu0
        %v1595 = vpop.trf.xlu0
        %v1596 = vpop.trf.xlu0
        %v1597 = vpop.trf.xlu0
        %v1598 = vpop.trf.xlu0
        %v1599 = vpop.trf.xlu0
        %v1600 = vpop.trf.xlu0
        %v1601 = vpop.trf.xlu0
        %v1602 = vpop.trf.xlu0
        %v1603 = vpop.trf.xlu0
        %v1604 = vpop.trf.xlu0
        %v1605 = vpop.trf.xlu0
        %v1606 = vpop.trf.xlu0
        %v1607 = vpop.trf.xlu0
        %v1608 = vpack.c.bf16 %v1593, %v1592
        %v1609 = vpack.c.bf16 %v1595, %v1594
        %1610 = vrot.lane.b32.xlu0 %v1127, 32
        %v1611 = vpop.permute.xlu0 %1610
        %v1613 = vsel %vm1168, %v1611, 0
        %1615 = vmatprep.subr.bf16.mxu0 0
        %1616 = vmatpush1.bf16.msra.mxu0 0
        %1617 = vmatprep.subr.bf16.mxu0 0
        %1618 = vmatpush1.bf16.msra.mxu0 0
        %1619 = vmatprep.subr.bf16.mxu0 0
        %1620 = vmatpush1.bf16.msra.mxu0 0
        %1621 = vmatprep.subr.bf16.mxu0 0
        %1622 = vmatpush1.bf16.msra.mxu0 0
        %1623 = vmatprep.subr.bf16.mxu0 0
        %1624 = vmatpush1.bf16.msra.mxu0 0
        %1625 = vmatprep.subr.bf16.mxu0 0
        %1626 = vmatpush1.bf16.msra.mxu0 0
        %1627 = vmatprep.subr.bf16.mxu0 0
        %1628 = vmatpush1.bf16.msra.mxu0 %v1609
        %1629 = vmatprep.subr.bf16.mxu0 0
        %1630 = vmatpush1.bf16.msra.mxu0 %v1608
        %1631 = vmatprep.subr.bf16.mxu0 0
        %1632 = vmatpush2.bf16.msra.mxu0 0
        %1633 = vmatprep.subr.bf16.mxu0 0
        %1634 = vmatpush2.bf16.msra.mxu0 0
        %1635 = vmatprep.subr.bf16.mxu0 0
        %1636 = vmatpush2.bf16.msra.mxu0 0
        %1637 = vmatprep.subr.bf16.mxu0 0
        %1638 = vmatpush2.bf16.msra.mxu0 0
        %1639 = vmatprep.subr.bf16.mxu0 0
        %1640 = vmatpush2.bf16.msra.mxu0 0
        %1641 = vmatprep.subr.bf16.mxu0 0
        %1642 = vmatpush2.bf16.msra.mxu0 0
        %1643 = vmatprep.subr.bf16.mxu0 0
        %1644 = vmatpush2.bf16.msra.mxu0 0
        %1645 = vmatprep.subr.bf16.mxu0 0
        %1646 = vmatpush2.bf16.msra.mxu0 0
        %1647 = vmatprep.mubr.bf16.mxu0 0
        %1648 = vmatmul.mubr.bf16.gmra.mxu0 %v1613
        %v1649 = vpop.f32.mrf.mxu0
        %v1650 = vadd.f32 %v1166, %v1649
        %v1651 = vpop.f32.mrf.mxu0
        %v1652 = vpop.f32.mrf.mxu0
        %v1653 = vpop.f32.mrf.mxu0
        %1654 = vdwg.mxu0
        %v1655 = vsel %vm1212, %v1650, -inf
        %1656 = vmax.xlane.f32.xlu0 %v1655
        %v1657 = vpop.xlane.xlu0 %1656
        %v1658 = vsub.f32 %v1650, %v1657
        %v1659 = vmul.f32 %v1658, 1.442695
        %v1660 = vpow.pop %v1659
        %v1661 = vsel %vm1212, %v1660, 0.0
        %1662 = vadd.xlane.f32.xlu0 %v1661
        %v1663 = vpop.xlane.xlu0 %1662
        %v1664 = vrcp.pop %v1663
        %v1665 = vmul.f32 %v1660, %v1664
        %v1666 = vpack.c.bf16 %v1665, %v1665
        %1667 = vrot.lane.b32.xlu0 %v1225, 32
        %v1668 = vpop.permute.xlu0 %1667
        %v1670 = vsel %vm1212, %v1666, 0
        %v1673 = vsel %vm1229, %v1668, 0
        %1675 = vmatprep.subr.bf16.mxu0 0
        %1676 = vmatpush1.bf16.msra.mxu0 0
        %1677 = vmatprep.subr.bf16.mxu0 0
        %1678 = vmatpush1.bf16.msra.mxu0 0
        %1679 = vmatprep.subr.bf16.mxu0 0
        %1680 = vmatpush1.bf16.msra.mxu0 0
        %1681 = vmatprep.subr.bf16.mxu0 0
        %1682 = vmatpush1.bf16.msra.mxu0 0
        %1683 = vmatprep.subr.bf16.mxu0 0
        %1684 = vmatpush1.bf16.msra.mxu0 0
        %1685 = vmatprep.subr.bf16.mxu0 0
        %1686 = vmatpush1.bf16.msra.mxu0 0
        %1687 = vmatprep.subr.bf16.mxu0 0
        %1688 = vmatpush1.bf16.msra.mxu0 0
        %1689 = vmatprep.subr.bf16.mxu0 0
        %1690 = vmatpush1.bf16.msra.mxu0 %v1673
        %1691 = vmatprep.subr.bf16.mxu0 0
        %1692 = vmatpush2.bf16.msra.mxu0 0
        %1693 = vmatprep.subr.bf16.mxu0 0
        %1694 = vmatpush2.bf16.msra.mxu0 0
        %1695 = vmatprep.subr.bf16.mxu0 0
        %1696 = vmatpush2.bf16.msra.mxu0 0
        %1697 = vmatprep.subr.bf16.mxu0 0
        %1698 = vmatpush2.bf16.msra.mxu0 0
        %1699 = vmatprep.subr.bf16.mxu0 0
        %1700 = vmatpush2.bf16.msra.mxu0 0
        %1701 = vmatprep.subr.bf16.mxu0 0
        %1702 = vmatpush2.bf16.msra.mxu0 0
        %1703 = vmatprep.subr.bf16.mxu0 0
        %1704 = vmatpush2.bf16.msra.mxu0 0
        %1705 = vmatprep.subr.bf16.mxu0 0
        %1706 = vmatpush2.bf16.msra.mxu0 0
        %1707 = vmatprep.mubr.bf16.mxu0 0
        %1708 = vmatmul.mubr.bf16.gmra.mxu0 %v1670
        %v1709 = vpop.f32.mrf.mxu0
        %v1710 = vadd.f32 0.0, %v1709
        %v1711 = vpop.f32.mrf.mxu0
        %v1712 = vpop.f32.mrf.mxu0
        %v1713 = vpop.f32.mrf.mxu0
        %1714 = vdwg.mxu0
        %1716 = vrot.lane.b32.xlu0 %v1710, 96
        %v1717 = vpop.permute.xlu0 %1716
        %vm1719 = vcmask 1048320
        %1720 = vst.msk [vmem:[#allocation3] sm:$0xff] %vm1719, %v1717
        %v1721 = vpack.c.bf16 %v1124, %v1124
        %1722 = vxpose.xlu0.b32.start [1/16] %v1080, 128
        %1723 = vxpose.xlu0.b32.cont [2/16] 0.0, 128
        %1724 = vxpose.xlu0.b32.cont [3/16] 0.0, 128
        %1725 = vxpose.xlu0.b32.cont [4/16] 0.0, 128
        %1726 = vxpose.xlu0.b32.cont [5/16] 0.0, 128
        %1727 = vxpose.xlu0.b32.cont [6/16] 0.0, 128
        %1728 = vxpose.xlu0.b32.cont [7/16] 0.0, 128
        %1729 = vxpose.xlu0.b32.cont [8/16] 0.0, 128
        %1730 = vxpose.xlu0.b32.cont [9/16] 0.0, 128
        %1731 = vxpose.xlu0.b32.cont [10/16] 0.0, 128
        %1732 = vxpose.xlu0.b32.cont [11/16] 0.0, 128
        %1733 = vxpose.xlu0.b32.cont [12/16] 0.0, 128
        %1734 = vxpose.xlu0.b32.cont [13/16] 0.0, 128
        %1735 = vxpose.xlu0.b32.cont [14/16] 0.0, 128
        %1736 = vxpose.xlu0.b32.cont [15/16] 0.0, 128
        %1737 = vxpose.xlu0.b32.end [16/16] 0.0, 128
        %v1738 = vpop.trf.xlu0
        %v1739 = vpop.trf.xlu0
        %v1740 = vpop.trf.xlu0
        %v1741 = vpop.trf.xlu0
        %v1742 = vpop.trf.xlu0
        %v1743 = vpop.trf.xlu0
        %v1744 = vpop.trf.xlu0
        %v1745 = vpop.trf.xlu0
        %v1746 = vpop.trf.xlu0
        %v1747 = vpop.trf.xlu0
        %v1748 = vpop.trf.xlu0
        %v1749 = vpop.trf.xlu0
        %v1750 = vpop.trf.xlu0
        %v1751 = vpop.trf.xlu0
        %v1752 = vpop.trf.xlu0
        %v1753 = vpop.trf.xlu0
        %v1754 = vpack.c.bf16 %v1739, %v1738
        %v1755 = vpack.c.bf16 %v1741, %v1740
        %v1757 = vlaneseq
        %v1758 = vshrl.u32 %v1757, 7
        %v1759 = vsub.s32 0, %v1758
        %v1760 = vrot.slane %v1126, %v1759
        %v1763 = vsel %vm1168, %v1721, 0
        %1765 = vmatprep.subr.bf16.mxu0 0
        %1766 = vmatpush1.bf16.msra.mxu0 0
        %1767 = vmatprep.subr.bf16.mxu0 0
        %1768 = vmatpush1.bf16.msra.mxu0 0
        %1769 = vmatprep.subr.bf16.mxu0 0
        %1770 = vmatpush1.bf16.msra.mxu0 0
        %1771 = vmatprep.subr.bf16.mxu0 0
        %1772 = vmatpush1.bf16.msra.mxu0 0
        %1773 = vmatprep.subr.bf16.mxu0 0
        %1774 = vmatpush1.bf16.msra.mxu0 0
        %1775 = vmatprep.subr.bf16.mxu0 0
        %1776 = vmatpush1.bf16.msra.mxu0 0
        %1777 = vmatprep.subr.bf16.mxu0 0
        %1778 = vmatpush1.bf16.msra.mxu0 %v1755
        %1779 = vmatprep.subr.bf16.mxu0 0
        %1780 = vmatpush1.bf16.msra.mxu0 %v1754
        %1781 = vmatprep.subr.bf16.mxu0 0
        %1782 = vmatpush2.bf16.msra.mxu0 0
        %1783 = vmatprep.subr.bf16.mxu0 0
        %1784 = vmatpush2.bf16.msra.mxu0 0
        %1785 = vmatprep.subr.bf16.mxu0 0
        %1786 = vmatpush2.bf16.msra.mxu0 0
        %1787 = vmatprep.subr.bf16.mxu0 0
        %1788 = vmatpush2.bf16.msra.mxu0 0
        %1789 = vmatprep.subr.bf16.mxu0 0
        %1790 = vmatpush2.bf16.msra.mxu0 0
        %1791 = vmatprep.subr.bf16.mxu0 0
        %1792 = vmatpush2.bf16.msra.mxu0 0
        %1793 = vmatprep.subr.bf16.mxu0 0
        %1794 = vmatpush2.bf16.msra.mxu0 0
        %1795 = vmatprep.subr.bf16.mxu0 0
        %1796 = vmatpush2.bf16.msra.mxu0 0
        %1797 = vmatprep.mubr.bf16.mxu0 0
        %1798 = vmatmul.mubr.bf16.gmra.mxu0 %v1763
        %v1799 = vpop.f32.mrf.mxu0
        %v1800 = vadd.f32 %v1760, %v1799
        %v1801 = vpop.f32.mrf.mxu0
        %v1802 = vpop.f32.mrf.mxu0
        %v1803 = vpop.f32.mrf.mxu0
        %1804 = vdwg.mxu0
        %v1805 = vsel %vm1212, %v1800, -inf
        %1806 = vmax.xlane.f32.xlu0 %v1805
        %v1807 = vpop.xlane.xlu0 %1806
        %v1808 = vsub.f32 %v1800, %v1807
        %v1809 = vmul.f32 %v1808, 1.442695
        %v1810 = vpow.pop %v1809
        %v1811 = vsel %vm1212, %v1810, 0.0
        %1812 = vadd.xlane.f32.xlu0 %v1811
        %v1813 = vpop.xlane.xlu0 %1812
        %v1814 = vrcp.pop %v1813
        %v1815 = vmul.f32 %v1810, %v1814
        %v1816 = vpack.c.bf16 %v1815, %v1815
        %v1817 = vpack.c.bf16 %v1120, %v1120
        %v1819 = vsel %vm1212, %v1816, 0
        %v1822 = vsel %vm1229, %v1817, 0
        %1824 = vmatprep.subr.bf16.mxu0 0
        %1825 = vmatpush1.bf16.msra.mxu0 0
        %1826 = vmatprep.subr.bf16.mxu0 0
        %1827 = vmatpush1.bf16.msra.mxu0 0
        %1828 = vmatprep.subr.bf16.mxu0 0
        %1829 = vmatpush1.bf16.msra.mxu0 0
        %1830 = vmatprep.subr.bf16.mxu0 0
        %1831 = vmatpush1.bf16.msra.mxu0 0
        %1832 = vmatprep.subr.bf16.mxu0 0
        %1833 = vmatpush1.bf16.msra.mxu0 0
        %1834 = vmatprep.subr.bf16.mxu0 0
        %1835 = vmatpush1.bf16.msra.mxu0 0
        %1836 = vmatprep.subr.bf16.mxu0 0
        %1837 = vmatpush1.bf16.msra.mxu0 0
        %1838 = vmatprep.subr.bf16.mxu0 0
        %1839 = vmatpush1.bf16.msra.mxu0 %v1822
        %1840 = vmatprep.subr.bf16.mxu0 0
        %1841 = vmatpush2.bf16.msra.mxu0 0
        %1842 = vmatprep.subr.bf16.mxu0 0
        %1843 = vmatpush2.bf16.msra.mxu0 0
        %1844 = vmatprep.subr.bf16.mxu0 0
        %1845 = vmatpush2.bf16.msra.mxu0 0
        %1846 = vmatprep.subr.bf16.mxu0 0
        %1847 = vmatpush2.bf16.msra.mxu0 0
        %1848 = vmatprep.subr.bf16.mxu0 0
        %1849 = vmatpush2.bf16.msra.mxu0 0
        %1850 = vmatprep.subr.bf16.mxu0 0
        %1851 = vmatpush2.bf16.msra.mxu0 0
        %1852 = vmatprep.subr.bf16.mxu0 0
        %1853 = vmatpush2.bf16.msra.mxu0 0
        %1854 = vmatprep.subr.bf16.mxu0 0
        %1855 = vmatpush2.bf16.msra.mxu0 0
        %1856 = vmatprep.mubr.bf16.mxu0 0
        %1857 = vmatmul.mubr.bf16.gmra.mxu0 %v1819
        %v1858 = vpop.f32.mrf.mxu0
        %v1859 = vadd.f32 0.0, %v1858
        %v1860 = vpop.f32.mrf.mxu0
        %v1861 = vpop.f32.mrf.mxu0
        %v1862 = vpop.f32.mrf.mxu0
        %1863 = vdwg.mxu0
        %1864 = vst.msk [vmem:[#allocation3 + $0x8] sm:$0xff] %vm1168, %v1859
        %1866 = vrot.lane.b32.xlu0 %v1080, 96
        %v1867 = vpop.permute.xlu0 %1866
        %1869 = vxpose.xlu0.b32.start [1/16] %v1867, 128
        %1870 = vxpose.xlu0.b32.cont [2/16] 0.0, 128
        %1871 = vxpose.xlu0.b32.cont [3/16] 0.0, 128
        %1872 = vxpose.xlu0.b32.cont [4/16] 0.0, 128
        %1873 = vxpose.xlu0.b32.cont [5/16] 0.0, 128
        %1874 = vxpose.xlu0.b32.cont [6/16] 0.0, 128
        %1875 = vxpose.xlu0.b32.cont [7/16] 0.0, 128
        %1876 = vxpose.xlu0.b32.cont [8/16] 0.0, 128
        %1877 = vxpose.xlu0.b32.cont [9/16] 0.0, 128
        %1878 = vxpose.xlu0.b32.cont [10/16] 0.0, 128
        %1879 = vxpose.xlu0.b32.cont [11/16] 0.0, 128
        %1880 = vxpose.xlu0.b32.cont [12/16] 0.0, 128
        %1881 = vxpose.xlu0.b32.cont [13/16] 0.0, 128
        %1882 = vxpose.xlu0.b32.cont [14/16] 0.0, 128
        %1883 = vxpose.xlu0.b32.cont [15/16] 0.0, 128
        %1884 = vxpose.xlu0.b32.end [16/16] 0.0, 128
        %v1885 = vpop.trf.xlu0
        %v1886 = vpop.trf.xlu0
        %v1887 = vpop.trf.xlu0
        %v1888 = vpop.trf.xlu0
        %v1889 = vpop.trf.xlu0
        %v1890 = vpop.trf.xlu0
        %v1891 = vpop.trf.xlu0
        %v1892 = vpop.trf.xlu0
        %v1893 = vpop.trf.xlu0
        %v1894 = vpop.trf.xlu0
        %v1895 = vpop.trf.xlu0
        %v1896 = vpop.trf.xlu0
        %v1897 = vpop.trf.xlu0
        %v1898 = vpop.trf.xlu0
        %v1899 = vpop.trf.xlu0
        %v1900 = vpop.trf.xlu0
        %v1901 = vpack.c.bf16 %v1886, %v1885
        %v1902 = vpack.c.bf16 %v1888, %v1887
        %1904 = vrot.lane.b32.xlu0 %v1721, 96
        %v1905 = vpop.permute.xlu0 %1904
        %v1907 = vsel %vm1168, %v1905, 0
        %1909 = vmatprep.subr.bf16.mxu0 0
        %1910 = vmatpush1.bf16.msra.mxu0 0
        %1911 = vmatprep.subr.bf16.mxu0 0
        %1912 = vmatpush1.bf16.msra.mxu0 0
        %1913 = vmatprep.subr.bf16.mxu0 0
        %1914 = vmatpush1.bf16.msra.mxu0 0
        %1915 = vmatprep.subr.bf16.mxu0 0
        %1916 = vmatpush1.bf16.msra.mxu0 0
        %1917 = vmatprep.subr.bf16.mxu0 0
        %1918 = vmatpush1.bf16.msra.mxu0 0
        %1919 = vmatprep.subr.bf16.mxu0 0
        %1920 = vmatpush1.bf16.msra.mxu0 0
        %1921 = vmatprep.subr.bf16.mxu0 0
        %1922 = vmatpush1.bf16.msra.mxu0 %v1902
        %1923 = vmatprep.subr.bf16.mxu0 0
        %1924 = vmatpush1.bf16.msra.mxu0 %v1901
        %1925 = vmatprep.subr.bf16.mxu0 0
        %1926 = vmatpush2.bf16.msra.mxu0 0
        %1927 = vmatprep.subr.bf16.mxu0 0
        %1928 = vmatpush2.bf16.msra.mxu0 0
        %1929 = vmatprep.subr.bf16.mxu0 0
        %1930 = vmatpush2.bf16.msra.mxu0 0
        %1931 = vmatprep.subr.bf16.mxu0 0
        %1932 = vmatpush2.bf16.msra.mxu0 0
        %1933 = vmatprep.subr.bf16.mxu0 0
        %1934 = vmatpush2.bf16.msra.mxu0 0
        %1935 = vmatprep.subr.bf16.mxu0 0
        %1936 = vmatpush2.bf16.msra.mxu0 0
        %1937 = vmatprep.subr.bf16.mxu0 0
        %1938 = vmatpush2.bf16.msra.mxu0 0
        %1939 = vmatprep.subr.bf16.mxu0 0
        %1940 = vmatpush2.bf16.msra.mxu0 0
        %1941 = vmatprep.mubr.bf16.mxu0 0
        %1942 = vmatmul.mubr.bf16.gmra.mxu0 %v1907
        %v1943 = vpop.f32.mrf.mxu0
        %v1944 = vadd.f32 %v1760, %v1943
        %v1945 = vpop.f32.mrf.mxu0
        %v1946 = vpop.f32.mrf.mxu0
        %v1947 = vpop.f32.mrf.mxu0
        %1948 = vdwg.mxu0
        %v1949 = vsel %vm1212, %v1944, -inf
        %1950 = vmax.xlane.f32.xlu0 %v1949
        %v1951 = vpop.xlane.xlu0 %1950
        %v1952 = vsub.f32 %v1944, %v1951
        %v1953 = vmul.f32 %v1952, 1.442695
        %v1954 = vpow.pop %v1953
        %v1955 = vsel %vm1212, %v1954, 0.0
        %1956 = vadd.xlane.f32.xlu0 %v1955
        %v1957 = vpop.xlane.xlu0 %1956
        %v1958 = vrcp.pop %v1957
        %v1959 = vmul.f32 %v1954, %v1958
        %v1960 = vpack.c.bf16 %v1959, %v1959
        %1962 = vrot.lane.b32.xlu0 %v1817, 96
        %v1963 = vpop.permute.xlu0 %1962
        %v1965 = vsel %vm1212, %v1960, 0
        %v1968 = vsel %vm1229, %v1963, 0
        %1970 = vmatprep.subr.bf16.mxu0 0
        %1971 = vmatpush1.bf16.msra.mxu0 0
        %1972 = vmatprep.subr.bf16.mxu0 0
        %1973 = vmatpush1.bf16.msra.mxu0 0
        %1974 = vmatprep.subr.bf16.mxu0 0
        %1975 = vmatpush1.bf16.msra.mxu0 0
        %1976 = vmatprep.subr.bf16.mxu0 0
        %1977 = vmatpush1.bf16.msra.mxu0 0
        %1978 = vmatprep.subr.bf16.mxu0 0
        %1979 = vmatpush1.bf16.msra.mxu0 0
        %1980 = vmatprep.subr.bf16.mxu0 0
        %1981 = vmatpush1.bf16.msra.mxu0 0
        %1982 = vmatprep.subr.bf16.mxu0 0
        %1983 = vmatpush1.bf16.msra.mxu0 0
        %1984 = vmatprep.subr.bf16.mxu0 0
        %1985 = vmatpush1.bf16.msra.mxu0 %v1968
        %1986 = vmatprep.subr.bf16.mxu0 0
        %1987 = vmatpush2.bf16.msra.mxu0 0
        %1988 = vmatprep.subr.bf16.mxu0 0
        %1989 = vmatpush2.bf16.msra.mxu0 0
        %1990 = vmatprep.subr.bf16.mxu0 0
        %1991 = vmatpush2.bf16.msra.mxu0 0
        %1992 = vmatprep.subr.bf16.mxu0 0
        %1993 = vmatpush2.bf16.msra.mxu0 0
        %1994 = vmatprep.subr.bf16.mxu0 0
        %1995 = vmatpush2.bf16.msra.mxu0 0
        %1996 = vmatprep.subr.bf16.mxu0 0
        %1997 = vmatpush2.bf16.msra.mxu0 0
        %1998 = vmatprep.subr.bf16.mxu0 0
        %1999 = vmatpush2.bf16.msra.mxu0 0
        %2000 = vmatprep.subr.bf16.mxu0 0
        %2001 = vmatpush2.bf16.msra.mxu0 0
        %2002 = vmatprep.mubr.bf16.mxu0 0
        %2003 = vmatmul.mubr.bf16.gmra.mxu0 %v1965
        %v2004 = vpop.f32.mrf.mxu0
        %v2005 = vadd.f32 0.0, %v2004
        %v2006 = vpop.f32.mrf.mxu0
        %v2007 = vpop.f32.mrf.mxu0
        %v2008 = vpop.f32.mrf.mxu0
        %2009 = vdwg.mxu0
        %2011 = vrot.lane.b32.xlu0 %v2005, 32
        %v2012 = vpop.permute.xlu0 %2011
        %2014 = vst.msk [vmem:[#allocation3 + $0x8] sm:$0xff] %vm1423, %v2012
        %2015 = vrot.lane.b32.xlu0 %v1080, 64
        %v2016 = vpop.permute.xlu0 %2015
        %2018 = vxpose.xlu0.b32.start [1/16] %v2016, 128
        %2019 = vxpose.xlu0.b32.cont [2/16] 0.0, 128
        %2020 = vxpose.xlu0.b32.cont [3/16] 0.0, 128
        %2021 = vxpose.xlu0.b32.cont [4/16] 0.0, 128
        %2022 = vxpose.xlu0.b32.cont [5/16] 0.0, 128
        %2023 = vxpose.xlu0.b32.cont [6/16] 0.0, 128
        %2024 = vxpose.xlu0.b32.cont [7/16] 0.0, 128
        %2025 = vxpose.xlu0.b32.cont [8/16] 0.0, 128
        %2026 = vxpose.xlu0.b32.cont [9/16] 0.0, 128
        %2027 = vxpose.xlu0.b32.cont [10/16] 0.0, 128
        %2028 = vxpose.xlu0.b32.cont [11/16] 0.0, 128
        %2029 = vxpose.xlu0.b32.cont [12/16] 0.0, 128
        %2030 = vxpose.xlu0.b32.cont [13/16] 0.0, 128
        %2031 = vxpose.xlu0.b32.cont [14/16] 0.0, 128
        %2032 = vxpose.xlu0.b32.cont [15/16] 0.0, 128
        %2033 = vxpose.xlu0.b32.end [16/16] 0.0, 128
        %v2034 = vpop.trf.xlu0
        %v2035 = vpop.trf.xlu0
        %v2036 = vpop.trf.xlu0
        %v2037 = vpop.trf.xlu0
        %v2038 = vpop.trf.xlu0
        %v2039 = vpop.trf.xlu0
        %v2040 = vpop.trf.xlu0
        %v2041 = vpop.trf.xlu0
        %v2042 = vpop.trf.xlu0
        %v2043 = vpop.trf.xlu0
        %v2044 = vpop.trf.xlu0
        %v2045 = vpop.trf.xlu0
        %v2046 = vpop.trf.xlu0
        %v2047 = vpop.trf.xlu0
        %v2048 = vpop.trf.xlu0
        %v2049 = vpop.trf.xlu0
        %v2050 = vpack.c.bf16 %v2035, %v2034
        %v2051 = vpack.c.bf16 %v2037, %v2036
        %2052 = vrot.lane.b32.xlu0 %v1721, 64
        %v2053 = vpop.permute.xlu0 %2052
        %v2055 = vsel %vm1168, %v2053, 0
        %2057 = vmatprep.subr.bf16.mxu0 0
        %2058 = vmatpush1.bf16.msra.mxu0 0
        %2059 = vmatprep.subr.bf16.mxu0 0
        %2060 = vmatpush1.bf16.msra.mxu0 0
        %2061 = vmatprep.subr.bf16.mxu0 0
        %2062 = vmatpush1.bf16.msra.mxu0 0
        %2063 = vmatprep.subr.bf16.mxu0 0
        %2064 = vmatpush1.bf16.msra.mxu0 0
        %2065 = vmatprep.subr.bf16.mxu0 0
        %2066 = vmatpush1.bf16.msra.mxu0 0
        %2067 = vmatprep.subr.bf16.mxu0 0
        %2068 = vmatpush1.bf16.msra.mxu0 0
        %2069 = vmatprep.subr.bf16.mxu0 0
        %2070 = vmatpush1.bf16.msra.mxu0 %v2051
        %2071 = vmatprep.subr.bf16.mxu0 0
        %2072 = vmatpush1.bf16.msra.mxu0 %v2050
        %2073 = vmatprep.subr.bf16.mxu0 0
        %2074 = vmatpush2.bf16.msra.mxu0 0
        %2075 = vmatprep.subr.bf16.mxu0 0
        %2076 = vmatpush2.bf16.msra.mxu0 0
        %2077 = vmatprep.subr.bf16.mxu0 0
        %2078 = vmatpush2.bf16.msra.mxu0 0
        %2079 = vmatprep.subr.bf16.mxu0 0
        %2080 = vmatpush2.bf16.msra.mxu0 0
        %2081 = vmatprep.subr.bf16.mxu0 0
        %2082 = vmatpush2.bf16.msra.mxu0 0
        %2083 = vmatprep.subr.bf16.mxu0 0
        %2084 = vmatpush2.bf16.msra.mxu0 0
        %2085 = vmatprep.subr.bf16.mxu0 0
        %2086 = vmatpush2.bf16.msra.mxu0 0
        %2087 = vmatprep.subr.bf16.mxu0 0
        %2088 = vmatpush2.bf16.msra.mxu0 0
        %2089 = vmatprep.mubr.bf16.mxu0 0
        %2090 = vmatmul.mubr.bf16.gmra.mxu0 %v2055
        %v2091 = vpop.f32.mrf.mxu0
        %v2092 = vadd.f32 %v1760, %v2091
        %v2093 = vpop.f32.mrf.mxu0
        %v2094 = vpop.f32.mrf.mxu0
        %v2095 = vpop.f32.mrf.mxu0
        %2096 = vdwg.mxu0
        %v2097 = vsel %vm1212, %v2092, -inf
        %2098 = vmax.xlane.f32.xlu0 %v2097
        %v2099 = vpop.xlane.xlu0 %2098
        %v2100 = vsub.f32 %v2092, %v2099
        %v2101 = vmul.f32 %v2100, 1.442695
        %v2102 = vpow.pop %v2101
        %v2103 = vsel %vm1212, %v2102, 0.0
        %2104 = vadd.xlane.f32.xlu0 %v2103
        %v2105 = vpop.xlane.xlu0 %2104
        %v2106 = vrcp.pop %v2105
        %v2107 = vmul.f32 %v2102, %v2106
        %v2108 = vpack.c.bf16 %v2107, %v2107
        %2109 = vrot.lane.b32.xlu0 %v1817, 64
        %v2110 = vpop.permute.xlu0 %2109
        %v2112 = vsel %vm1212, %v2108, 0
        %v2115 = vsel %vm1229, %v2110, 0
        %2117 = vmatprep.subr.bf16.mxu0 0
        %2118 = vmatpush1.bf16.msra.mxu0 0
        %2119 = vmatprep.subr.bf16.mxu0 0
        %2120 = vmatpush1.bf16.msra.mxu0 0
        %2121 = vmatprep.subr.bf16.mxu0 0
        %2122 = vmatpush1.bf16.msra.mxu0 0
        %2123 = vmatprep.subr.bf16.mxu0 0
        %2124 = vmatpush1.bf16.msra.mxu0 0
        %2125 = vmatprep.subr.bf16.mxu0 0
        %2126 = vmatpush1.bf16.msra.mxu0 0
        %2127 = vmatprep.subr.bf16.mxu0 0
        %2128 = vmatpush1.bf16.msra.mxu0 0
        %2129 = vmatprep.subr.bf16.mxu0 0
        %2130 = vmatpush1.bf16.msra.mxu0 0
        %2131 = vmatprep.subr.bf16.mxu0 0
        %2132 = vmatpush1.bf16.msra.mxu0 %v2115
        %2133 = vmatprep.subr.bf16.mxu0 0
        %2134 = vmatpush2.bf16.msra.mxu0 0
        %2135 = vmatprep.subr.bf16.mxu0 0
        %2136 = vmatpush2.bf16.msra.mxu0 0
        %2137 = vmatprep.subr.bf16.mxu0 0
        %2138 = vmatpush2.bf16.msra.mxu0 0
        %2139 = vmatprep.subr.bf16.mxu0 0
        %2140 = vmatpush2.bf16.msra.mxu0 0
        %2141 = vmatprep.subr.bf16.mxu0 0
        %2142 = vmatpush2.bf16.msra.mxu0 0
        %2143 = vmatprep.subr.bf16.mxu0 0
        %2144 = vmatpush2.bf16.msra.mxu0 0
        %2145 = vmatprep.subr.bf16.mxu0 0
        %2146 = vmatpush2.bf16.msra.mxu0 0
        %2147 = vmatprep.subr.bf16.mxu0 0
        %2148 = vmatpush2.bf16.msra.mxu0 0
        %2149 = vmatprep.mubr.bf16.mxu0 0
        %2150 = vmatmul.mubr.bf16.gmra.mxu0 %v2112
        %v2151 = vpop.f32.mrf.mxu0
        %v2152 = vadd.f32 0.0, %v2151
        %v2153 = vpop.f32.mrf.mxu0
        %v2154 = vpop.f32.mrf.mxu0
        %v2155 = vpop.f32.mrf.mxu0
        %2156 = vdwg.mxu0
        %2158 = vrot.lane.b32.xlu0 %v2152, 64
        %v2159 = vpop.permute.xlu0 %2158
        %2161 = vst.msk [vmem:[#allocation3 + $0x8] sm:$0xff] %vm1571, %v2159
        %2162 = vrot.lane.b32.xlu0 %v1080, 32
        %v2163 = vpop.permute.xlu0 %2162
        %2165 = vxpose.xlu0.b32.start [1/16] %v2163, 128
        %2166 = vxpose.xlu0.b32.cont [2/16] 0.0, 128
        %2167 = vxpose.xlu0.b32.cont [3/16] 0.0, 128
        %2168 = vxpose.xlu0.b32.cont [4/16] 0.0, 128
        %2169 = vxpose.xlu0.b32.cont [5/16] 0.0, 128
        %2170 = vxpose.xlu0.b32.cont [6/16] 0.0, 128
        %2171 = vxpose.xlu0.b32.cont [7/16] 0.0, 128
        %2172 = vxpose.xlu0.b32.cont [8/16] 0.0, 128
        %2173 = vxpose.xlu0.b32.cont [9/16] 0.0, 128
        %2174 = vxpose.xlu0.b32.cont [10/16] 0.0, 128
        %2175 = vxpose.xlu0.b32.cont [11/16] 0.0, 128
        %2176 = vxpose.xlu0.b32.cont [12/16] 0.0, 128
        %2177 = vxpose.xlu0.b32.cont [13/16] 0.0, 128
        %2178 = vxpose.xlu0.b32.cont [14/16] 0.0, 128
        %2179 = vxpose.xlu0.b32.cont [15/16] 0.0, 128
        %2180 = vxpose.xlu0.b32.end [16/16] 0.0, 128
        %v2181 = vpop.trf.xlu0
        %v2182 = vpop.trf.xlu0
        %v2183 = vpop.trf.xlu0
        %v2184 = vpop.trf.xlu0
        %v2185 = vpop.trf.xlu0
        %v2186 = vpop.trf.xlu0
        %v2187 = vpop.trf.xlu0
        %v2188 = vpop.trf.xlu0
        %v2189 = vpop.trf.xlu0
        %v2190 = vpop.trf.xlu0
        %v2191 = vpop.trf.xlu0
        %v2192 = vpop.trf.xlu0
        %v2193 = vpop.trf.xlu0
        %v2194 = vpop.trf.xlu0
        %v2195 = vpop.trf.xlu0
        %v2196 = vpop.trf.xlu0
        %v2197 = vpack.c.bf16 %v2182, %v2181
        %v2198 = vpack.c.bf16 %v2184, %v2183
        %2199 = vrot.lane.b32.xlu0 %v1721, 32
        %v2200 = vpop.permute.xlu0 %2199
        %v2202 = vsel %vm1168, %v2200, 0
        %2204 = vmatprep.subr.bf16.mxu0 0
        %2205 = vmatpush1.bf16.msra.mxu0 0
        %2206 = vmatprep.subr.bf16.mxu0 0
        %2207 = vmatpush1.bf16.msra.mxu0 0
        %2208 = vmatprep.subr.bf16.mxu0 0
        %2209 = vmatpush1.bf16.msra.mxu0 0
        %2210 = vmatprep.subr.bf16.mxu0 0
        %2211 = vmatpush1.bf16.msra.mxu0 0
        %2212 = vmatprep.subr.bf16.mxu0 0
        %2213 = vmatpush1.bf16.msra.mxu0 0
        %2214 = vmatprep.subr.bf16.mxu0 0
        %2215 = vmatpush1.bf16.msra.mxu0 0
        %2216 = vmatprep.subr.bf16.mxu0 0
        %2217 = vmatpush1.bf16.msra.mxu0 %v2198
        %2218 = vmatprep.subr.bf16.mxu0 0
        %2219 = vmatpush1.bf16.msra.mxu0 %v2197
        %2220 = vmatprep.subr.bf16.mxu0 0
        %2221 = vmatpush2.bf16.msra.mxu0 0
        %2222 = vmatprep.subr.bf16.mxu0 0
        %2223 = vmatpush2.bf16.msra.mxu0 0
        %2224 = vmatprep.subr.bf16.mxu0 0
        %2225 = vmatpush2.bf16.msra.mxu0 0
        %2226 = vmatprep.subr.bf16.mxu0 0
        %2227 = vmatpush2.bf16.msra.mxu0 0
        %2228 = vmatprep.subr.bf16.mxu0 0
        %2229 = vmatpush2.bf16.msra.mxu0 0
        %2230 = vmatprep.subr.bf16.mxu0 0
        %2231 = vmatpush2.bf16.msra.mxu0 0
        %2232 = vmatprep.subr.bf16.mxu0 0
        %2233 = vmatpush2.bf16.msra.mxu0 0
        %2234 = vmatprep.subr.bf16.mxu0 0
        %2235 = vmatpush2.bf16.msra.mxu0 0
        %2236 = vmatprep.mubr.bf16.mxu0 0
        %2237 = vmatmul.mubr.bf16.gmra.mxu0 %v2202
        %v2238 = vpop.f32.mrf.mxu0
        %v2239 = vadd.f32 %v1760, %v2238
        %v2240 = vpop.f32.mrf.mxu0
        %v2241 = vpop.f32.mrf.mxu0
        %v2242 = vpop.f32.mrf.mxu0
        %2243 = vdwg.mxu0
        %v2244 = vsel %vm1212, %v2239, -inf
        %2245 = vmax.xlane.f32.xlu0 %v2244
        %v2246 = vpop.xlane.xlu0 %2245
        %v2247 = vsub.f32 %v2239, %v2246
        %v2248 = vmul.f32 %v2247, 1.442695
        %v2249 = vpow.pop %v2248
        %v2250 = vsel %vm1212, %v2249, 0.0
        %2251 = vadd.xlane.f32.xlu0 %v2250
        %v2252 = vpop.xlane.xlu0 %2251
        %v2253 = vrcp.pop %v2252
        %v2254 = vmul.f32 %v2249, %v2253
        %v2255 = vpack.c.bf16 %v2254, %v2254
        %2256 = vrot.lane.b32.xlu0 %v1817, 32
        %v2257 = vpop.permute.xlu0 %2256
        %v2259 = vsel %vm1212, %v2255, 0
        %v2262 = vsel %vm1229, %v2257, 0
        %2264 = vmatprep.subr.bf16.mxu0 0
        %2265 = vmatpush1.bf16.msra.mxu0 0
        %2266 = vmatprep.subr.bf16.mxu0 0
        %2267 = vmatpush1.bf16.msra.mxu0 0
        %2268 = vmatprep.subr.bf16.mxu0 0
        %2269 = vmatpush1.bf16.msra.mxu0 0
        %2270 = vmatprep.subr.bf16.mxu0 0
        %2271 = vmatpush1.bf16.msra.mxu0 0
        %2272 = vmatprep.subr.bf16.mxu0 0
        %2273 = vmatpush1.bf16.msra.mxu0 0
        %2274 = vmatprep.subr.bf16.mxu0 0
        %2275 = vmatpush1.bf16.msra.mxu0 0
        %2276 = vmatprep.subr.bf16.mxu0 0
        %2277 = vmatpush1.bf16.msra.mxu0 0
        %2278 = vmatprep.subr.bf16.mxu0 0
        %2279 = vmatpush1.bf16.msra.mxu0 %v2262
        %2280 = vmatprep.subr.bf16.mxu0 0
        %2281 = vmatpush2.bf16.msra.mxu0 0
        %2282 = vmatprep.subr.bf16.mxu0 0
        %2283 = vmatpush2.bf16.msra.mxu0 0
        %2284 = vmatprep.subr.bf16.mxu0 0
        %2285 = vmatpush2.bf16.msra.mxu0 0
        %2286 = vmatprep.subr.bf16.mxu0 0
        %2287 = vmatpush2.bf16.msra.mxu0 0
        %2288 = vmatprep.subr.bf16.mxu0 0
        %2289 = vmatpush2.bf16.msra.mxu0 0
        %2290 = vmatprep.subr.bf16.mxu0 0
        %2291 = vmatpush2.bf16.msra.mxu0 0
        %2292 = vmatprep.subr.bf16.mxu0 0
        %2293 = vmatpush2.bf16.msra.mxu0 0
        %2294 = vmatprep.subr.bf16.mxu0 0
        %2295 = vmatpush2.bf16.msra.mxu0 0
        %2296 = vmatprep.mubr.bf16.mxu0 0
        %2297 = vmatmul.mubr.bf16.gmra.mxu0 %v2259
        %v2298 = vpop.f32.mrf.mxu0
        %v2299 = vadd.f32 0.0, %v2298
        %v2300 = vpop.f32.mrf.mxu0
        %v2301 = vpop.f32.mrf.mxu0
        %v2302 = vpop.f32.mrf.mxu0
        %2303 = vdwg.mxu0
        %2305 = vrot.lane.b32.xlu0 %v2299, 96
        %v2306 = vpop.permute.xlu0 %2305
        %2308 = vst.msk [vmem:[#allocation3 + $0x8] sm:$0xff] %vm1719, %v2306
        %v2309 = vld [vmem:[#allocation3] sm:$0xff]
        %v2310 = vld [vmem:[#allocation3 + $0x8] sm:$0xff]
        %v2311 = vpack.c.bf16 %v2310, %v2309
        %v2312 = vld [vmem:[%s680] sm:$0xf]
        %v2313 = vld [vmem:[%s680 + $0x4] sm:$0xf]
        %v2314 = vld [vmem:[%s680 + $0x8] sm:$0xf]
        %v2315 = vld [vmem:[%s680 + $0xc] sm:$0xf]
        %v2316 = vld [vmem:[%s680 + $0x10] sm:$0xf]
        %v2317 = vld [vmem:[%s680 + $0x14] sm:$0xf]
        %v2318 = vld [vmem:[%s680 + $0x18] sm:$0xf]
        %v2319 = vld [vmem:[%s680 + $0x1c] sm:$0xf]
        %v2320 = vld [vmem:[%s680 + $0x20] sm:$0xf]
        %v2321 = vld [vmem:[%s680 + $0x24] sm:$0xf]
        %v2322 = vld [vmem:[%s680 + $0x28] sm:$0xf]
        %v2323 = vld [vmem:[%s680 + $0x2c] sm:$0xf]
        %v2324 = vld [vmem:[%s680 + $0x30] sm:$0xf]
        %v2325 = vld [vmem:[%s680 + $0x34] sm:$0xf]
        %v2326 = vld [vmem:[%s680 + $0x38] sm:$0xf]
        %v2327 = vld [vmem:[%s680 + $0x3c] sm:$0xf]
        %v2328 = vld [vmem:[%s789] sm:$0x1]
        %v2330 = vlaneseq
        %v2331 = vshrl.u32 %v2330, 7
        %v2332 = vsub.s32 0, %v2331
        %v2333 = vrot.slane %v2328, %v2332
        %v2351 = vunpack.c.l.b16 %v2312
        %v2352 = vunpack.c.l.b16 %v2313
        %v2353 = vunpack.c.l.b16 %v2314
        %v2354 = vunpack.c.l.b16 %v2315
        %v2355 = vunpack.c.l.b16 %v2316
        %v2356 = vunpack.c.l.b16 %v2317
        %v2357 = vunpack.c.l.b16 %v2318
        %v2358 = vunpack.c.l.b16 %v2319
        %v2359 = vunpack.c.l.b16 %v2320
        %v2360 = vunpack.c.l.b16 %v2321
        %v2361 = vunpack.c.l.b16 %v2322
        %v2362 = vunpack.c.l.b16 %v2323
        %v2363 = vunpack.c.l.b16 %v2324
        %v2364 = vunpack.c.l.b16 %v2325
        %v2365 = vunpack.c.l.b16 %v2326
        %v2366 = vunpack.c.l.b16 %v2327
        %v2367 = vpack.c.b16 %v2352, %v2351
        %v2368 = vpack.c.b16 %v2354, %v2353
        %v2369 = vpack.c.b16 %v2356, %v2355
        %v2370 = vpack.c.b16 %v2358, %v2357
        %v2371 = vpack.c.b16 %v2360, %v2359
        %v2372 = vpack.c.b16 %v2362, %v2361
        %v2373 = vpack.c.b16 %v2364, %v2363
        %v2374 = vpack.c.b16 %v2366, %v2365
        %2383 = vmatprep.subr.bf16.mxu0 0
        %2384 = vmatpush1.bf16.msra.mxu0 %v2374
        %2385 = vmatprep.subr.bf16.mxu0 0
        %2386 = vmatpush1.bf16.msra.mxu0 %v2373
        %2387 = vmatprep.subr.bf16.mxu0 0
        %2388 = vmatpush1.bf16.msra.mxu0 %v2372
        %2389 = vmatprep.subr.bf16.mxu0 0
        %2390 = vmatpush1.bf16.msra.mxu0 %v2371
        %2391 = vmatprep.subr.bf16.mxu0 0
        %2392 = vmatpush1.bf16.msra.mxu0 %v2370
        %2393 = vmatprep.subr.bf16.mxu0 0
        %2394 = vmatpush1.bf16.msra.mxu0 %v2369
        %2395 = vmatprep.subr.bf16.mxu0 0
        %2396 = vmatpush1.bf16.msra.mxu0 %v2368
        %2397 = vmatprep.subr.bf16.mxu0 0
        %2398 = vmatpush1.bf16.msra.mxu0 %v2367
        %2399 = vmatprep.subr.bf16.mxu0 0
        %2400 = vmatpush2.bf16.msra.mxu0 0
        %2401 = vmatprep.subr.bf16.mxu0 0
        %2402 = vmatpush2.bf16.msra.mxu0 0
        %2403 = vmatprep.subr.bf16.mxu0 0
        %2404 = vmatpush2.bf16.msra.mxu0 0
        %2405 = vmatprep.subr.bf16.mxu0 0
        %2406 = vmatpush2.bf16.msra.mxu0 0
        %2407 = vmatprep.subr.bf16.mxu0 0
        %2408 = vmatpush2.bf16.msra.mxu0 0
        %2409 = vmatprep.subr.bf16.mxu0 0
        %2410 = vmatpush2.bf16.msra.mxu0 0
        %2411 = vmatprep.subr.bf16.mxu0 0
        %2412 = vmatpush2.bf16.msra.mxu0 0
        %2413 = vmatprep.subr.bf16.mxu0 0
        %2414 = vmatpush2.bf16.msra.mxu0 0
        %2415 = vmatprep.mubr.bf16.mxu0 0
        %2416 = vmatmul.mubr.bf16.gmra.mxu0 %v2311
        %v2417 = vpop.f32.mrf.mxu0
        %v2418 = vadd.f32 %v2333, %v2417
        %v2419 = vpop.f32.mrf.mxu0
        %v2420 = vpop.f32.mrf.mxu0
        %v2421 = vadd.f32 %v2333, %v2420
        %v2422 = vpop.f32.mrf.mxu0
        %2423 = vdwg.mxu0
        %v2424 = vadd.f32 %v859, %v2418
        %v2425 = vadd.f32 %v860, %v2421
        %v2426 = vld [vmem:[%s792] sm:$0x1]
        %v2427 = vld [vmem:[%s795] sm:$0x1]
        %2428 = vadd.xlane.f32.xlu0 %v2424
        %v2429 = vpop.xlane.xlu0 %2428
        %2430 = vadd.xlane.f32.xlu0 %v2425
        %v2431 = vpop.xlane.xlu0 %2430
        %v2432 = vrcp.pop 128.0
        %v2433 = vmul.f32 %v2429, %v2432
        %v2434 = vmul.f32 %v2431, %v2432
        %v2435 = vsub.f32 %v2424, %v2433
        %v2436 = vsub.f32 %v2425, %v2434
        %v2437 = vmul.f32 %v2435, %v2435
        %v2438 = vmul.f32 %v2436, %v2436
        %2439 = vadd.xlane.f32.xlu0 %v2437
        %v2440 = vpop.xlane.xlu0 %2439
        %2441 = vadd.xlane.f32.xlu0 %v2438
        %v2442 = vpop.xlane.xlu0 %2441
        %v2443 = vmul.f32 %v2440, %v2432
        %v2444 = vmul.f32 %v2442, %v2432
        %v2445 = vadd.f32 %v2443, 1e-12
        %v2446 = vadd.f32 %v2444, 1e-12
        %v2447 = vrsqrt.pop %v2445
        %v2448 = vrsqrt.pop %v2446
        %v2449 = vmul.f32 %v2435, %v2447
        %v2450 = vmul.f32 %v2436, %v2448
        %v2452 = vlaneseq
        %v2453 = vshrl.u32 %v2452, 7
        %v2454 = vsub.s32 0, %v2453
        %v2455 = vrot.slane %v2426, %v2454
        %v2457 = vmul.f32 %v2449, %v2455
        %v2458 = vmul.f32 %v2450, %v2455
        %v2460 = vlaneseq
        %v2461 = vshrl.u32 %v2460, 7
        %v2462 = vsub.s32 0, %v2461
        %v2463 = vrot.slane %v2427, %v2462
        %v2465 = vadd.f32 %v2457, %v2463
        %v2466 = vadd.f32 %v2458, %v2463
        %v2467 = vpack.c.bf16 %v2466, %v2465
        %v2468 = vld [vmem:[%s689] sm:$0xff]
        %v2469 = vld [vmem:[%s689 + $0x8] sm:$0xff]
        %v2470 = vld [vmem:[%s689 + $0x10] sm:$0xff]
        %v2471 = vld [vmem:[%s689 + $0x18] sm:$0xff]
        %v2472 = vld [vmem:[%s689 + $0x20] sm:$0xff]
        %v2473 = vld [vmem:[%s689 + $0x28] sm:$0xff]
        %v2474 = vld [vmem:[%s689 + $0x30] sm:$0xff]
        %v2475 = vld [vmem:[%s689 + $0x38] sm:$0xff]
        %v2476 = vld [vmem:[%s689 + $0x40] sm:$0xff]
        %v2477 = vld [vmem:[%s689 + $0x48] sm:$0xff]
        %v2478 = vld [vmem:[%s689 + $0x50] sm:$0xff]
        %v2479 = vld [vmem:[%s689 + $0x58] sm:$0xff]
        %v2480 = vld [vmem:[%s689 + $0x60] sm:$0xff]
        %v2481 = vld [vmem:[%s689 + $0x68] sm:$0xff]
        %v2482 = vld [vmem:[%s689 + $0x70] sm:$0xff]
        %v2483 = vld [vmem:[%s689 + $0x78] sm:$0xff]
        %v2484 = vld [vmem:[%s799] sm:$0x3]
        %v2486 = vlaneseq
        %v2487 = vshrl.u32 %v2486, 7
        %v2488 = vsub.s32 0, %v2487
        %v2489 = vrot.slane %v2484, %v2488
        %v2490 = vlaneseq
        %v2491 = vshrl.u32 %v2490, 7
        %v2492 = vsub.s32 1, %v2491
        %v2493 = vrot.slane %v2484, %v2492
        %v2512 = vunpack.c.l.b16 %v2468
        %v2513 = vunpack.c.h.b16 %v2468
        %v2514 = vunpack.c.l.b16 %v2469
        %v2515 = vunpack.c.h.b16 %v2469
        %v2516 = vunpack.c.l.b16 %v2470
        %v2517 = vunpack.c.h.b16 %v2470
        %v2518 = vunpack.c.l.b16 %v2471
        %v2519 = vunpack.c.h.b16 %v2471
        %v2520 = vunpack.c.l.b16 %v2472
        %v2521 = vunpack.c.h.b16 %v2472
        %v2522 = vunpack.c.l.b16 %v2473
        %v2523 = vunpack.c.h.b16 %v2473
        %v2524 = vunpack.c.l.b16 %v2474
        %v2525 = vunpack.c.h.b16 %v2474
        %v2526 = vunpack.c.l.b16 %v2475
        %v2527 = vunpack.c.h.b16 %v2475
        %v2528 = vunpack.c.l.b16 %v2476
        %v2529 = vunpack.c.h.b16 %v2476
        %v2530 = vunpack.c.l.b16 %v2477
        %v2531 = vunpack.c.h.b16 %v2477
        %v2532 = vunpack.c.l.b16 %v2478
        %v2533 = vunpack.c.h.b16 %v2478
        %v2534 = vunpack.c.l.b16 %v2479
        %v2535 = vunpack.c.h.b16 %v2479
        %v2536 = vunpack.c.l.b16 %v2480
        %v2537 = vunpack.c.h.b16 %v2480
        %v2538 = vunpack.c.l.b16 %v2481
        %v2539 = vunpack.c.h.b16 %v2481
        %v2540 = vunpack.c.l.b16 %v2482
        %v2541 = vunpack.c.h.b16 %v2482
        %v2542 = vunpack.c.l.b16 %v2483
        %v2543 = vunpack.c.h.b16 %v2483
        %v2544 = vpack.c.b16 %v2514, %v2512
        %v2545 = vpack.c.b16 %v2515, %v2513
        %v2546 = vpack.c.b16 %v2518, %v2516
        %v2547 = vpack.c.b16 %v2519, %v2517
        %v2548 = vpack.c.b16 %v2522, %v2520
        %v2549 = vpack.c.b16 %v2523, %v2521
        %v2550 = vpack.c.b16 %v2526, %v2524
        %v2551 = vpack.c.b16 %v2527, %v2525
        %v2552 = vpack.c.b16 %v2530, %v2528
        %v2553 = vpack.c.b16 %v2531, %v2529
        %v2554 = vpack.c.b16 %v2534, %v2532
        %v2555 = vpack.c.b16 %v2535, %v2533
        %v2556 = vpack.c.b16 %v2538, %v2536
        %v2557 = vpack.c.b16 %v2539, %v2537
        %v2558 = vpack.c.b16 %v2542, %v2540
        %v2559 = vpack.c.b16 %v2543, %v2541
        %2576 = vmatprep.subr.bf16.mxu0 %v2559
        %2577 = vmatpush1.bf16.msra.mxu0 %v2558
        %2578 = vmatprep.subr.bf16.mxu0 %v2557
        %2579 = vmatpush1.bf16.msra.mxu0 %v2556
        %2580 = vmatprep.subr.bf16.mxu0 %v2555
        %2581 = vmatpush1.bf16.msra.mxu0 %v2554
        %2582 = vmatprep.subr.bf16.mxu0 %v2553
        %2583 = vmatpush1.bf16.msra.mxu0 %v2552
        %2584 = vmatprep.subr.bf16.mxu0 %v2551
        %2585 = vmatpush1.bf16.msra.mxu0 %v2550
        %2586 = vmatprep.subr.bf16.mxu0 %v2549
        %2587 = vmatpush1.bf16.msra.mxu0 %v2548
        %2588 = vmatprep.subr.bf16.mxu0 %v2547
        %2589 = vmatpush1.bf16.msra.mxu0 %v2546
        %2590 = vmatprep.subr.bf16.mxu0 %v2545
        %2591 = vmatpush1.bf16.msra.mxu0 %v2544
        %2592 = vmatprep.subr.bf16.mxu0 0
        %2593 = vmatpush2.bf16.msra.mxu0 0
        %2594 = vmatprep.subr.bf16.mxu0 0
        %2595 = vmatpush2.bf16.msra.mxu0 0
        %2596 = vmatprep.subr.bf16.mxu0 0
        %2597 = vmatpush2.bf16.msra.mxu0 0
        %2598 = vmatprep.subr.bf16.mxu0 0
        %2599 = vmatpush2.bf16.msra.mxu0 0
        %2600 = vmatprep.subr.bf16.mxu0 0
        %2601 = vmatpush2.bf16.msra.mxu0 0
        %2602 = vmatprep.subr.bf16.mxu0 0
        %2603 = vmatpush2.bf16.msra.mxu0 0
        %2604 = vmatprep.subr.bf16.mxu0 0
        %2605 = vmatpush2.bf16.msra.mxu0 0
        %2606 = vmatprep.subr.bf16.mxu0 0
        %2607 = vmatpush2.bf16.msra.mxu0 0
        %2608 = vmatprep.mubr.bf16.mxu0 0
        %2609 = vmatmul.mubr.bf16.gmra.mxu0 %v2467
        %v2610 = vpop.f32.mrf.mxu0
        %v2611 = vadd.f32 %v2489, %v2610
        %v2612 = vpop.f32.mrf.mxu0
        %v2613 = vadd.f32 %v2493, %v2612
        %v2614 = vpop.f32.mrf.mxu0
        %v2615 = vadd.f32 %v2489, %v2614
        %v2616 = vpop.f32.mrf.mxu0
        %v2617 = vadd.f32 %v2493, %v2616
        %2618 = vdwg.mxu0
        %v2619 = vmul.f32 %v2611, %v2611
        %v2620 = vmul.f32 %v2613, %v2613
        %v2621 = vmul.f32 %v2615, %v2615
        %v2622 = vmul.f32 %v2617, %v2617
        %v2623 = vmul.f32 %v2611, %v2619
        %v2624 = vmul.f32 %v2613, %v2620
        %v2625 = vmul.f32 %v2615, %v2621
        %v2626 = vmul.f32 %v2617, %v2622
        %v2627 = vmul.f32 %v2623, 0.044715
        %v2628 = vmul.f32 %v2624, 0.044715
        %v2629 = vmul.f32 %v2625, 0.044715
        %v2630 = vmul.f32 %v2626, 0.044715
        %v2631 = vadd.f32 %v2611, %v2627
        %v2632 = vadd.f32 %v2613, %v2628
        %v2633 = vadd.f32 %v2615, %v2629
        %v2634 = vadd.f32 %v2617, %v2630
        %v2635 = vmul.f32 %v2631, 0.7978846
        %v2636 = vmul.f32 %v2632, 0.7978846
        %v2637 = vmul.f32 %v2633, 0.7978846
        %v2638 = vmul.f32 %v2634, 0.7978846
        %v2639 = vtanh.pop %v2635
        %v2640 = vtanh.pop %v2636
        %v2641 = vtanh.pop %v2637
        %v2642 = vtanh.pop %v2638
        %v2643 = vadd.f32 %v2639, 1.0
        %v2644 = vadd.f32 %v2640, 1.0
        %v2645 = vadd.f32 %v2641, 1.0
        %v2646 = vadd.f32 %v2642, 1.0
        %v2647 = vmul.f32 %v2643, 0.5
        %v2648 = vmul.f32 %v2644, 0.5
        %v2649 = vmul.f32 %v2645, 0.5
        %v2650 = vmul.f32 %v2646, 0.5
        %v2651 = vmul.f32 %v2611, %v2647
        %v2652 = vmul.f32 %v2613, %v2648
        %v2653 = vmul.f32 %v2615, %v2649
        %v2654 = vmul.f32 %v2617, %v2650
        %v2655 = vpack.c.bf16 %v2653, %v2651
        %v2656 = vpack.c.bf16 %v2654, %v2652
        %v2657 = vld [vmem:[%s698] sm:$0xf]
        %v2658 = vld [vmem:[%s698 + $0x4] sm:$0xf]
        %v2659 = vld [vmem:[%s698 + $0x8] sm:$0xf]
        %v2660 = vld [vmem:[%s698 + $0xc] sm:$0xf]
        %v2661 = vld [vmem:[%s698 + $0x10] sm:$0xf]
        %v2662 = vld [vmem:[%s698 + $0x14] sm:$0xf]
        %v2663 = vld [vmem:[%s698 + $0x18] sm:$0xf]
        %v2664 = vld [vmem:[%s698 + $0x1c] sm:$0xf]
        %v2665 = vld [vmem:[%s698 + $0x20] sm:$0xf]
        %v2666 = vld [vmem:[%s698 + $0x24] sm:$0xf]
        %v2667 = vld [vmem:[%s698 + $0x28] sm:$0xf]
        %v2668 = vld [vmem:[%s698 + $0x2c] sm:$0xf]
        %v2669 = vld [vmem:[%s698 + $0x30] sm:$0xf]
        %v2670 = vld [vmem:[%s698 + $0x34] sm:$0xf]
        %v2671 = vld [vmem:[%s698 + $0x38] sm:$0xf]
        %v2672 = vld [vmem:[%s698 + $0x3c] sm:$0xf]
        %v2673 = vld [vmem:[%s698 + $0x40] sm:$0xf]
        %v2674 = vld [vmem:[%s698 + $0x44] sm:$0xf]
        %v2675 = vld [vmem:[%s698 + $0x48] sm:$0xf]
        %v2676 = vld [vmem:[%s698 + $0x4c] sm:$0xf]
        %v2677 = vld [vmem:[%s698 + $0x50] sm:$0xf]
        %v2678 = vld [vmem:[%s698 + $0x54] sm:$0xf]
        %v2679 = vld [vmem:[%s698 + $0x58] sm:$0xf]
        %v2680 = vld [vmem:[%s698 + $0x5c] sm:$0xf]
        %v2681 = vld [vmem:[%s698 + $0x60] sm:$0xf]
        %v2682 = vld [vmem:[%s698 + $0x64] sm:$0xf]
        %v2683 = vld [vmem:[%s698 + $0x68] sm:$0xf]
        %v2684 = vld [vmem:[%s698 + $0x6c] sm:$0xf]
        %v2685 = vld [vmem:[%s698 + $0x70] sm:$0xf]
        %v2686 = vld [vmem:[%s698 + $0x74] sm:$0xf]
        %v2687 = vld [vmem:[%s698 + $0x78] sm:$0xf]
        %v2688 = vld [vmem:[%s698 + $0x7c] sm:$0xf]
        %v2689 = vld [vmem:[%s802] sm:$0x1]
        %v2691 = vlaneseq
        %v2692 = vshrl.u32 %v2691, 7
        %v2693 = vsub.s32 0, %v2692
        %v2694 = vrot.slane %v2689, %v2693
        %v2728 = vunpack.c.l.b16 %v2657
        %v2729 = vunpack.c.l.b16 %v2658
        %v2730 = vunpack.c.l.b16 %v2659
        %v2731 = vunpack.c.l.b16 %v2660
        %v2732 = vunpack.c.l.b16 %v2661
        %v2733 = vunpack.c.l.b16 %v2662
        %v2734 = vunpack.c.l.b16 %v2663
        %v2735 = vunpack.c.l.b16 %v2664
        %v2736 = vunpack.c.l.b16 %v2665
        %v2737 = vunpack.c.l.b16 %v2666
        %v2738 = vunpack.c.l.b16 %v2667
        %v2739 = vunpack.c.l.b16 %v2668
        %v2740 = vunpack.c.l.b16 %v2669
        %v2741 = vunpack.c.l.b16 %v2670
        %v2742 = vunpack.c.l.b16 %v2671
        %v2743 = vunpack.c.l.b16 %v2672
        %v2744 = vunpack.c.l.b16 %v2673
        %v2745 = vunpack.c.l.b16 %v2674
        %v2746 = vunpack.c.l.b16 %v2675
        %v2747 = vunpack.c.l.b16 %v2676
        %v2748 = vunpack.c.l.b16 %v2677
        %v2749 = vunpack.c.l.b16 %v2678
        %v2750 = vunpack.c.l.b16 %v2679
        %v2751 = vunpack.c.l.b16 %v2680
        %v2752 = vunpack.c.l.b16 %v2681
        %v2753 = vunpack.c.l.b16 %v2682
        %v2754 = vunpack.c.l.b16 %v2683
        %v2755 = vunpack.c.l.b16 %v2684
        %v2756 = vunpack.c.l.b16 %v2685
        %v2757 = vunpack.c.l.b16 %v2686
        %v2758 = vunpack.c.l.b16 %v2687
        %v2759 = vunpack.c.l.b16 %v2688
        %v2760 = vpack.c.b16 %v2729, %v2728
        %v2761 = vpack.c.b16 %v2731, %v2730
        %v2762 = vpack.c.b16 %v2733, %v2732
        %v2763 = vpack.c.b16 %v2735, %v2734
        %v2764 = vpack.c.b16 %v2737, %v2736
        %v2765 = vpack.c.b16 %v2739, %v2738
        %v2766 = vpack.c.b16 %v2741, %v2740
        %v2767 = vpack.c.b16 %v2743, %v2742
        %v2768 = vpack.c.b16 %v2745, %v2744
        %v2769 = vpack.c.b16 %v2747, %v2746
        %v2770 = vpack.c.b16 %v2749, %v2748
        %v2771 = vpack.c.b16 %v2751, %v2750
        %v2772 = vpack.c.b16 %v2753, %v2752
        %v2773 = vpack.c.b16 %v2755, %v2754
        %v2774 = vpack.c.b16 %v2757, %v2756
        %v2775 = vpack.c.b16 %v2759, %v2758
        %2792 = vmatprep.subr.bf16.mxu0 0
        %2793 = vmatpush1.bf16.msra.mxu0 %v2767
        %2794 = vmatprep.subr.bf16.mxu0 0
        %2795 = vmatpush1.bf16.msra.mxu0 %v2766
        %2796 = vmatprep.subr.bf16.mxu0 0
        %2797 = vmatpush1.bf16.msra.mxu0 %v2765
        %2798 = vmatprep.subr.bf16.mxu0 0
        %2799 = vmatpush1.bf16.msra.mxu0 %v2764
        %2800 = vmatprep.subr.bf16.mxu0 0
        %2801 = vmatpush1.bf16.msra.mxu0 %v2763
        %2802 = vmatprep.subr.bf16.mxu0 0
        %2803 = vmatpush1.bf16.msra.mxu0 %v2762
        %2804 = vmatprep.subr.bf16.mxu0 0
        %2805 = vmatpush1.bf16.msra.mxu0 %v2761
        %2806 = vmatprep.subr.bf16.mxu0 0
        %2807 = vmatpush1.bf16.msra.mxu0 %v2760
        %2808 = vmatprep.subr.bf16.mxu0 0
        %2809 = vmatpush2.bf16.msra.mxu0 %v2775
        %2810 = vmatprep.subr.bf16.mxu0 0
        %2811 = vmatpush2.bf16.msra.mxu0 %v2774
        %2812 = vmatprep.subr.bf16.mxu0 0
        %2813 = vmatpush2.bf16.msra.mxu0 %v2773
        %2814 = vmatprep.subr.bf16.mxu0 0
        %2815 = vmatpush2.bf16.msra.mxu0 %v2772
        %2816 = vmatprep.subr.bf16.mxu0 0
        %2817 = vmatpush2.bf16.msra.mxu0 %v2771
        %2818 = vmatprep.subr.bf16.mxu0 0
        %2819 = vmatpush2.bf16.msra.mxu0 %v2770
        %2820 = vmatprep.subr.bf16.mxu0 0
        %2821 = vmatpush2.bf16.msra.mxu0 %v2769
        %2822 = vmatprep.subr.bf16.mxu0 0
        %2823 = vmatpush2.bf16.msra.mxu0 %v2768
        %2824 = vmatprep.mubr.bf16.mxu0 %v2656
        %2825 = vmatmul.mubr.bf16.gmra.mxu0 %v2655
        %v2826 = vpop.f32.mrf.mxu0
        %v2827 = vadd.f32 %v2694, %v2826
        %v2828 = vpop.f32.mrf.mxu0
        %v2829 = vpop.f32.mrf.mxu0
        %v2830 = vadd.f32 %v2694, %v2829
        %v2831 = vpop.f32.mrf.mxu0
        %2832 = vdwg.mxu0
        %v2833 = vadd.f32 %v2465, %v2827
        %v2834 = vadd.f32 %v2466, %v2830
        %v2835 = vld [vmem:[%s805] sm:$0x1]
        %v2836 = vld [vmem:[%s808] sm:$0x1]
        %2837 = vadd.xlane.f32.xlu0 %v2833
        %v2838 = vpop.xlane.xlu0 %2837
        %2839 = vadd.xlane.f32.xlu0 %v2834
        %v2840 = vpop.xlane.xlu0 %2839
        %v2841 = vmul.f32 %v2838, %v2432
        %v2842 = vmul.f32 %v2840, %v2432
        %v2843 = vsub.f32 %v2833, %v2841
        %v2844 = vsub.f32 %v2834, %v2842
        %v2845 = vmul.f32 %v2843, %v2843
        %v2846 = vmul.f32 %v2844, %v2844
        %2847 = vadd.xlane.f32.xlu0 %v2845
        %v2848 = vpop.xlane.xlu0 %2847
        %2849 = vadd.xlane.f32.xlu0 %v2846
        %v2850 = vpop.xlane.xlu0 %2849
        %v2851 = vmul.f32 %v2848, %v2432
        %v2852 = vmul.f32 %v2850, %v2432
        %v2853 = vadd.f32 %v2851, 1e-12
        %v2854 = vadd.f32 %v2852, 1e-12
        %v2855 = vrsqrt.pop %v2853
        %v2856 = vrsqrt.pop %v2854
        %v2857 = vmul.f32 %v2843, %v2855
        %v2858 = vmul.f32 %v2844, %v2856
        %v2860 = vlaneseq
        %v2861 = vshrl.u32 %v2860, 7
        %v2862 = vsub.s32 0, %v2861
        %v2863 = vrot.slane %v2835, %v2862
        %v2865 = vmul.f32 %v2857, %v2863
        %v2866 = vmul.f32 %v2858, %v2863
        %v2868 = vlaneseq
        %v2869 = vshrl.u32 %v2868, 7
        %v2870 = vsub.s32 0, %v2869
        %v2871 = vrot.slane %v2836, %v2870
        %v2873 = vadd.f32 %v2865, %v2871
        %v2874 = vadd.f32 %v2866, %v2871
        %2875 = vst [vmem:[#allocation2] sm:$0xff] %v2873
        %2876 = vst [vmem:[#allocation2 + $0x8] sm:$0xff] %v2874
        %2877 = vst [vmem:[#allocation16] sm:$0x1] %v2873
        // Predicated region
        $region121: #{tpu_custom_call.1} parent=83 // pred_check
          %p2878 = pneg %p440
        $region122: #{tpu_custom_call.1} parent=83 // pred_check_branch
          %2880 = sbr.rel (%p2878) target = $region124
        $region123: #{tpu_custom_call.1} parent=83 // pred_region
          %s2882 = ssub.s32 16, 16
          %2883 = vsyncadd [#allocation6], %s2882
          %s2885 = sshll.u32 [#allocation16], 4
          %s2886 = int_to_ptr.vmem [resolvable:$true] %s2885
          %2888 = dma.vmem_to_hbm [thread:$0]  %s2886, 16, %s16, [#allocation6]
        $region124: #{tpu_custom_call.1} parent=83 // pred_fallthru
          _
        // Predicated region
        $region125: #{tpu_custom_call.1} parent=83 // pred_check
          %p2889 = pneg %p440
        $region126: #{tpu_custom_call.1} parent=83 // pred_check_branch
          %2891 = sbr.rel (%p2889) target = $region128
        $region127: #{tpu_custom_call.1} parent=83 // pred_region
          %2892 = dma.done [#allocation6], 16
        $region128: #{tpu_custom_call.1} parent=83 // pred_fallthru
          _
      $region84: #{tpu_custom_call.1} parent=5 // pred_fallthru
        _
      %p2893 = scmp.le.s32.totalorder 2, %s26
      // Predicated region
      $region129: #{tpu_custom_call.1} parent=5 // pred_check
        %p2894 = pneg %p2893
      $region130: #{tpu_custom_call.1} parent=5 // pred_check_branch
        %2896 = sbr.rel (%p2894) target = $region132
      $region131: #{tpu_custom_call.1} parent=5 // pred_region
        %s2897 = ssub.s32 %s26, 2
      $region132: #{tpu_custom_call.1} parent=5 // pred_fallthru
        _
    $region6: #{tpu_custom_call.1} parent=1 // loop_footer
      %s30 = sadd.s32 1, %s26
    $region7: #{tpu_custom_call.1} parent=1 // loop_footer_branch
      %25 = sbr.rel target = $region3
    $region8: #{tpu_custom_call.1} parent=1 // loop_exit
      _
    %2898 = vsyncpa [#allocation5], 1
    %s2899 = scalar_lea.sflag [#allocation5], 1
    %2900 = vsyncpa %s2899, 1
    %2901 = vsyncpa [#allocation8], 1
    %2902 = vsyncpa [#allocation11], 1
    %2903 = vsyncpa [#allocation6], 1
    %s2904 = scalar_lea.sflag [#allocation6], 1
    %2905 = vsyncpa %s2904, 1

</llo_original>
